<compile_context>
chip_gen: v7x
topology: tpu7x:2x2x1
jax: 0.10.0
libtpu: 0.0.40
codegen_flags: <defaults>
</compile_context>

<pallas_src>
import functools

import jax
import jax.numpy as jnp
from jax.experimental import pallas as pl
from jax.experimental.pallas import tpu as pltpu

LANE = 128  # lane width / MXU-friendly padding unit


def _round_up(x, m):
    return (x + m - 1) // m * m


# ---------------------------------------------------------------------------
# Stage 1 kernel:
#   apply_w1=False (Hp <= Fp):  P = ReLU( Â @ T + b1 ) @ W2,  T = X W1 (input)
#   apply_w1=True  (Fp <  Hp):  P = ReLU( (Â @ X) @ W1 + b1 ) @ W2
# grid = (row tiles, k tiles); acc_ref accumulates the Â-matmul in f32.
# The slab (T or X) is VMEM-resident (constant-index BlockSpec) and sliced
# per k-step inside the kernel.
# ---------------------------------------------------------------------------
def _stage1_kernel(*refs, tk, apply_w1):
    if apply_w1:
        a_ref, s_ref, w1_ref, b1_ref, w2_ref, p_ref, acc_ref = refs
    else:
        a_ref, s_ref, b1_ref, w2_ref, p_ref, acc_ref = refs

    k = pl.program_id(1)

    @pl.when(k == 0)
    def _():
        acc_ref[...] = jnp.zeros_like(acc_ref)

    # bf16 operands, f32 accumulation (full-rate MXU, half the HBM bytes).
    start = pl.multiple_of(k * tk, tk)
    s_blk = s_ref[pl.ds(start, tk), :]                     # (tk, width) bf16
    acc_ref[...] += jnp.dot(a_ref[...], s_blk,
                            preferred_element_type=jnp.float32)

    @pl.when(k == pl.num_programs(1) - 1)
    def _():
        hcur = acc_ref[...]                                # [tm, width] f32
        if apply_w1:                                       # static branch
            hcur = jnp.dot(hcur.astype(jnp.bfloat16), w1_ref[...],
                           preferred_element_type=jnp.float32)
        hcur = jnp.maximum(hcur + b1_ref[...], 0.0)        # [tm, Hp]
        p = jnp.dot(hcur.astype(jnp.bfloat16), w2_ref[...],
                    preferred_element_type=jnp.float32)    # [tm, Cp]
        p_ref[...] = p.astype(p_ref.dtype)                 # bf16


# ---------------------------------------------------------------------------
# Stage 2 kernel:  out = log_softmax(Â @ P + b2)   (masking padded classes)
# P is VMEM-resident; only Â is streamed.
# ---------------------------------------------------------------------------
def _stage2_kernel(a_ref, p_ref, b2_ref, out_ref, acc_ref, *, tk, num_classes):
    k = pl.program_id(1)

    @pl.when(k == 0)
    def _():
        acc_ref[...] = jnp.zeros_like(acc_ref)

    start = pl.multiple_of(k * tk, tk)
    p_blk = p_ref[pl.ds(start, tk), :]                     # (tk, Cp) bf16
    acc_ref[...] += jnp.dot(a_ref[...], p_blk,
                            preferred_element_type=jnp.float32)

    @pl.when(k == pl.num_programs(1) - 1)
    def _():
        z = acc_ref[...] + b2_ref[...]                     # [tm, Cp]
        # Padded class columns must not pollute the softmax normalizer.
        col = jax.lax.broadcasted_iota(jnp.int32, z.shape, 1)
        z = jnp.where(col < num_classes, z, -jnp.inf)
        m = jnp.max(z, axis=1, keepdims=True)
        zs = z - m
        lse = jnp.log(jnp.sum(jnp.exp(zs), axis=1, keepdims=True))
        out_ref[...] = zs - lse


# ---------------------------------------------------------------------------
# Wrapper: pad (rows->tm, reduction->tk, features->128), run the two
# pipelined stages, slice the real rows/classes back out.
# ---------------------------------------------------------------------------
@functools.partial(jax.jit, static_argnames=("tm", "tk"))
def gcn_forward(a_hat, x, w1, b1, w2, b2, *, tm=256, tk=256):
    n, f = x.shape
    hdim = w1.shape[1]
    c = w2.shape[1]

    # Keep >= 2 row tiles so the "parallel" axis splits across both v7x TCs.
    while tm > LANE and _round_up(n, tm) // tm < 2:
        tm //= 2

    fp = _round_up(f, LANE)
    hp = _round_up(hdim, LANE)
    cp = _round_up(c, LANE)

    # Decoupled node-axis padding: rows vs reduction dim.
    nr = _round_up(n, tm)                 # Â rows, P rows, output rows
    nk = _round_up(n, tk)                 # stage-1 reduction (Â cols / slab rows)
    tk2 = tk if nr % tk == 0 else tm      # stage-2 reduction tile (divides nr)
    nc = max(nk, nr)                      # Â column padding valid for both stages

    # Reassociate to Â @ (X W1) unless the feature dim is already the smaller one.
    apply_w1 = fp < hp

    # Cast to bf16 BEFORE padding: no padded-f32 N^2 intermediate.
    a_p = jnp.pad(a_hat.astype(jnp.bfloat16), ((0, nr - n), (0, nc - n)))

    if apply_w1:
        s_width = fp
        s = jnp.pad(x.astype(jnp.bfloat16), ((0, nk - n), (0, fp - f)))
        w1_p = jnp.pad(w1.astype(jnp.bfloat16), ((0, fp - f), (0, hp - hdim)))
    else:
        s_width = hp
        # Tiny O(N*F*H) matmul, done once in f32 glue; its bf16 result is the
        # VMEM-resident slab streamed through the big N^2 matmul.
        t = jnp.dot(x, w1)
        s = jnp.pad(t.astype(jnp.bfloat16), ((0, nk - n), (0, hp - hdim)))

    b1_p = jnp.pad(b1.astype(jnp.float32), ((0, 0), (0, hp - hdim)))
    w2_p = jnp.pad(w2.astype(jnp.bfloat16), ((0, hp - hdim), (0, cp - c)))
    b2_p = jnp.pad(b2.astype(jnp.float32), ((0, 0), (0, cp - c)))

    cparams = pltpu.CompilerParams(
        dimension_semantics=("parallel", "arbitrary"),
        # Headroom for v7x's 64 MiB physical VMEM; v5e/v6e have 128 MiB.
        vmem_limit_bytes=48 * 1024 * 1024,
    )

    # ---- stage 1: P (bf16, [nr, cp]) ----
    grid1 = (nr // tm, nk // tk)
    in_specs1 = [
        # Â tile stream (add pipeline_mode=pl.Buffered(3) if xprof shows
        # exposed DMA on this operand).
        pl.BlockSpec((tm, tk), lambda i, k: (i, k)),
        # Resident slab (T or X): DMA'd once, sliced per k inside the kernel.
        pl.BlockSpec((nk, s_width), lambda i, k: (0, 0)),
    ]
    args1 = [a_p, s]
    if apply_w1:
        in_specs1.append(pl.BlockSpec((fp, hp), lambda i, k: (0, 0)))  # W1
        args1.append(w1_p)
    in_specs1 += [
        pl.BlockSpec((1, hp), lambda i, k: (0, 0)),    # b1
        pl.BlockSpec((hp, cp), lambda i, k: (0, 0)),   # W2 (resident, bf16)
    ]
    args1 += [b1_p, w2_p]

    p = pl.pallas_call(
        functools.partial(_stage1_kernel, tk=tk, apply_w1=apply_w1),
        out_shape=jax.ShapeDtypeStruct((nr, cp), jnp.bfloat16),
        grid=grid1,
        in_specs=in_specs1,
        out_specs=pl.BlockSpec((tm, cp), lambda i, k: (i, 0)),
        scratch_shapes=[pltpu.VMEM((tm, s_width), jnp.float32)],
        compiler_params=cparams,
        cost_estimate=pl.CostEstimate(
            flops=2 * nr * nk * s_width + 2 * nr * hp * cp
            + (2 * nr * fp * hp if apply_w1 else 0),
            transcendentals=0,
            bytes_accessed=2 * nr * nc + 2 * nk * s_width + 2 * nr * cp
            + 2 * (fp * hp + hp * cp) + 4 * hp,
        ),
    )(*args1)

    # ---- stage 2: out = log_softmax(Â P + b2), f32 [nr, cp] ----
    grid2 = (nr // tm, nr // tk2)
    out_p = pl.pallas_call(
        functools.partial(_stage2_kernel, tk=tk2, num_classes=c),
        out_shape=jax.ShapeDtypeStruct((nr, cp), jnp.float32),
        grid=grid2,
        in_specs=[
            pl.BlockSpec((tm, tk2), lambda i, k: (i, k)),   # Â tile stream
            pl.BlockSpec((nr, cp), lambda i, k: (0, 0)),    # P resident
            pl.BlockSpec((1, cp), lambda i, k: (0, 0)),     # b2
        ],
        out_specs=pl.BlockSpec((tm, cp), lambda i, k: (i, 0)),
        scratch_shapes=[pltpu.VMEM((tm, cp), jnp.float32)],
        compiler_params=cparams,
        cost_estimate=pl.CostEstimate(
            flops=2 * nr * nr * cp,
            transcendentals=nr * (cp + 1),
            bytes_accessed=2 * nr * nc + 2 * nr * cp + 4 * nr * cp + 4 * cp,
        ),
    )(a_p, p, b2_p)

    return out_p[:n, :c]


# ---------------------------------------------------------------------------
# Plain-JAX glue: dense Â = D^-1/2 (A + I) D^-1/2 from edge_index [2, E],
# emitted directly in the kernel's streaming dtype (bf16) so the wrapper
# never materializes an extra f32 N^2 copy.
# ---------------------------------------------------------------------------
def normalized_adjacency(edge_index, num_nodes, dtype=jnp.bfloat16):
    src, dst = edge_index[0], edge_index[1]
    a = jnp.zeros((num_nodes, num_nodes), jnp.float32)
    a = a.at[src, dst].set(1.0)
    # Add self-loops without double-counting existing ones.
    a = jnp.maximum(a, jnp.eye(num_nodes, dtype=jnp.float32))
    deg = jnp.sum(a, axis=1)
    d_inv_sqrt = 1.0 / jnp.sqrt(deg)
    return (d_inv_sqrt[:, None] * a * d_inv_sqrt[None, :]).astype(dtype)


def glorot(key, shape):
    fan_in, fan_out = shape
    limit = jnp.sqrt(6.0 / (fan_in + fan_out))
    return jax.random.uniform(key, shape, jnp.float32, -limit, limit)


if __name__ == "__main__":
    # Small deterministic synthetic "dataset":
    #   N=300 nodes (exercises padding + a (2,2) grid at 256-tiles),
    #   F=8 features, nhid=32, C=4 classes.
    N, F, H, C = 300, 8, 32, 4

    key = jax.random.PRNGKey(0)
    kx, kw1, kw2 = jax.random.split(key, 3)

    x = jax.random.normal(kx, (N, F), jnp.float32)

    # Deterministic ring graph (both directions), edge_index: [2, 2N]
    idx = jnp.arange(N, dtype=jnp.int32)
    src = jnp.concatenate([idx, (idx + 1) % N])
    dst = jnp.concatenate([(idx + 1) % N, idx])
    edge_index = jnp.stack([src, dst], axis=0)

    # GCNConv parameters (glorot weights, zero biases), as in reset_parameters()
    w1 = glorot(kw1, (F, H))
    b1 = jnp.zeros((1, H), jnp.float32)
    w2 = glorot(kw2, (H, C))
    b2 = jnp.zeros((1, C), jnp.float32)

    a_hat = normalized_adjacency(edge_index, N)            # bf16 [N, N]

    out = gcn_forward(a_hat, x, w1, b1, w2, b2)
    out = jax.block_until_ready(out)

    # Reference 1: same math with the same bf16 casts / association as the
    # kernel (tight tolerance — verifies the kernel itself).
    fp_, hp_ = _round_up(F, LANE), _round_up(H, LANE)
    a_bf = a_hat                                            # bf16
    if fp_ < hp_:
        ax = jnp.dot(a_bf, x.astype(jnp.bfloat16), preferred_element_type=jnp.float32)
        h_m = jnp.maximum(
            jnp.dot(ax.astype(jnp.bfloat16), w1.astype(jnp.bfloat16),
                    preferred_element_type=jnp.float32) + b1, 0.0)
    else:
        t_bf = jnp.dot(x, w1).astype(jnp.bfloat16)
        h_m = jnp.maximum(
            jnp.dot(a_bf, t_bf, preferred_element_type=jnp.float32) + b1, 0.0)
    p_m = jnp.dot(h_m.astype(jnp.bfloat16), w2.astype(jnp.bfloat16),
                  preferred_element_type=jnp.float32).astype(jnp.bfloat16)
    z_m = jnp.dot(a_bf, p_m, preferred_element_type=jnp.float32) + b2
    ref_matched = jax.nn.log_softmax(z_m, axis=1)
    assert jnp.allclose(out, ref_matched, atol=2e-3, rtol=2e-3), \
        "mismatch vs bf16-matched reference"

    # Reference 2: full-f32 math (loose tolerance — bounds the bf16 error).
    a_f = normalized_adjacency(edge_index, N, dtype=jnp.float32)
    h_f = jnp.maximum(a_f @ (x @ w1) + b1, 0.0)
    z_f = a_f @ (h_f @ w2) + b2
    ref_f32 = jax.nn.log_softmax(z_f, axis=1)
    assert jnp.allclose(out, ref_f32, atol=1e-1, rtol=1e-1), \
        "mismatch vs f32 reference"

    print("KERNEL_OK")
</pallas_src>

<mosaic_0001>
module attributes {stable_mosaic.version = 11 : i64} {
  func.func @_stage1_kernel(%arg0: i32, %arg1: i32, %arg2: memref<256x256xbf16, #tpu.memory_space<vmem>>, %arg3: memref<512x128xbf16, #tpu.memory_space<vmem>>, %arg4: memref<1x128xf32, #tpu.memory_space<vmem>>, %arg5: memref<128x128xbf16, #tpu.memory_space<vmem>>, %arg6: memref<256x128xbf16, #tpu.memory_space<vmem>>, %arg7: memref<256x128xf32, #tpu.memory_space<vmem>>) attributes {dimension_semantics = [#tpu.dimension_semantics<parallel>, #tpu.dimension_semantics<arbitrary>], iteration_bounds = array<i64: 2, 2>, scalar_prefetch = 0 : i64, scratch_operands = 1 : i64, tpu.core_type = #tpu.core_type<tc>, window_params = [{transform_indices = @transform_0, window_bounds = array<i64: 256, 256>}, {pipeline_mode = #tpu.pipeline_mode<synchronous>, transform_indices = @transform_1, window_bounds = array<i64: 512, 128>}, {pipeline_mode = #tpu.pipeline_mode<synchronous>, transform_indices = @transform_2, window_bounds = array<i64: 1, 128>}, {pipeline_mode = #tpu.pipeline_mode<synchronous>, transform_indices = @transform_3, window_bounds = array<i64: 128, 128>}, {transform_indices = @transform_4, window_bounds = array<i64: 256, 128>}]} {
    %c0_i32 = arith.constant 0 : i32
    %0 = arith.cmpi eq, %arg1, %c0_i32 : i32
    %1 = arith.extui %0 : i1 to i32
    %c0_i32_0 = arith.constant 0 : i32
    %2 = arith.cmpi ne, %1, %c0_i32_0 : i32
    scf.if %2 {
      %cst_8 = arith.constant 0.000000e+00 : f32
      %15 = vector.broadcast %cst_8 : f32 to vector<256x128xf32>
      %c0_9 = arith.constant 0 : index
      %c0_10 = arith.constant 0 : index
      %16 = vector.load %arg7[%c0_9, %c0_10] : memref<256x128xf32, #tpu.memory_space<vmem>>, vector<256x128xf32>
      tpu.vector_store %arg7[%c0_9, %c0_10], %15 {strides = array<i32>} : memref<256x128xf32, #tpu.memory_space<vmem>>, vector<256x128xf32>,
    } else {
    }
    %c256_i32 = arith.constant 256 : i32
    %3 = arith.muli %arg1, %c256_i32 : i32
    %4 = tpu.assume_multiple %3, 256 : i32
    %5 = arith.index_cast %4 : i32 to index
    %c0 = arith.constant 0 : index
    %6 = vector.load %arg3[%5, %c0] : memref<512x128xbf16, #tpu.memory_space<vmem>>, vector<256x128xbf16>
    %c0_1 = arith.constant 0 : index
    %c0_2 = arith.constant 0 : index
    %7 = vector.load %arg7[%c0_1, %c0_2] : memref<256x128xf32, #tpu.memory_space<vmem>>, vector<256x128xf32>
    %c0_3 = arith.constant 0 : index
    %c0_4 = arith.constant 0 : index
    %8 = vector.load %arg2[%c0_3, %c0_4] : memref<256x256xbf16, #tpu.memory_space<vmem>>, vector<256x256xbf16>
    %cst = arith.constant dense<0.000000e+00> : vector<256x128xf32>
    %9 = tpu.matmul %8, %6, %cst {dimension_numbers = #tpu.dot_dimension_numbers<[1], [0], [0], [1], [0, 0, 1, 1], [], []>} : vector<256x256xbf16>, vector<256x128xbf16>, vector<256x128xf32> -> vector<256x128xf32>
    %10 = arith.addf %7, %9 : vector<256x128xf32>
    %c0_5 = arith.constant 0 : index
    %c0_6 = arith.constant 0 : index
    %11 = vector.load %arg7[%c0_5, %c0_6] : memref<256x128xf32, #tpu.memory_space<vmem>>, vector<256x128xf32>
    tpu.vector_store %arg7[%c0_5, %c0_6], %10 {strides = array<i32>} : memref<256x128xf32, #tpu.memory_space<vmem>>, vector<256x128xf32>,
    %c1_i32 = arith.constant 1 : i32
    %12 = arith.cmpi eq, %arg1, %c1_i32 : i32
    %13 = arith.extui %12 : i1 to i32
    %c0_i32_7 = arith.constant 0 : i32
    %14 = arith.cmpi ne, %13, %c0_i32_7 : i32
    scf.if %14 {
      %c0_8 = arith.constant 0 : index
      %c0_9 = arith.constant 0 : index
      %15 = vector.load %arg7[%c0_8, %c0_9] : memref<256x128xf32, #tpu.memory_space<vmem>>, vector<256x128xf32>
      %c0_10 = arith.constant 0 : index
      %c0_11 = arith.constant 0 : index
      %16 = vector.load %arg4[%c0_10, %c0_11] : memref<1x128xf32, #tpu.memory_space<vmem>>, vector<1x128xf32>
      %17 = vector.broadcast %16 : vector<1x128xf32> to vector<256x128xf32>
      %18 = arith.addf %15, %17 : vector<256x128xf32>
      %cst_12 = arith.constant 0.000000e+00 : f32
      %19 = vector.broadcast %cst_12 : f32 to vector<256x128xf32>
      %20 = arith.maximumf %18, %19 : vector<256x128xf32>
      %21 = arith.truncf %20 : vector<256x128xf32> to vector<256x128xbf16>
      %c0_13 = arith.constant 0 : index
      %c0_14 = arith.constant 0 : index
      %22 = vector.load %arg5[%c0_13, %c0_14] : memref<128x128xbf16, #tpu.memory_space<vmem>>, vector<128x128xbf16>
      %cst_15 = arith.constant dense<0.000000e+00> : vector<256x128xf32>
      %23 = tpu.matmul %21, %22, %cst_15 {dimension_numbers = #tpu.dot_dimension_numbers<[1], [0], [0], [1], [0, 0, 1, 1], [], []>} : vector<256x128xbf16>, vector<128x128xbf16>, vector<256x128xf32> -> vector<256x128xf32>
      %24 = arith.truncf %23 : vector<256x128xf32> to vector<256x128xbf16>
      %c0_16 = arith.constant 0 : index
      %c0_17 = arith.constant 0 : index
      %25 = vector.load %arg6[%c0_16, %c0_17] : memref<256x128xbf16, #tpu.memory_space<vmem>>, vector<256x128xbf16>
      tpu.vector_store %arg6[%c0_16, %c0_17], %24 {strides = array<i32>} : memref<256x128xbf16, #tpu.memory_space<vmem>>, vector<256x128xbf16>,
    } else {
    }
    return
  }
  func.func @transform_0(%arg0: i32, %arg1: i32) -> (i32, i32) {
    %c0_i32 = arith.constant 0 : i32
    return %arg0, %arg1 : i32, i32
  }
  func.func @transform_1(%arg0: i32, %arg1: i32) -> (i32, i32) {
    %c0_i32 = arith.constant 0 : i32
    %c0_i32_0 = arith.constant 0 : i32
    %c0_i32_1 = arith.constant 0 : i32
    return %c0_i32, %c0_i32_0 : i32, i32
  }
  func.func @transform_2(%arg0: i32, %arg1: i32) -> (i32, i32) {
    %c0_i32 = arith.constant 0 : i32
    %c0_i32_0 = arith.constant 0 : i32
    %c0_i32_1 = arith.constant 0 : i32
    return %c0_i32, %c0_i32_0 : i32, i32
  }
  func.func @transform_3(%arg0: i32, %arg1: i32) -> (i32, i32) {
    %c0_i32 = arith.constant 0 : i32
    %c0_i32_0 = arith.constant 0 : i32
    %c0_i32_1 = arith.constant 0 : i32
    return %c0_i32, %c0_i32_0 : i32, i32
  }
  func.func @transform_4(%arg0: i32, %arg1: i32) -> (i32, i32) {
    %c0_i32 = arith.constant 0 : i32
    %c0_i32_0 = arith.constant 0 : i32
    return %arg0, %c0_i32 : i32, i32
  }
}

module attributes {stable_mosaic.version = 11 : i64} {
  func.func @_stage2_kernel(%arg0: i32, %arg1: i32, %arg2: memref<256x256xbf16, #tpu.memory_space<vmem>>, %arg3: memref<512x128xbf16, #tpu.memory_space<vmem>>, %arg4: memref<1x128xf32, #tpu.memory_space<vmem>>, %arg5: memref<256x128xf32, #tpu.memory_space<vmem>>, %arg6: memref<256x128xf32, #tpu.memory_space<vmem>>) attributes {dimension_semantics = [#tpu.dimension_semantics<parallel>, #tpu.dimension_semantics<arbitrary>], iteration_bounds = array<i64: 2, 2>, scalar_prefetch = 0 : i64, scratch_operands = 1 : i64, tpu.core_type = #tpu.core_type<tc>, window_params = [{transform_indices = @transform_0, window_bounds = array<i64: 256, 256>}, {pipeline_mode = #tpu.pipeline_mode<synchronous>, transform_indices = @transform_1, window_bounds = array<i64: 512, 128>}, {pipeline_mode = #tpu.pipeline_mode<synchronous>, transform_indices = @transform_2, window_bounds = array<i64: 1, 128>}, {transform_indices = @transform_3, window_bounds = array<i64: 256, 128>}]} {
    %c0_i32 = arith.constant 0 : i32
    %0 = arith.cmpi eq, %arg1, %c0_i32 : i32
    %1 = arith.extui %0 : i1 to i32
    %c0_i32_0 = arith.constant 0 : i32
    %2 = arith.cmpi ne, %1, %c0_i32_0 : i32
    scf.if %2 {
      %cst_8 = arith.constant 0.000000e+00 : f32
      %15 = vector.broadcast %cst_8 : f32 to vector<256x128xf32>
      %c0_9 = arith.constant 0 : index
      %c0_10 = arith.constant 0 : index
      %16 = vector.load %arg6[%c0_9, %c0_10] : memref<256x128xf32, #tpu.memory_space<vmem>>, vector<256x128xf32>
      tpu.vector_store %arg6[%c0_9, %c0_10], %15 {strides = array<i32>} : memref<256x128xf32, #tpu.memory_space<vmem>>, vector<256x128xf32>,
    } else {
    }
    %c256_i32 = arith.constant 256 : i32
    %3 = arith.muli %arg1, %c256_i32 : i32
    %4 = tpu.assume_multiple %3, 256 : i32
    %5 = arith.index_cast %4 : i32 to index
    %c0 = arith.constant 0 : index
    %6 = vector.load %arg3[%5, %c0] : memref<512x128xbf16, #tpu.memory_space<vmem>>, vector<256x128xbf16>
    %c0_1 = arith.constant 0 : index
    %c0_2 = arith.constant 0 : index
    %7 = vector.load %arg6[%c0_1, %c0_2] : memref<256x128xf32, #tpu.memory_space<vmem>>, vector<256x128xf32>
    %c0_3 = arith.constant 0 : index
    %c0_4 = arith.constant 0 : index
    %8 = vector.load %arg2[%c0_3, %c0_4] : memref<256x256xbf16, #tpu.memory_space<vmem>>, vector<256x256xbf16>
    %cst = arith.constant dense<0.000000e+00> : vector<256x128xf32>
    %9 = tpu.matmul %8, %6, %cst {dimension_numbers = #tpu.dot_dimension_numbers<[1], [0], [0], [1], [0, 0, 1, 1], [], []>} : vector<256x256xbf16>, vector<256x128xbf16>, vector<256x128xf32> -> vector<256x128xf32>
    %10 = arith.addf %7, %9 : vector<256x128xf32>
    %c0_5 = arith.constant 0 : index
    %c0_6 = arith.constant 0 : index
    %11 = vector.load %arg6[%c0_5, %c0_6] : memref<256x128xf32, #tpu.memory_space<vmem>>, vector<256x128xf32>
    tpu.vector_store %arg6[%c0_5, %c0_6], %10 {strides = array<i32>} : memref<256x128xf32, #tpu.memory_space<vmem>>, vector<256x128xf32>,
    %c1_i32 = arith.constant 1 : i32
    %12 = arith.cmpi eq, %arg1, %c1_i32 : i32
    %13 = arith.extui %12 : i1 to i32
    %c0_i32_7 = arith.constant 0 : i32
    %14 = arith.cmpi ne, %13, %c0_i32_7 : i32
    scf.if %14 {
      %c0_8 = arith.constant 0 : index
      %c0_9 = arith.constant 0 : index
      %15 = vector.load %arg6[%c0_8, %c0_9] : memref<256x128xf32, #tpu.memory_space<vmem>>, vector<256x128xf32>
      %c0_10 = arith.constant 0 : index
      %c0_11 = arith.constant 0 : index
      %16 = vector.load %arg4[%c0_10, %c0_11] : memref<1x128xf32, #tpu.memory_space<vmem>>, vector<1x128xf32>
      %17 = vector.broadcast %16 : vector<1x128xf32> to vector<256x128xf32>
      %18 = arith.addf %15, %17 : vector<256x128xf32>
      %19 = tpu.iota {dimensions = array<i32: 1>} : vector<256x128xi32>
      %c4_i32 = arith.constant 4 : i32
      %20 = vector.broadcast %c4_i32 : i32 to vector<256x128xi32>
      %21 = arith.cmpi slt, %19, %20 : vector<256x128xi32>
      %cst_12 = arith.constant 0xFF800000 : f32
      %22 = vector.broadcast %cst_12 : f32 to vector<256x128xf32>
      %23 = arith.select %21, %18, %22 : vector<256x128xi1>, vector<256x128xf32>
      %cst_13 = arith.constant dense<0xFF800000> : vector<256xf32>
      %24 = vector.multi_reduction <maximumf>, %23, %cst_13 [1] : vector<256x128xf32> to vector<256xf32>
      %25 = vector.shape_cast %24 : vector<256xf32> to vector<256x1xf32>
      %26 = vector.broadcast %25 : vector<256x1xf32> to vector<256x128xf32>
      %27 = arith.subf %23, %26 : vector<256x128xf32>
      %28 = math.exp %27 : vector<256x128xf32>
      %cst_14 = arith.constant dense<0.000000e+00> : vector<256xf32>
      %29 = vector.multi_reduction <add>, %28, %cst_14 [1] : vector<256x128xf32> to vector<256xf32>
      %30 = vector.shape_cast %29 : vector<256xf32> to vector<256x1xf32>
      %31 = math.log %30 : vector<256x1xf32>
      %32 = vector.broadcast %31 : vector<256x1xf32> to vector<256x128xf32>
      %33 = arith.subf %27, %32 : vector<256x128xf32>
      %c0_15 = arith.constant 0 : index
      %c0_16 = arith.constant 0 : index
      %34 = vector.load %arg5[%c0_15, %c0_16] : memref<256x128xf32, #tpu.memory_space<vmem>>, vector<256x128xf32>
      tpu.vector_store %arg5[%c0_15, %c0_16], %33 {strides = array<i32>} : memref<256x128xf32, #tpu.memory_space<vmem>>, vector<256x128xf32>,
    } else {
    }
    return
  }
  func.func @transform_0(%arg0: i32, %arg1: i32) -> (i32, i32) {
    %c0_i32 = arith.constant 0 : i32
    return %arg0, %arg1 : i32, i32
  }
  func.func @transform_1(%arg0: i32, %arg1: i32) -> (i32, i32) {
    %c0_i32 = arith.constant 0 : i32
    %c0_i32_0 = arith.constant 0 : i32
    %c0_i32_1 = arith.constant 0 : i32
    return %c0_i32, %c0_i32_0 : i32, i32
  }
  func.func @transform_2(%arg0: i32, %arg1: i32) -> (i32, i32) {
    %c0_i32 = arith.constant 0 : i32
    %c0_i32_0 = arith.constant 0 : i32
    %c0_i32_1 = arith.constant 0 : i32
    return %c0_i32, %c0_i32_0 : i32, i32
  }
  func.func @transform_3(%arg0: i32, %arg1: i32) -> (i32, i32) {
    %c0_i32 = arith.constant 0 : i32
    %c0_i32_0 = arith.constant 0 : i32
    return %arg0, %c0_i32 : i32, i32
  }
}

</mosaic_0001>

<llo_original>
// kernel: gcn_forward.3
$region0: #{gcn_forward.3}
  #allocation0 [shape = 'u32[]', space=smem, size = 0x4, offset = 0x4, fixed_abs, tag = 'smem constant byte address 0x4 - core index']
  #allocation1 [shape = 'u32[144,128]{1,0:T(1,128)}', space=vmem, size = 0x12000, scoped, tag = 'internal scratch']
  #allocation2 [shape = 'f32[256,128]{1,0:T(8,128)}', space=vmem, size = 0x20000, scoped, tag = 'scratch operand']
  %s0 = inlined_call_operand.vmem [shape: bf16[512,512], index: 0, kind: input, shape index: {}]
  %s1 = inlined_call_operand.vmem [shape: bf16[512,128], index: 1, kind: input, shape index: {}]
  %s2 = inlined_call_operand.vmem [shape: f32[1,128], index: 2, kind: input, shape index: {}]
  %s3 = inlined_call_operand.vmem [shape: f32[512,128], index: 3, kind: output, shape index: {}]
  %s4 = sld [smem:[#allocation0]]
  $region91: #{gcn_forward.3} parent=0
    _
  %s6 = ssub.s32 1, %s4
  %s7 = scalar_select 0, %s6, %s4
  $region1: #{gcn_forward.3} parent=0
    #allocation3 [shape = 'u8[262144]{0}', space=vmem, size = 0x40000, scoped, tag = 'input window, operand 0']
    loop: start=0, step=1, limit=6
    $region2: #{gcn_forward.3} parent=1 // loop_pre_header
      _
    $region3: #{gcn_forward.3} parent=1 // loop_header
      %s9 = sphi 0, %s13
      %p10 = scmp.ge.s32.totalorder %s9, 6
      %s16 = sphi 0, %s28
      %s17 = sphi 0, %s24
      %s18 = sphi 0, %s16
      %s19 = sphi 0, %s17
      %s20 = sphi 0, %s18
      %s21 = sphi 0, %s19
      %s33 = sphi 0, %s35
      %s36 = sphi 0, %s33
      %s37 = sphi 0, %s36
      %s53 = sphi 0, %s37
      %s57 = sphi 0, %s57
      %s59 = sphi 0, %s57
      %s60 = sphi 0, %s59
      %s74 = sphi 0, %s60
      %s78 = sphi 0, %s78
      %s80 = sphi 0, %s78
      %s81 = sphi 0, %s80
      %s95 = sphi 0, %s81
      %s101 = sphi 0, %s103
      %s104 = sphi 0, %s101
      %s105 = sphi 0, %s104
      %s121 = sphi 0, %s105
    $region4: #{gcn_forward.3} parent=1 // loop_header_branch
      %12 = sbr.rel (%p10) target = $region8
    $region5: #{gcn_forward.3} parent=1 // loop_body
      %s14 = ssub.s32 %s9, 1
      %s15 = ssub.s32 %s9, 2
      %s22 = sadd.s32 1, %s17
      %p23 = scmp.ge.s32.totalorder %s22, 2
      %s24 = scalar_select %p23, 0, %s22
      %s25 = sadd.s32 1, %s16
      %s26 = scalar_select %p23, %s25, %s16
      %p27 = scmp.ge.s32.totalorder %s26, 2
      %s28 = scalar_select %p27, 0, %s26
      %s29 = ssub.s32 %s16, %s28
      %s30 = ssub.s32 %s17, %s24
      %s31 = sor.u32 %s29, %s30
      %p32 = scmp.eq.s32.totalorder %s31, 0
      %s34 = sadd.s32 %s33, 1
      %s35 = scalar_select %p32, %s33, %s34
      %p38 = pneg %p32
      %p39 = scmp.eq.s32.totalorder %s9, 3
      %p40 = por %p38, %p39
      %p41 = scmp.ne.s32.totalorder %s33, %s36
      %p42 = scmp.eq.s32.totalorder %s9, 0
      %p43 = por %p41, %p42
      %p44 = scmp.ne.s32.totalorder %s33, %s36
      %p45 = scmp.eq.s32.totalorder %s14, 3
      %p46 = por %p44, %p45
      %p47 = scmp.ne.s32.totalorder %s36, %s37
      %p48 = scmp.eq.s32.totalorder %s14, 0
      %p49 = por %p47, %p48
      %p50 = scmp.ne.s32.totalorder %s36, %s37
      %p51 = scmp.eq.s32.totalorder %s15, 3
      %p52 = por %p50, %p51
      %p54 = scmp.ne.s32.totalorder %s37, %s53
      %p55 = scmp.eq.s32.totalorder %s15, 0
      %p56 = por %p54, %p55
      %s58 = sadd.s32 %s57, 1
      %p61 = scmp.eq.s32.totalorder %s9, 3
      %p62 = scmp.ne.s32.totalorder %s57, %s59
      %p63 = scmp.eq.s32.totalorder %s9, 0
      %p64 = por %p62, %p63
      %p65 = scmp.ne.s32.totalorder %s57, %s59
      %p66 = scmp.eq.s32.totalorder %s14, 3
      %p67 = por %p65, %p66
      %p68 = scmp.ne.s32.totalorder %s59, %s60
      %p69 = scmp.eq.s32.totalorder %s14, 0
      %p70 = por %p68, %p69
      %p71 = scmp.ne.s32.totalorder %s59, %s60
      %p72 = scmp.eq.s32.totalorder %s15, 3
      %p73 = por %p71, %p72
      %p75 = scmp.ne.s32.totalorder %s60, %s74
      %p76 = scmp.eq.s32.totalorder %s15, 0
      %p77 = por %p75, %p76
      %s79 = sadd.s32 %s78, 1
      %p82 = scmp.eq.s32.totalorder %s9, 3
      %p83 = scmp.ne.s32.totalorder %s78, %s80
      %p84 = scmp.eq.s32.totalorder %s9, 0
      %p85 = por %p83, %p84
      %p86 = scmp.ne.s32.totalorder %s78, %s80
      %p87 = scmp.eq.s32.totalorder %s14, 3
      %p88 = por %p86, %p87
      %p89 = scmp.ne.s32.totalorder %s80, %s81
      %p90 = scmp.eq.s32.totalorder %s14, 0
      %p91 = por %p89, %p90
      %p92 = scmp.ne.s32.totalorder %s80, %s81
      %p93 = scmp.eq.s32.totalorder %s15, 3
      %p94 = por %p92, %p93
      %p96 = scmp.ne.s32.totalorder %s81, %s95
      %p97 = scmp.eq.s32.totalorder %s15, 0
      %p98 = por %p96, %p97
      %s99 = ssub.s32 %s16, %s28
      %p100 = scmp.eq.s32.totalorder %s99, 0
      %s102 = sadd.s32 %s101, 1
      %s103 = scalar_select %p100, %s101, %s102
      %p106 = pneg %p100
      %p107 = scmp.eq.s32.totalorder %s9, 3
      %p108 = por %p106, %p107
      %p109 = scmp.ne.s32.totalorder %s101, %s104
      %p110 = scmp.eq.s32.totalorder %s9, 0
      %p111 = por %p109, %p110
      %p112 = scmp.ne.s32.totalorder %s101, %s104
      %p113 = scmp.eq.s32.totalorder %s14, 3
      %p114 = por %p112, %p113
      %p115 = scmp.ne.s32.totalorder %s104, %s105
      %p116 = scmp.eq.s32.totalorder %s14, 0
      %p117 = por %p115, %p116
      %p118 = scmp.ne.s32.totalorder %s104, %s105
      %p119 = scmp.eq.s32.totalorder %s15, 3
      %p120 = por %p118, %p119
      %p122 = scmp.ne.s32.totalorder %s105, %s121
      %p123 = scmp.eq.s32.totalorder %s15, 0
      %p124 = por %p122, %p123
      %p125 = scmp.le.s32.totalorder 1, %s9
      %p126 = scmp.lt.s32.totalorder %s9, 5
      %p127 = pnand %p125, %p126
      %p128 = pneg %p127
      // Predicated region
      $region9: #{gcn_forward.3} parent=5 // pred_check
        _
      $region10: #{gcn_forward.3} parent=5 // pred_check_branch
        %130 = sbr.rel (%p127) target = $region12
      $region11: #{gcn_forward.3} parent=5 // pred_region
        %s131 = ssub.s32 %s9, 1
        // Predicated region
        $region13: #{gcn_forward.3} parent=11 // pred_check
          %p132 = pneg %p70
        $region14: #{gcn_forward.3} parent=11 // pred_check_branch
          %134 = sbr.rel (%p132) target = $region16
        $region15: #{gcn_forward.3} parent=11 // pred_region
          _
        $region16: #{gcn_forward.3} parent=11 // pred_fallthru
          _
        // Predicated region
        $region17: #{gcn_forward.3} parent=11 // pred_check
          %p135 = pneg %p91
        $region18: #{gcn_forward.3} parent=11 // pred_check_branch
          %137 = sbr.rel (%p135) target = $region20
        $region19: #{gcn_forward.3} parent=11 // pred_region
          _
        $region20: #{gcn_forward.3} parent=11 // pred_fallthru
          _
      $region12: #{gcn_forward.3} parent=5 // pred_fallthru
        _
      %p138 = scmp.lt.s32.totalorder %s9, 4
      // Predicated region
      $region21: #{gcn_forward.3} parent=5 // pred_check
        %p139 = pneg %p138
      $region22: #{gcn_forward.3} parent=5 // pred_check_branch
        %141 = sbr.rel (%p139) target = $region24
      $region23: #{gcn_forward.3} parent=5 // pred_region
        // Predicated region
        $region25: #{gcn_forward.3} parent=23 // pred_check
          %p142 = pneg %p43
        $region26: #{gcn_forward.3} parent=23 // pred_check_branch
          %144 = sbr.rel (%p142) target = $region28
        $region27: #{gcn_forward.3} parent=23 // pred_region
          %s145 = sand.u32 %s33, 1
          %s146 = sand.u32 %s33, 1
          %s147 = smul.addr %s146, 256
          %s148 = scalar_lea.vmem [#allocation3], %s147
          %s149 = smul.u32 32, %s16
          %s150 = smul.u32 2, %s17
          %s151 = smul.addr %s149, 4
          %s152 = sadd.s32 %s150, %s151
          %s153 = smul.addr %s152, 4
          %s154 = scalar_lea.vmem %s0, %s153
          // Predicated region
          $region29: #{gcn_forward.3} parent=27 // pred_check
            _
          $region30: #{gcn_forward.3} parent=27 // pred_check_branch
            %156 = sbr.rel (0) target = $region32
          $region31: #{gcn_forward.3} parent=27 // pred_region
            // Predicated region
            $region33: #{gcn_forward.3} parent=31 // pred_check
              _
            $region34: #{gcn_forward.3} parent=31 // pred_check_branch
              %158 = sbr.rel (0) target = $region36
            $region35: #{gcn_forward.3} parent=31 // pred_region
              // Predicated region
              $region48: #{gcn_forward.3} parent=35 // pred_check
                _
              $region49: #{gcn_forward.3} parent=35 // pred_check_branch
                %235 = sbr.rel (0) target = $region51
              $region50: #{gcn_forward.3} parent=35 // pred_region
                loop: start=0, step=1, limit=1
                $region52: #{gcn_forward.3} parent=50 // loop_pre_header
                  _
                $region53: #{gcn_forward.3} parent=50 // loop_header
                  %s237 = sphi 0, %s241
                  %p238 = scmp.ge.s32.totalorder %s237, 1
                  %s242 = sphi %s154, %s154
                  %s243 = sphi %s148, %s148
                $region54: #{gcn_forward.3} parent=50 // loop_header_branch
                  %240 = sbr.rel (%p238) target = $region58
                $region55: #{gcn_forward.3} parent=50 // loop_body
                  %v244 = vld [vmem:[%s242] sm:$0xff]
                  %245 = vst [vmem:[%s243] sm:$0xff] %v244
                  %v246 = vld [vmem:[%s242 + $0x10] sm:$0xff]
                  %247 = vst [vmem:[%s243 + $0x8] sm:$0xff] %v246
                  %v248 = vld [vmem:[%s242 + $0x20] sm:$0xff]
                  %249 = vst [vmem:[%s243 + $0x10] sm:$0xff] %v248
                  %v250 = vld [vmem:[%s242 + $0x30] sm:$0xff]
                  %251 = vst [vmem:[%s243 + $0x18] sm:$0xff] %v250
                  %v252 = vld [vmem:[%s242 + $0x40] sm:$0xff]
                  %253 = vst [vmem:[%s243 + $0x20] sm:$0xff] %v252
                  %v254 = vld [vmem:[%s242 + $0x50] sm:$0xff]
                  %255 = vst [vmem:[%s243 + $0x28] sm:$0xff] %v254
                  %v256 = vld [vmem:[%s242 + $0x60] sm:$0xff]
                  %257 = vst [vmem:[%s243 + $0x30] sm:$0xff] %v256
                  %v258 = vld [vmem:[%s242 + $0x70] sm:$0xff]
                  %259 = vst [vmem:[%s243 + $0x38] sm:$0xff] %v258
                  %v260 = vld [vmem:[%s242 + $0x80] sm:$0xff]
                  %261 = vst [vmem:[%s243 + $0x40] sm:$0xff] %v260
                  %v262 = vld [vmem:[%s242 + $0x90] sm:$0xff]
                  %263 = vst [vmem:[%s243 + $0x48] sm:$0xff] %v262
                  %v264 = vld [vmem:[%s242 + $0xa0] sm:$0xff]
                  %265 = vst [vmem:[%s243 + $0x50] sm:$0xff] %v264
                  %v266 = vld [vmem:[%s242 + $0xb0] sm:$0xff]
                  %267 = vst [vmem:[%s243 + $0x58] sm:$0xff] %v266
                  %v268 = vld [vmem:[%s242 + $0xc0] sm:$0xff]
                  %269 = vst [vmem:[%s243 + $0x60] sm:$0xff] %v268
                  %v270 = vld [vmem:[%s242 + $0xd0] sm:$0xff]
                  %271 = vst [vmem:[%s243 + $0x68] sm:$0xff] %v270
                  %v272 = vld [vmem:[%s242 + $0xe0] sm:$0xff]
                  %273 = vst [vmem:[%s243 + $0x70] sm:$0xff] %v272
                  %v274 = vld [vmem:[%s242 + $0xf0] sm:$0xff]
                  %275 = vst [vmem:[%s243 + $0x78] sm:$0xff] %v274
                  %v276 = vld [vmem:[%s242 + $0x100] sm:$0xff]
                  %277 = vst [vmem:[%s243 + $0x80] sm:$0xff] %v276
                  %v278 = vld [vmem:[%s242 + $0x110] sm:$0xff]
                  %279 = vst [vmem:[%s243 + $0x88] sm:$0xff] %v278
                  %v280 = vld [vmem:[%s242 + $0x120] sm:$0xff]
                  %281 = vst [vmem:[%s243 + $0x90] sm:$0xff] %v280
                  %v282 = vld [vmem:[%s242 + $0x130] sm:$0xff]
                  %283 = vst [vmem:[%s243 + $0x98] sm:$0xff] %v282
                  %v284 = vld [vmem:[%s242 + $0x140] sm:$0xff]
                  %285 = vst [vmem:[%s243 + $0xa0] sm:$0xff] %v284
                  %v286 = vld [vmem:[%s242 + $0x150] sm:$0xff]
                  %287 = vst [vmem:[%s243 + $0xa8] sm:$0xff] %v286
                  %v288 = vld [vmem:[%s242 + $0x160] sm:$0xff]
                  %289 = vst [vmem:[%s243 + $0xb0] sm:$0xff] %v288
                  %v290 = vld [vmem:[%s242 + $0x170] sm:$0xff]
                  %291 = vst [vmem:[%s243 + $0xb8] sm:$0xff] %v290
                  %v292 = vld [vmem:[%s242 + $0x180] sm:$0xff]
                  %293 = vst [vmem:[%s243 + $0xc0] sm:$0xff] %v292
                  %v294 = vld [vmem:[%s242 + $0x190] sm:$0xff]
                  %295 = vst [vmem:[%s243 + $0xc8] sm:$0xff] %v294
                  %v296 = vld [vmem:[%s242 + $0x1a0] sm:$0xff]
                  %297 = vst [vmem:[%s243 + $0xd0] sm:$0xff] %v296
                  %v298 = vld [vmem:[%s242 + $0x1b0] sm:$0xff]
                  %299 = vst [vmem:[%s243 + $0xd8] sm:$0xff] %v298
                  %v300 = vld [vmem:[%s242 + $0x1c0] sm:$0xff]
                  %301 = vst [vmem:[%s243 + $0xe0] sm:$0xff] %v300
                  %v302 = vld [vmem:[%s242 + $0x1d0] sm:$0xff]
                  %303 = vst [vmem:[%s243 + $0xe8] sm:$0xff] %v302
                  %v304 = vld [vmem:[%s242 + $0x1e0] sm:$0xff]
                  %305 = vst [vmem:[%s243 + $0xf0] sm:$0xff] %v304
                  %v306 = vld [vmem:[%s242 + $0x1f0] sm:$0xff]
                  %307 = vst [vmem:[%s243 + $0xf8] sm:$0xff] %v306
                $region56: #{gcn_forward.3} parent=50 // loop_footer
                  %s241 = sadd.s32 1, %s237
                $region57: #{gcn_forward.3} parent=50 // loop_footer_branch
                  %236 = sbr.rel target = $region53
                $region58: #{gcn_forward.3} parent=50 // loop_exit
                  _
              $region51: #{gcn_forward.3} parent=35 // pred_fallthru
                _
              // Predicated region
              $region59: #{gcn_forward.3} parent=35 // pred_check
                _
              $region60: #{gcn_forward.3} parent=35 // pred_check_branch
                %309 = sbr.rel target = $region62
              $region61: #{gcn_forward.3} parent=35 // pred_region
                _
              $region62: #{gcn_forward.3} parent=35 // pred_fallthru
                _
            $region36: #{gcn_forward.3} parent=31 // pred_fallthru
              _
            // Predicated region
            $region37: #{gcn_forward.3} parent=31 // pred_check
              _
            $region38: #{gcn_forward.3} parent=31 // pred_check_branch
              %160 = sbr.rel target = $region40
            $region39: #{gcn_forward.3} parent=31 // pred_region
              loop: start=0, step=1, limit=1
              $region41: #{gcn_forward.3} parent=39 // loop_pre_header
                _
              $region42: #{gcn_forward.3} parent=39 // loop_header
                %s163 = sphi 0, %s167
                %p164 = scmp.ge.s32.totalorder %s163, 1
                %s168 = sphi %s154, %s154
                %s169 = sphi %s148, %s148
              $region43: #{gcn_forward.3} parent=39 // loop_header_branch
                %166 = sbr.rel (%p164) target = $region47
              $region44: #{gcn_forward.3} parent=39 // loop_body
                %v170 = vld [vmem:[%s168] sm:$0xff]
                %171 = vst [vmem:[%s169] sm:$0xff] %v170
                %v172 = vld [vmem:[%s168 + $0x10] sm:$0xff]
                %173 = vst [vmem:[%s169 + $0x8] sm:$0xff] %v172
                %v174 = vld [vmem:[%s168 + $0x20] sm:$0xff]
                %175 = vst [vmem:[%s169 + $0x10] sm:$0xff] %v174
                %v176 = vld [vmem:[%s168 + $0x30] sm:$0xff]
                %177 = vst [vmem:[%s169 + $0x18] sm:$0xff] %v176
                %v178 = vld [vmem:[%s168 + $0x40] sm:$0xff]
                %179 = vst [vmem:[%s169 + $0x20] sm:$0xff] %v178
                %v180 = vld [vmem:[%s168 + $0x50] sm:$0xff]
                %181 = vst [vmem:[%s169 + $0x28] sm:$0xff] %v180
                %v182 = vld [vmem:[%s168 + $0x60] sm:$0xff]
                %183 = vst [vmem:[%s169 + $0x30] sm:$0xff] %v182
                %v184 = vld [vmem:[%s168 + $0x70] sm:$0xff]
                %185 = vst [vmem:[%s169 + $0x38] sm:$0xff] %v184
                %v186 = vld [vmem:[%s168 + $0x80] sm:$0xff]
                %187 = vst [vmem:[%s169 + $0x40] sm:$0xff] %v186
                %v188 = vld [vmem:[%s168 + $0x90] sm:$0xff]
                %189 = vst [vmem:[%s169 + $0x48] sm:$0xff] %v188
                %v190 = vld [vmem:[%s168 + $0xa0] sm:$0xff]
                %191 = vst [vmem:[%s169 + $0x50] sm:$0xff] %v190
                %v192 = vld [vmem:[%s168 + $0xb0] sm:$0xff]
                %193 = vst [vmem:[%s169 + $0x58] sm:$0xff] %v192
                %v194 = vld [vmem:[%s168 + $0xc0] sm:$0xff]
                %195 = vst [vmem:[%s169 + $0x60] sm:$0xff] %v194
                %v196 = vld [vmem:[%s168 + $0xd0] sm:$0xff]
                %197 = vst [vmem:[%s169 + $0x68] sm:$0xff] %v196
                %v198 = vld [vmem:[%s168 + $0xe0] sm:$0xff]
                %199 = vst [vmem:[%s169 + $0x70] sm:$0xff] %v198
                %v200 = vld [vmem:[%s168 + $0xf0] sm:$0xff]
                %201 = vst [vmem:[%s169 + $0x78] sm:$0xff] %v200
                %v202 = vld [vmem:[%s168 + $0x100] sm:$0xff]
                %203 = vst [vmem:[%s169 + $0x80] sm:$0xff] %v202
                %v204 = vld [vmem:[%s168 + $0x110] sm:$0xff]
                %205 = vst [vmem:[%s169 + $0x88] sm:$0xff] %v204
                %v206 = vld [vmem:[%s168 + $0x120] sm:$0xff]
                %207 = vst [vmem:[%s169 + $0x90] sm:$0xff] %v206
                %v208 = vld [vmem:[%s168 + $0x130] sm:$0xff]
                %209 = vst [vmem:[%s169 + $0x98] sm:$0xff] %v208
                %v210 = vld [vmem:[%s168 + $0x140] sm:$0xff]
                %211 = vst [vmem:[%s169 + $0xa0] sm:$0xff] %v210
                %v212 = vld [vmem:[%s168 + $0x150] sm:$0xff]
                %213 = vst [vmem:[%s169 + $0xa8] sm:$0xff] %v212
                %v214 = vld [vmem:[%s168 + $0x160] sm:$0xff]
                %215 = vst [vmem:[%s169 + $0xb0] sm:$0xff] %v214
                %v216 = vld [vmem:[%s168 + $0x170] sm:$0xff]
                %217 = vst [vmem:[%s169 + $0xb8] sm:$0xff] %v216
                %v218 = vld [vmem:[%s168 + $0x180] sm:$0xff]
                %219 = vst [vmem:[%s169 + $0xc0] sm:$0xff] %v218
                %v220 = vld [vmem:[%s168 + $0x190] sm:$0xff]
                %221 = vst [vmem:[%s169 + $0xc8] sm:$0xff] %v220
                %v222 = vld [vmem:[%s168 + $0x1a0] sm:$0xff]
                %223 = vst [vmem:[%s169 + $0xd0] sm:$0xff] %v222
                %v224 = vld [vmem:[%s168 + $0x1b0] sm:$0xff]
                %225 = vst [vmem:[%s169 + $0xd8] sm:$0xff] %v224
                %v226 = vld [vmem:[%s168 + $0x1c0] sm:$0xff]
                %227 = vst [vmem:[%s169 + $0xe0] sm:$0xff] %v226
                %v228 = vld [vmem:[%s168 + $0x1d0] sm:$0xff]
                %229 = vst [vmem:[%s169 + $0xe8] sm:$0xff] %v228
                %v230 = vld [vmem:[%s168 + $0x1e0] sm:$0xff]
                %231 = vst [vmem:[%s169 + $0xf0] sm:$0xff] %v230
                %v232 = vld [vmem:[%s168 + $0x1f0] sm:$0xff]
                %233 = vst [vmem:[%s169 + $0xf8] sm:$0xff] %v232
              $region45: #{gcn_forward.3} parent=39 // loop_footer
                %s167 = sadd.s32 1, %s163
              $region46: #{gcn_forward.3} parent=39 // loop_footer_branch
                %162 = sbr.rel target = $region42
              $region47: #{gcn_forward.3} parent=39 // loop_exit
                _
            $region40: #{gcn_forward.3} parent=31 // pred_fallthru
              _
          $region32: #{gcn_forward.3} parent=27 // pred_fallthru
            _
          %310 = vnop
        $region28: #{gcn_forward.3} parent=23 // pred_fallthru
          _
      $region24: #{gcn_forward.3} parent=5 // pred_fallthru
        _
      %p311 = scmp.le.s32.totalorder 1, %s9
      %p312 = scmp.lt.s32.totalorder %s9, 5
      %p313 = pnand %p311, %p312
      %p314 = pneg %p313
      // Predicated region
      $region63: #{gcn_forward.3} parent=5 // pred_check
        _
      $region64: #{gcn_forward.3} parent=5 // pred_check_branch
        %316 = sbr.rel (%p313) target = $region66
      $region65: #{gcn_forward.3} parent=5 // pred_region
        %s317 = ssub.s32 %s9, 1
        %s318 = sand.u32 %s36, 1
        %s319 = sand.u32 %s36, 1
        %s320 = smul.addr %s319, 256
        %s321 = scalar_lea.vmem [#allocation3], %s320
        // Predicated region
        $region67: #{gcn_forward.3} parent=65 // pred_check
          %p322 = pneg %p49
        $region68: #{gcn_forward.3} parent=65 // pred_check_branch
          %324 = sbr.rel (%p322) target = $region70
        $region69: #{gcn_forward.3} parent=65 // pred_region
          _
        $region70: #{gcn_forward.3} parent=65 // pred_fallthru
          _
        %s325 = sand.u32 %s36, 1
        %s326 = sand.u32 %s36, 1
        %s327 = smul.addr %s326, 256
        %s328 = scalar_lea.vmem [#allocation3], %s327
        %p329 = pneg %p49
        %p330 = pneg %p46
        %p331 = pneg %p70
        %p332 = pneg %p67
        %p333 = pneg %p91
        %p334 = pneg %p88
        %p335 = pneg %p117
        %p336 = pneg %p114
        %s337 = smul.u32 32, %s18
        %p338 = scmp.lt.s32.totalorder %s337, 63
        %s339 = scalar_select %p338, %s337, 63
        %s340 = smul.addr %s339, 8
        %s341 = scalar_lea.vmem %s3, %s340
        %s342 = smul.u32 32, %s18
        %s343 = smul.u32 2, %s19
        %s344 = smul.u32 32, %s18
        %p345 = scmp.lt.s32.totalorder %s344, 63
        %s346 = scalar_select %p345, %s344, 63
        %s347 = smul.addr %s346, 8
        %s348 = scalar_lea.vmem %s3, %s347
        %s349 = smul.u32 32, %s18
        %p351 = scmp.eq.s32.totalorder %s19, 0
        // Predicated region
        $region71: #{gcn_forward.3} parent=65 // pred_check
          %p352 = pneg %p351
        $region72: #{gcn_forward.3} parent=65 // pred_check_branch
          %354 = sbr.rel (%p352) target = $region74
        $region73: #{gcn_forward.3} parent=65 // pred_region
          %355 = vst [vmem:[#allocation2] sm:$0xff] 0.0
          %356 = vst [vmem:[#allocation2 + $0x8] sm:$0xff] 0.0
          %357 = vst [vmem:[#allocation2 + $0x10] sm:$0xff] 0.0
          %358 = vst [vmem:[#allocation2 + $0x18] sm:$0xff] 0.0
          %359 = vst [vmem:[#allocation2 + $0x20] sm:$0xff] 0.0
          %360 = vst [vmem:[#allocation2 + $0x28] sm:$0xff] 0.0
          %361 = vst [vmem:[#allocation2 + $0x30] sm:$0xff] 0.0
          %362 = vst [vmem:[#allocation2 + $0x38] sm:$0xff] 0.0
          %363 = vst [vmem:[#allocation2 + $0x40] sm:$0xff] 0.0
          %364 = vst [vmem:[#allocation2 + $0x48] sm:$0xff] 0.0
          %365 = vst [vmem:[#allocation2 + $0x50] sm:$0xff] 0.0
          %366 = vst [vmem:[#allocation2 + $0x58] sm:$0xff] 0.0
          %367 = vst [vmem:[#allocation2 + $0x60] sm:$0xff] 0.0
          %368 = vst [vmem:[#allocation2 + $0x68] sm:$0xff] 0.0
          %369 = vst [vmem:[#allocation2 + $0x70] sm:$0xff] 0.0
          %370 = vst [vmem:[#allocation2 + $0x78] sm:$0xff] 0.0
          %371 = vst [vmem:[#allocation2 + $0x80] sm:$0xff] 0.0
          %372 = vst [vmem:[#allocation2 + $0x88] sm:$0xff] 0.0
          %373 = vst [vmem:[#allocation2 + $0x90] sm:$0xff] 0.0
          %374 = vst [vmem:[#allocation2 + $0x98] sm:$0xff] 0.0
          %375 = vst [vmem:[#allocation2 + $0xa0] sm:$0xff] 0.0
          %376 = vst [vmem:[#allocation2 + $0xa8] sm:$0xff] 0.0
          %377 = vst [vmem:[#allocation2 + $0xb0] sm:$0xff] 0.0
          %378 = vst [vmem:[#allocation2 + $0xb8] sm:$0xff] 0.0
          %379 = vst [vmem:[#allocation2 + $0xc0] sm:$0xff] 0.0
          %380 = vst [vmem:[#allocation2 + $0xc8] sm:$0xff] 0.0
          %381 = vst [vmem:[#allocation2 + $0xd0] sm:$0xff] 0.0
          %382 = vst [vmem:[#allocation2 + $0xd8] sm:$0xff] 0.0
          %383 = vst [vmem:[#allocation2 + $0xe0] sm:$0xff] 0.0
          %384 = vst [vmem:[#allocation2 + $0xe8] sm:$0xff] 0.0
          %385 = vst [vmem:[#allocation2 + $0xf0] sm:$0xff] 0.0
          %386 = vst [vmem:[#allocation2 + $0xf8] sm:$0xff] 0.0
        $region74: #{gcn_forward.3} parent=65 // pred_fallthru
          _
        %s387 = smul.u32 %s19, 256
        %s388 = sshra.s32 %s387, 3
        %s389 = sand.u32 %s387, 7
        %s390 = smul.addr %s388, 4
        %s391 = scalar_lea.vmem %s1, %s390
        %v392 = vld [vmem:[%s391] sm:$0xf]
        %v393 = vld [vmem:[%s391 + $0x4] sm:$0xf]
        %v394 = vld [vmem:[%s391 + $0x8] sm:$0xf]
        %v395 = vld [vmem:[%s391 + $0xc] sm:$0xf]
        %v396 = vld [vmem:[%s391 + $0x10] sm:$0xf]
        %v397 = vld [vmem:[%s391 + $0x14] sm:$0xf]
        %v398 = vld [vmem:[%s391 + $0x18] sm:$0xf]
        %v399 = vld [vmem:[%s391 + $0x1c] sm:$0xf]
        %v400 = vld [vmem:[%s391 + $0x20] sm:$0xf]
        %v401 = vld [vmem:[%s391 + $0x24] sm:$0xf]
        %v402 = vld [vmem:[%s391 + $0x28] sm:$0xf]
        %v403 = vld [vmem:[%s391 + $0x2c] sm:$0xf]
        %v404 = vld [vmem:[%s391 + $0x30] sm:$0xf]
        %v405 = vld [vmem:[%s391 + $0x34] sm:$0xf]
        %v406 = vld [vmem:[%s391 + $0x38] sm:$0xf]
        %v407 = vld [vmem:[%s391 + $0x3c] sm:$0xf]
        %v408 = vld [vmem:[%s391 + $0x40] sm:$0xf]
        %v409 = vld [vmem:[%s391 + $0x44] sm:$0xf]
        %v410 = vld [vmem:[%s391 + $0x48] sm:$0xf]
        %v411 = vld [vmem:[%s391 + $0x4c] sm:$0xf]
        %v412 = vld [vmem:[%s391 + $0x50] sm:$0xf]
        %v413 = vld [vmem:[%s391 + $0x54] sm:$0xf]
        %v414 = vld [vmem:[%s391 + $0x58] sm:$0xf]
        %v415 = vld [vmem:[%s391 + $0x5c] sm:$0xf]
        %v416 = vld [vmem:[%s391 + $0x60] sm:$0xf]
        %v417 = vld [vmem:[%s391 + $0x64] sm:$0xf]
        %v418 = vld [vmem:[%s391 + $0x68] sm:$0xf]
        %v419 = vld [vmem:[%s391 + $0x6c] sm:$0xf]
        %v420 = vld [vmem:[%s391 + $0x70] sm:$0xf]
        %v421 = vld [vmem:[%s391 + $0x74] sm:$0xf]
        %v422 = vld [vmem:[%s391 + $0x78] sm:$0xf]
        %v423 = vld [vmem:[%s391 + $0x7c] sm:$0xf]
        %v424 = vld [vmem:[#allocation2] sm:$0xff]
        %v425 = vld [vmem:[#allocation2 + $0x8] sm:$0xff]
        %v426 = vld [vmem:[#allocation2 + $0x10] sm:$0xff]
        %v427 = vld [vmem:[#allocation2 + $0x18] sm:$0xff]
        %v428 = vld [vmem:[#allocation2 + $0x20] sm:$0xff]
        %v429 = vld [vmem:[#allocation2 + $0x28] sm:$0xff]
        %v430 = vld [vmem:[#allocation2 + $0x30] sm:$0xff]
        %v431 = vld [vmem:[#allocation2 + $0x38] sm:$0xff]
        %v432 = vld [vmem:[#allocation2 + $0x40] sm:$0xff]
        %v433 = vld [vmem:[#allocation2 + $0x48] sm:$0xff]
        %v434 = vld [vmem:[#allocation2 + $0x50] sm:$0xff]
        %v435 = vld [vmem:[#allocation2 + $0x58] sm:$0xff]
        %v436 = vld [vmem:[#allocation2 + $0x60] sm:$0xff]
        %v437 = vld [vmem:[#allocation2 + $0x68] sm:$0xff]
        %v438 = vld [vmem:[#allocation2 + $0x70] sm:$0xff]
        %v439 = vld [vmem:[#allocation2 + $0x78] sm:$0xff]
        %v440 = vld [vmem:[#allocation2 + $0x80] sm:$0xff]
        %v441 = vld [vmem:[#allocation2 + $0x88] sm:$0xff]
        %v442 = vld [vmem:[#allocation2 + $0x90] sm:$0xff]
        %v443 = vld [vmem:[#allocation2 + $0x98] sm:$0xff]
        %v444 = vld [vmem:[#allocation2 + $0xa0] sm:$0xff]
        %v445 = vld [vmem:[#allocation2 + $0xa8] sm:$0xff]
        %v446 = vld [vmem:[#allocation2 + $0xb0] sm:$0xff]
        %v447 = vld [vmem:[#allocation2 + $0xb8] sm:$0xff]
        %v448 = vld [vmem:[#allocation2 + $0xc0] sm:$0xff]
        %v449 = vld [vmem:[#allocation2 + $0xc8] sm:$0xff]
        %v450 = vld [vmem:[#allocation2 + $0xd0] sm:$0xff]
        %v451 = vld [vmem:[#allocation2 + $0xd8] sm:$0xff]
        %v452 = vld [vmem:[#allocation2 + $0xe0] sm:$0xff]
        %v453 = vld [vmem:[#allocation2 + $0xe8] sm:$0xff]
        %v454 = vld [vmem:[#allocation2 + $0xf0] sm:$0xff]
        %v455 = vld [vmem:[#allocation2 + $0xf8] sm:$0xff]
        %v456 = vld [vmem:[%s321] sm:$0xff]
        %v457 = vld [vmem:[%s321 + $0x8] sm:$0xff]
        %v458 = vld [vmem:[%s321 + $0x10] sm:$0xff]
        %v459 = vld [vmem:[%s321 + $0x18] sm:$0xff]
        %v460 = vld [vmem:[%s321 + $0x20] sm:$0xff]
        %v461 = vld [vmem:[%s321 + $0x28] sm:$0xff]
        %v462 = vld [vmem:[%s321 + $0x30] sm:$0xff]
        %v463 = vld [vmem:[%s321 + $0x38] sm:$0xff]
        %v464 = vld [vmem:[%s321 + $0x40] sm:$0xff]
        %v465 = vld [vmem:[%s321 + $0x48] sm:$0xff]
        %v466 = vld [vmem:[%s321 + $0x50] sm:$0xff]
        %v467 = vld [vmem:[%s321 + $0x58] sm:$0xff]
        %v468 = vld [vmem:[%s321 + $0x60] sm:$0xff]
        %v469 = vld [vmem:[%s321 + $0x68] sm:$0xff]
        %v470 = vld [vmem:[%s321 + $0x70] sm:$0xff]
        %v471 = vld [vmem:[%s321 + $0x78] sm:$0xff]
        %v472 = vld [vmem:[%s321 + $0x80] sm:$0xff]
        %v473 = vld [vmem:[%s321 + $0x88] sm:$0xff]
        %v474 = vld [vmem:[%s321 + $0x90] sm:$0xff]
        %v475 = vld [vmem:[%s321 + $0x98] sm:$0xff]
        %v476 = vld [vmem:[%s321 + $0xa0] sm:$0xff]
        %v477 = vld [vmem:[%s321 + $0xa8] sm:$0xff]
        %v478 = vld [vmem:[%s321 + $0xb0] sm:$0xff]
        %v479 = vld [vmem:[%s321 + $0xb8] sm:$0xff]
        %v480 = vld [vmem:[%s321 + $0xc0] sm:$0xff]
        %v481 = vld [vmem:[%s321 + $0xc8] sm:$0xff]
        %v482 = vld [vmem:[%s321 + $0xd0] sm:$0xff]
        %v483 = vld [vmem:[%s321 + $0xd8] sm:$0xff]
        %v484 = vld [vmem:[%s321 + $0xe0] sm:$0xff]
        %v485 = vld [vmem:[%s321 + $0xe8] sm:$0xff]
        %v486 = vld [vmem:[%s321 + $0xf0] sm:$0xff]
        %v487 = vld [vmem:[%s321 + $0xf8] sm:$0xff]
        %v520 = vunpack.c.l.b16 %v456
        %v521 = vunpack.c.h.b16 %v456
        %v522 = vunpack.c.l.b16 %v457
        %v523 = vunpack.c.h.b16 %v457
        %v524 = vunpack.c.l.b16 %v458
        %v525 = vunpack.c.h.b16 %v458
        %v526 = vunpack.c.l.b16 %v459
        %v527 = vunpack.c.h.b16 %v459
        %v528 = vunpack.c.l.b16 %v460
        %v529 = vunpack.c.h.b16 %v460
        %v530 = vunpack.c.l.b16 %v461
        %v531 = vunpack.c.h.b16 %v461
        %v532 = vunpack.c.l.b16 %v462
        %v533 = vunpack.c.h.b16 %v462
        %v534 = vunpack.c.l.b16 %v463
        %v535 = vunpack.c.h.b16 %v463
        %v536 = vunpack.c.l.b16 %v464
        %v537 = vunpack.c.h.b16 %v464
        %v538 = vunpack.c.l.b16 %v465
        %v539 = vunpack.c.h.b16 %v465
        %v540 = vunpack.c.l.b16 %v466
        %v541 = vunpack.c.h.b16 %v466
        %v542 = vunpack.c.l.b16 %v467
        %v543 = vunpack.c.h.b16 %v467
        %v544 = vunpack.c.l.b16 %v468
        %v545 = vunpack.c.h.b16 %v468
        %v546 = vunpack.c.l.b16 %v469
        %v547 = vunpack.c.h.b16 %v469
        %v548 = vunpack.c.l.b16 %v470
        %v549 = vunpack.c.h.b16 %v470
        %v550 = vunpack.c.l.b16 %v471
        %v551 = vunpack.c.h.b16 %v471
        %v552 = vunpack.c.l.b16 %v472
        %v553 = vunpack.c.h.b16 %v472
        %v554 = vunpack.c.l.b16 %v473
        %v555 = vunpack.c.h.b16 %v473
        %v556 = vunpack.c.l.b16 %v474
        %v557 = vunpack.c.h.b16 %v474
        %v558 = vunpack.c.l.b16 %v475
        %v559 = vunpack.c.h.b16 %v475
        %v560 = vunpack.c.l.b16 %v476
        %v561 = vunpack.c.h.b16 %v476
        %v562 = vunpack.c.l.b16 %v477
        %v563 = vunpack.c.h.b16 %v477
        %v564 = vunpack.c.l.b16 %v478
        %v565 = vunpack.c.h.b16 %v478
        %v566 = vunpack.c.l.b16 %v479
        %v567 = vunpack.c.h.b16 %v479
        %v568 = vunpack.c.l.b16 %v480
        %v569 = vunpack.c.h.b16 %v480
        %v570 = vunpack.c.l.b16 %v481
        %v571 = vunpack.c.h.b16 %v481
        %v572 = vunpack.c.l.b16 %v482
        %v573 = vunpack.c.h.b16 %v482
        %v574 = vunpack.c.l.b16 %v483
        %v575 = vunpack.c.h.b16 %v483
        %v576 = vunpack.c.l.b16 %v484
        %v577 = vunpack.c.h.b16 %v484
        %v578 = vunpack.c.l.b16 %v485
        %v579 = vunpack.c.h.b16 %v485
        %v580 = vunpack.c.l.b16 %v486
        %v581 = vunpack.c.h.b16 %v486
        %v582 = vunpack.c.l.b16 %v487
        %v583 = vunpack.c.h.b16 %v487
        %v584 = vpack.c.b16 %v522, %v520
        %v585 = vpack.c.b16 %v523, %v521
        %v586 = vpack.c.b16 %v526, %v524
        %v587 = vpack.c.b16 %v527, %v525
        %v588 = vpack.c.b16 %v530, %v528
        %v589 = vpack.c.b16 %v531, %v529
        %v590 = vpack.c.b16 %v534, %v532
        %v591 = vpack.c.b16 %v535, %v533
        %v592 = vpack.c.b16 %v538, %v536
        %v593 = vpack.c.b16 %v539, %v537
        %v594 = vpack.c.b16 %v542, %v540
        %v595 = vpack.c.b16 %v543, %v541
        %v596 = vpack.c.b16 %v546, %v544
        %v597 = vpack.c.b16 %v547, %v545
        %v598 = vpack.c.b16 %v550, %v548
        %v599 = vpack.c.b16 %v551, %v549
        %v600 = vpack.c.b16 %v554, %v552
        %v601 = vpack.c.b16 %v555, %v553
        %v602 = vpack.c.b16 %v558, %v556
        %v603 = vpack.c.b16 %v559, %v557
        %v604 = vpack.c.b16 %v562, %v560
        %v605 = vpack.c.b16 %v563, %v561
        %v606 = vpack.c.b16 %v566, %v564
        %v607 = vpack.c.b16 %v567, %v565
        %v608 = vpack.c.b16 %v570, %v568
        %v609 = vpack.c.b16 %v571, %v569
        %v610 = vpack.c.b16 %v574, %v572
        %v611 = vpack.c.b16 %v575, %v573
        %v612 = vpack.c.b16 %v578, %v576
        %v613 = vpack.c.b16 %v579, %v577
        %v614 = vpack.c.b16 %v582, %v580
        %v615 = vpack.c.b16 %v583, %v581
        %v680 = vunpack.c.l.b16 %v392
        %v681 = vunpack.c.l.b16 %v393
        %v682 = vunpack.c.l.b16 %v394
        %v683 = vunpack.c.l.b16 %v395
        %v684 = vunpack.c.l.b16 %v396
        %v685 = vunpack.c.l.b16 %v397
        %v686 = vunpack.c.l.b16 %v398
        %v687 = vunpack.c.l.b16 %v399
        %v688 = vunpack.c.l.b16 %v400
        %v689 = vunpack.c.l.b16 %v401
        %v690 = vunpack.c.l.b16 %v402
        %v691 = vunpack.c.l.b16 %v403
        %v692 = vunpack.c.l.b16 %v404
        %v693 = vunpack.c.l.b16 %v405
        %v694 = vunpack.c.l.b16 %v406
        %v695 = vunpack.c.l.b16 %v407
        %v696 = vunpack.c.l.b16 %v408
        %v697 = vunpack.c.l.b16 %v409
        %v698 = vunpack.c.l.b16 %v410
        %v699 = vunpack.c.l.b16 %v411
        %v700 = vunpack.c.l.b16 %v412
        %v701 = vunpack.c.l.b16 %v413
        %v702 = vunpack.c.l.b16 %v414
        %v703 = vunpack.c.l.b16 %v415
        %v704 = vunpack.c.l.b16 %v416
        %v705 = vunpack.c.l.b16 %v417
        %v706 = vunpack.c.l.b16 %v418
        %v707 = vunpack.c.l.b16 %v419
        %v708 = vunpack.c.l.b16 %v420
        %v709 = vunpack.c.l.b16 %v421
        %v710 = vunpack.c.l.b16 %v422
        %v711 = vunpack.c.l.b16 %v423
        %v712 = vpack.c.b16 %v681, %v680
        %v713 = vpack.c.b16 %v683, %v682
        %v714 = vpack.c.b16 %v685, %v684
        %v715 = vpack.c.b16 %v687, %v686
        %v716 = vpack.c.b16 %v689, %v688
        %v717 = vpack.c.b16 %v691, %v690
        %v718 = vpack.c.b16 %v693, %v692
        %v719 = vpack.c.b16 %v695, %v694
        %v720 = vpack.c.b16 %v697, %v696
        %v721 = vpack.c.b16 %v699, %v698
        %v722 = vpack.c.b16 %v701, %v700
        %v723 = vpack.c.b16 %v703, %v702
        %v724 = vpack.c.b16 %v705, %v704
        %v725 = vpack.c.b16 %v707, %v706
        %v726 = vpack.c.b16 %v709, %v708
        %v727 = vpack.c.b16 %v711, %v710
        %744 = vmatprep.subr.bf16.mxu0 0
        %745 = vmatpush1.bf16.msra.mxu0 %v712
        %746 = vmatprep.subr.bf16.mxu0 0
        %747 = vmatpush1.bf16.msra.mxu0 %v713
        %748 = vmatprep.subr.bf16.mxu0 0
        %749 = vmatpush1.bf16.msra.mxu0 %v714
        %750 = vmatprep.subr.bf16.mxu0 0
        %751 = vmatpush1.bf16.msra.mxu0 %v715
        %752 = vmatprep.subr.bf16.mxu0 0
        %753 = vmatpush1.bf16.msra.mxu0 %v716
        %754 = vmatprep.subr.bf16.mxu0 0
        %755 = vmatpush1.bf16.msra.mxu0 %v717
        %756 = vmatprep.subr.bf16.mxu0 0
        %757 = vmatpush1.bf16.msra.mxu0 %v718
        %758 = vmatprep.subr.bf16.mxu0 0
        %759 = vmatpush1.bf16.msra.mxu0 %v719
        %760 = vmatprep.subr.bf16.mxu0 0
        %761 = vmatpush1.bf16.msra.mxu0 %v720
        %762 = vmatprep.subr.bf16.mxu0 0
        %763 = vmatpush1.bf16.msra.mxu0 %v721
        %764 = vmatprep.subr.bf16.mxu0 0
        %765 = vmatpush1.bf16.msra.mxu0 %v722
        %766 = vmatprep.subr.bf16.mxu0 0
        %767 = vmatpush1.bf16.msra.mxu0 %v723
        %768 = vmatprep.subr.bf16.mxu0 0
        %769 = vmatpush1.bf16.msra.mxu0 %v724
        %770 = vmatprep.subr.bf16.mxu0 0
        %771 = vmatpush1.bf16.msra.mxu0 %v725
        %772 = vmatprep.subr.bf16.mxu0 0
        %773 = vmatpush1.bf16.msra.mxu0 %v726
        %774 = vmatprep.subr.bf16.mxu0 0
        %775 = vmatpush1.bf16.msra.mxu0 %v727
        %776 = vmatprep.mubr.bf16.mxu0 %v585
        %777 = vmatmul.mubr.bf16.gmra.mrb[0].mxu0 %v584
        %v778 = vpop.f32.mrb[0].mxu0
        %v779 = vadd.f32 0.0, %v778
        %v780 = vpop.f32.mrb[0].mxu0
        %v781 = vpop.f32.mrb[0].mxu0
        %v782 = vadd.f32 0.0, %v781
        %v783 = vpop.f32.mrb[0].mxu0
        %784 = vmatprep.mubr.bf16.mxu0 %v587
        %785 = vmatmul.mubr.bf16.gmra.mrb[0].mxu0 %v586
        %v786 = vpop.f32.mrb[0].mxu0
        %v787 = vadd.f32 0.0, %v786
        %v788 = vpop.f32.mrb[0].mxu0
        %v789 = vpop.f32.mrb[0].mxu0
        %v790 = vadd.f32 0.0, %v789
        %v791 = vpop.f32.mrb[0].mxu0
        %792 = vmatprep.mubr.bf16.mxu0 %v589
        %793 = vmatmul.mubr.bf16.gmra.mrb[0].mxu0 %v588
        %v794 = vpop.f32.mrb[0].mxu0
        %v795 = vadd.f32 0.0, %v794
        %v796 = vpop.f32.mrb[0].mxu0
        %v797 = vpop.f32.mrb[0].mxu0
        %v798 = vadd.f32 0.0, %v797
        %v799 = vpop.f32.mrb[0].mxu0
        %800 = vmatprep.mubr.bf16.mxu0 %v591
        %801 = vmatmul.mubr.bf16.gmra.mrb[0].mxu0 %v590
        %v802 = vpop.f32.mrb[0].mxu0
        %v803 = vadd.f32 0.0, %v802
        %v804 = vpop.f32.mrb[0].mxu0
        %v805 = vpop.f32.mrb[0].mxu0
        %v806 = vadd.f32 0.0, %v805
        %v807 = vpop.f32.mrb[0].mxu0
        %808 = vmatprep.mubr.bf16.mxu0 %v593
        %809 = vmatmul.mubr.bf16.gmra.mrb[0].mxu0 %v592
        %v810 = vpop.f32.mrb[0].mxu0
        %v811 = vadd.f32 0.0, %v810
        %v812 = vpop.f32.mrb[0].mxu0
        %v813 = vpop.f32.mrb[0].mxu0
        %v814 = vadd.f32 0.0, %v813
        %v815 = vpop.f32.mrb[0].mxu0
        %816 = vmatprep.mubr.bf16.mxu0 %v595
        %817 = vmatmul.mubr.bf16.gmra.mrb[0].mxu0 %v594
        %v818 = vpop.f32.mrb[0].mxu0
        %v819 = vadd.f32 0.0, %v818
        %v820 = vpop.f32.mrb[0].mxu0
        %v821 = vpop.f32.mrb[0].mxu0
        %v822 = vadd.f32 0.0, %v821
        %v823 = vpop.f32.mrb[0].mxu0
        %824 = vmatprep.mubr.bf16.mxu0 %v597
        %825 = vmatmul.mubr.bf16.gmra.mrb[0].mxu0 %v596
        %v826 = vpop.f32.mrb[0].mxu0
        %v827 = vadd.f32 0.0, %v826
        %v828 = vpop.f32.mrb[0].mxu0
        %v829 = vpop.f32.mrb[0].mxu0
        %v830 = vadd.f32 0.0, %v829
        %v831 = vpop.f32.mrb[0].mxu0
        %832 = vmatprep.mubr.bf16.mxu0 %v599
        %833 = vmatmul.mubr.bf16.gmra.mrb[0].mxu0 %v598
        %v834 = vpop.f32.mrb[0].mxu0
        %v835 = vadd.f32 0.0, %v834
        %v836 = vpop.f32.mrb[0].mxu0
        %v837 = vpop.f32.mrb[0].mxu0
        %v838 = vadd.f32 0.0, %v837
        %v839 = vpop.f32.mrb[0].mxu0
        %840 = vmatprep.mubr.bf16.mxu0 %v601
        %841 = vmatmul.mubr.bf16.gmra.mrb[0].mxu0 %v600
        %v842 = vpop.f32.mrb[0].mxu0
        %v843 = vadd.f32 0.0, %v842
        %v844 = vpop.f32.mrb[0].mxu0
        %v845 = vpop.f32.mrb[0].mxu0
        %v846 = vadd.f32 0.0, %v845
        %v847 = vpop.f32.mrb[0].mxu0
        %848 = vmatprep.mubr.bf16.mxu0 %v603
        %849 = vmatmul.mubr.bf16.gmra.mrb[0].mxu0 %v602
        %v850 = vpop.f32.mrb[0].mxu0
        %v851 = vadd.f32 0.0, %v850
        %v852 = vpop.f32.mrb[0].mxu0
        %v853 = vpop.f32.mrb[0].mxu0
        %v854 = vadd.f32 0.0, %v853
        %v855 = vpop.f32.mrb[0].mxu0
        %856 = vmatprep.mubr.bf16.mxu0 %v605
        %857 = vmatmul.mubr.bf16.gmra.mrb[0].mxu0 %v604
        %v858 = vpop.f32.mrb[0].mxu0
        %v859 = vadd.f32 0.0, %v858
        %v860 = vpop.f32.mrb[0].mxu0
        %v861 = vpop.f32.mrb[0].mxu0
        %v862 = vadd.f32 0.0, %v861
        %v863 = vpop.f32.mrb[0].mxu0
        %864 = vmatprep.mubr.bf16.mxu0 %v607
        %865 = vmatmul.mubr.bf16.gmra.mrb[0].mxu0 %v606
        %v866 = vpop.f32.mrb[0].mxu0
        %v867 = vadd.f32 0.0, %v866
        %v868 = vpop.f32.mrb[0].mxu0
        %v869 = vpop.f32.mrb[0].mxu0
        %v870 = vadd.f32 0.0, %v869
        %v871 = vpop.f32.mrb[0].mxu0
        %872 = vmatprep.mubr.bf16.mxu0 %v609
        %873 = vmatmul.mubr.bf16.gmra.mrb[0].mxu0 %v608
        %v874 = vpop.f32.mrb[0].mxu0
        %v875 = vadd.f32 0.0, %v874
        %v876 = vpop.f32.mrb[0].mxu0
        %v877 = vpop.f32.mrb[0].mxu0
        %v878 = vadd.f32 0.0, %v877
        %v879 = vpop.f32.mrb[0].mxu0
        %880 = vmatprep.mubr.bf16.mxu0 %v611
        %881 = vmatmul.mubr.bf16.gmra.mrb[0].mxu0 %v610
        %v882 = vpop.f32.mrb[0].mxu0
        %v883 = vadd.f32 0.0, %v882
        %v884 = vpop.f32.mrb[0].mxu0
        %v885 = vpop.f32.mrb[0].mxu0
        %v886 = vadd.f32 0.0, %v885
        %v887 = vpop.f32.mrb[0].mxu0
        %888 = vmatprep.mubr.bf16.mxu0 %v613
        %889 = vmatmul.mubr.bf16.gmra.mrb[0].mxu0 %v612
        %v890 = vpop.f32.mrb[0].mxu0
        %v891 = vadd.f32 0.0, %v890
        %v892 = vpop.f32.mrb[0].mxu0
        %v893 = vpop.f32.mrb[0].mxu0
        %v894 = vadd.f32 0.0, %v893
        %v895 = vpop.f32.mrb[0].mxu0
        %896 = vmatprep.mubr.bf16.mxu0 %v615
        %897 = vmatmul.mubr.bf16.gmra.mrb[0].mxu0 %v614
        %v898 = vpop.f32.mrb[0].mxu0
        %v899 = vadd.f32 0.0, %v898
        %v900 = vpop.f32.mrb[0].mxu0
        %v901 = vpop.f32.mrb[0].mxu0
        %v902 = vadd.f32 0.0, %v901
        %v903 = vpop.f32.mrb[0].mxu0
        %904 = vdwg.mxu0
        %v905 = vadd.f32 %v424, %v779
        %v906 = vadd.f32 %v425, %v782
        %v907 = vadd.f32 %v426, %v787
        %v908 = vadd.f32 %v427, %v790
        %v909 = vadd.f32 %v428, %v795
        %v910 = vadd.f32 %v429, %v798
        %v911 = vadd.f32 %v430, %v803
        %v912 = vadd.f32 %v431, %v806
        %v913 = vadd.f32 %v432, %v811
        %v914 = vadd.f32 %v433, %v814
        %v915 = vadd.f32 %v434, %v819
        %v916 = vadd.f32 %v435, %v822
        %v917 = vadd.f32 %v436, %v827
        %v918 = vadd.f32 %v437, %v830
        %v919 = vadd.f32 %v438, %v835
        %v920 = vadd.f32 %v439, %v838
        %v921 = vadd.f32 %v440, %v843
        %v922 = vadd.f32 %v441, %v846
        %v923 = vadd.f32 %v442, %v851
        %v924 = vadd.f32 %v443, %v854
        %v925 = vadd.f32 %v444, %v859
        %v926 = vadd.f32 %v445, %v862
        %v927 = vadd.f32 %v446, %v867
        %v928 = vadd.f32 %v447, %v870
        %v929 = vadd.f32 %v448, %v875
        %v930 = vadd.f32 %v449, %v878
        %v931 = vadd.f32 %v450, %v883
        %v932 = vadd.f32 %v451, %v886
        %v933 = vadd.f32 %v452, %v891
        %v934 = vadd.f32 %v453, %v894
        %v935 = vadd.f32 %v454, %v899
        %v936 = vadd.f32 %v455, %v902
        %937 = vst [vmem:[#allocation2] sm:$0xff] %v905
        %938 = vst [vmem:[#allocation2 + $0x8] sm:$0xff] %v906
        %939 = vst [vmem:[#allocation2 + $0x10] sm:$0xff] %v907
        %940 = vst [vmem:[#allocation2 + $0x18] sm:$0xff] %v908
        %941 = vst [vmem:[#allocation2 + $0x20] sm:$0xff] %v909
        %942 = vst [vmem:[#allocation2 + $0x28] sm:$0xff] %v910
        %943 = vst [vmem:[#allocation2 + $0x30] sm:$0xff] %v911
        %944 = vst [vmem:[#allocation2 + $0x38] sm:$0xff] %v912
        %945 = vst [vmem:[#allocation2 + $0x40] sm:$0xff] %v913
        %946 = vst [vmem:[#allocation2 + $0x48] sm:$0xff] %v914
        %947 = vst [vmem:[#allocation2 + $0x50] sm:$0xff] %v915
        %948 = vst [vmem:[#allocation2 + $0x58] sm:$0xff] %v916
        %949 = vst [vmem:[#allocation2 + $0x60] sm:$0xff] %v917
        %950 = vst [vmem:[#allocation2 + $0x68] sm:$0xff] %v918
        %951 = vst [vmem:[#allocation2 + $0x70] sm:$0xff] %v919
        %952 = vst [vmem:[#allocation2 + $0x78] sm:$0xff] %v920
        %953 = vst [vmem:[#allocation2 + $0x80] sm:$0xff] %v921
        %954 = vst [vmem:[#allocation2 + $0x88] sm:$0xff] %v922
        %955 = vst [vmem:[#allocation2 + $0x90] sm:$0xff] %v923
        %956 = vst [vmem:[#allocation2 + $0x98] sm:$0xff] %v924
        %957 = vst [vmem:[#allocation2 + $0xa0] sm:$0xff] %v925
        %958 = vst [vmem:[#allocation2 + $0xa8] sm:$0xff] %v926
        %959 = vst [vmem:[#allocation2 + $0xb0] sm:$0xff] %v927
        %960 = vst [vmem:[#allocation2 + $0xb8] sm:$0xff] %v928
        %961 = vst [vmem:[#allocation2 + $0xc0] sm:$0xff] %v929
        %962 = vst [vmem:[#allocation2 + $0xc8] sm:$0xff] %v930
        %963 = vst [vmem:[#allocation2 + $0xd0] sm:$0xff] %v931
        %964 = vst [vmem:[#allocation2 + $0xd8] sm:$0xff] %v932
        %965 = vst [vmem:[#allocation2 + $0xe0] sm:$0xff] %v933
        %966 = vst [vmem:[#allocation2 + $0xe8] sm:$0xff] %v934
        %967 = vst [vmem:[#allocation2 + $0xf0] sm:$0xff] %v935
        %968 = vst [vmem:[#allocation2 + $0xf8] sm:$0xff] %v936
        %p969 = scmp.eq.s32.totalorder %s19, 1
        // Predicated region
        $region75: #{gcn_forward.3} parent=65 // pred_check
          %p970 = pneg %p969
        $region76: #{gcn_forward.3} parent=65 // pred_check_branch
          %972 = sbr.rel (%p970) target = $region78
        $region77: #{gcn_forward.3} parent=65 // pred_region
          %v973 = vld [vmem:[#allocation2] sm:$0xff]
          %v974 = vld [vmem:[#allocation2 + $0x8] sm:$0xff]
          %v975 = vld [vmem:[#allocation2 + $0x10] sm:$0xff]
          %v976 = vld [vmem:[#allocation2 + $0x18] sm:$0xff]
          %v977 = vld [vmem:[#allocation2 + $0x20] sm:$0xff]
          %v978 = vld [vmem:[#allocation2 + $0x28] sm:$0xff]
          %v979 = vld [vmem:[#allocation2 + $0x30] sm:$0xff]
          %v980 = vld [vmem:[#allocation2 + $0x38] sm:$0xff]
          %v981 = vld [vmem:[#allocation2 + $0x40] sm:$0xff]
          %v982 = vld [vmem:[#allocation2 + $0x48] sm:$0xff]
          %v983 = vld [vmem:[#allocation2 + $0x50] sm:$0xff]
          %v984 = vld [vmem:[#allocation2 + $0x58] sm:$0xff]
          %v985 = vld [vmem:[#allocation2 + $0x60] sm:$0xff]
          %v986 = vld [vmem:[#allocation2 + $0x68] sm:$0xff]
          %v987 = vld [vmem:[#allocation2 + $0x70] sm:$0xff]
          %v988 = vld [vmem:[#allocation2 + $0x78] sm:$0xff]
          %v989 = vld [vmem:[#allocation2 + $0x80] sm:$0xff]
          %v990 = vld [vmem:[#allocation2 + $0x88] sm:$0xff]
          %v991 = vld [vmem:[#allocation2 + $0x90] sm:$0xff]
          %v992 = vld [vmem:[#allocation2 + $0x98] sm:$0xff]
          %v993 = vld [vmem:[#allocation2 + $0xa0] sm:$0xff]
          %v994 = vld [vmem:[#allocation2 + $0xa8] sm:$0xff]
          %v995 = vld [vmem:[#allocation2 + $0xb0] sm:$0xff]
          %v996 = vld [vmem:[#allocation2 + $0xb8] sm:$0xff]
          %v997 = vld [vmem:[#allocation2 + $0xc0] sm:$0xff]
          %v998 = vld [vmem:[#allocation2 + $0xc8] sm:$0xff]
          %v999 = vld [vmem:[#allocation2 + $0xd0] sm:$0xff]
          %v1000 = vld [vmem:[#allocation2 + $0xd8] sm:$0xff]
          %v1001 = vld [vmem:[#allocation2 + $0xe0] sm:$0xff]
          %v1002 = vld [vmem:[#allocation2 + $0xe8] sm:$0xff]
          %v1003 = vld [vmem:[#allocation2 + $0xf0] sm:$0xff]
          %v1004 = vld [vmem:[#allocation2 + $0xf8] sm:$0xff]
          %v1005 = vld [vmem:[%s2] sm:$0x1]
          %v1007 = vlaneseq
          %v1008 = vshrl.u32 %v1007, 7
          %v1009 = vsub.s32 0, %v1008
          %v1010 = vrot.slane %v1005, %v1009
          %v1012 = vadd.f32 %v973, %v1010
          %v1013 = vadd.f32 %v974, %v1010
          %v1014 = vadd.f32 %v975, %v1010
          %v1015 = vadd.f32 %v976, %v1010
          %v1016 = vadd.f32 %v977, %v1010
          %v1017 = vadd.f32 %v978, %v1010
          %v1018 = vadd.f32 %v979, %v1010
          %v1019 = vadd.f32 %v980, %v1010
          %v1020 = vadd.f32 %v981, %v1010
          %v1021 = vadd.f32 %v982, %v1010
          %v1022 = vadd.f32 %v983, %v1010
          %v1023 = vadd.f32 %v984, %v1010
          %v1024 = vadd.f32 %v985, %v1010
          %v1025 = vadd.f32 %v986, %v1010
          %v1026 = vadd.f32 %v987, %v1010
          %v1027 = vadd.f32 %v988, %v1010
          %v1028 = vadd.f32 %v989, %v1010
          %v1029 = vadd.f32 %v990, %v1010
          %v1030 = vadd.f32 %v991, %v1010
          %v1031 = vadd.f32 %v992, %v1010
          %v1032 = vadd.f32 %v993, %v1010
          %v1033 = vadd.f32 %v994, %v1010
          %v1034 = vadd.f32 %v995, %v1010
          %v1035 = vadd.f32 %v996, %v1010
          %v1036 = vadd.f32 %v997, %v1010
          %v1037 = vadd.f32 %v998, %v1010
          %v1038 = vadd.f32 %v999, %v1010
          %v1039 = vadd.f32 %v1000, %v1010
          %v1040 = vadd.f32 %v1001, %v1010
          %v1041 = vadd.f32 %v1002, %v1010
          %v1042 = vadd.f32 %v1003, %v1010
          %v1043 = vadd.f32 %v1004, %v1010
          %v1044 = vlaneseq
          %v1045 = vand.u32 %v1044, 127
          %vm1046 = vcmp.lt.s32.totalorder %v1045, 4
          %v1047 = vsel %vm1046, %v1012, -inf
          %v1048 = vsel %vm1046, %v1013, -inf
          %v1049 = vsel %vm1046, %v1014, -inf
          %v1050 = vsel %vm1046, %v1015, -inf
          %v1051 = vsel %vm1046, %v1016, -inf
          %v1052 = vsel %vm1046, %v1017, -inf
          %v1053 = vsel %vm1046, %v1018, -inf
          %v1054 = vsel %vm1046, %v1019, -inf
          %v1055 = vsel %vm1046, %v1020, -inf
          %v1056 = vsel %vm1046, %v1021, -inf
          %v1057 = vsel %vm1046, %v1022, -inf
          %v1058 = vsel %vm1046, %v1023, -inf
          %v1059 = vsel %vm1046, %v1024, -inf
          %v1060 = vsel %vm1046, %v1025, -inf
          %v1061 = vsel %vm1046, %v1026, -inf
          %v1062 = vsel %vm1046, %v1027, -inf
          %v1063 = vsel %vm1046, %v1028, -inf
          %v1064 = vsel %vm1046, %v1029, -inf
          %v1065 = vsel %vm1046, %v1030, -inf
          %v1066 = vsel %vm1046, %v1031, -inf
          %v1067 = vsel %vm1046, %v1032, -inf
          %v1068 = vsel %vm1046, %v1033, -inf
          %v1069 = vsel %vm1046, %v1034, -inf
          %v1070 = vsel %vm1046, %v1035, -inf
          %v1071 = vsel %vm1046, %v1036, -inf
          %v1072 = vsel %vm1046, %v1037, -inf
          %v1073 = vsel %vm1046, %v1038, -inf
          %v1074 = vsel %vm1046, %v1039, -inf
          %v1075 = vsel %vm1046, %v1040, -inf
          %v1076 = vsel %vm1046, %v1041, -inf
          %v1077 = vsel %vm1046, %v1042, -inf
          %v1078 = vsel %vm1046, %v1043, -inf
          %1079 = vmax.xlane.f32.xlu0 %v1047
          %v1080 = vpop.xlane.xlu0 %1079
          %1081 = vmax.xlane.f32.xlu0 %v1048
          %v1082 = vpop.xlane.xlu0 %1081
          %1083 = vmax.xlane.f32.xlu0 %v1049
          %v1084 = vpop.xlane.xlu0 %1083
          %1085 = vmax.xlane.f32.xlu0 %v1050
          %v1086 = vpop.xlane.xlu0 %1085
          %1087 = vmax.xlane.f32.xlu0 %v1051
          %v1088 = vpop.xlane.xlu0 %1087
          %1089 = vmax.xlane.f32.xlu0 %v1052
          %v1090 = vpop.xlane.xlu0 %1089
          %1091 = vmax.xlane.f32.xlu0 %v1053
          %v1092 = vpop.xlane.xlu0 %1091
          %1093 = vmax.xlane.f32.xlu0 %v1054
          %v1094 = vpop.xlane.xlu0 %1093
          %1095 = vmax.xlane.f32.xlu0 %v1055
          %v1096 = vpop.xlane.xlu0 %1095
          %1097 = vmax.xlane.f32.xlu0 %v1056
          %v1098 = vpop.xlane.xlu0 %1097
          %1099 = vmax.xlane.f32.xlu0 %v1057
          %v1100 = vpop.xlane.xlu0 %1099
          %1101 = vmax.xlane.f32.xlu0 %v1058
          %v1102 = vpop.xlane.xlu0 %1101
          %1103 = vmax.xlane.f32.xlu0 %v1059
          %v1104 = vpop.xlane.xlu0 %1103
          %1105 = vmax.xlane.f32.xlu0 %v1060
          %v1106 = vpop.xlane.xlu0 %1105
          %1107 = vmax.xlane.f32.xlu0 %v1061
          %v1108 = vpop.xlane.xlu0 %1107
          %1109 = vmax.xlane.f32.xlu0 %v1062
          %v1110 = vpop.xlane.xlu0 %1109
          %1111 = vmax.xlane.f32.xlu0 %v1063
          %v1112 = vpop.xlane.xlu0 %1111
          %1113 = vmax.xlane.f32.xlu0 %v1064
          %v1114 = vpop.xlane.xlu0 %1113
          %1115 = vmax.xlane.f32.xlu0 %v1065
          %v1116 = vpop.xlane.xlu0 %1115
          %1117 = vmax.xlane.f32.xlu0 %v1066
          %v1118 = vpop.xlane.xlu0 %1117
          %1119 = vmax.xlane.f32.xlu0 %v1067
          %v1120 = vpop.xlane.xlu0 %1119
          %1121 = vmax.xlane.f32.xlu0 %v1068
          %v1122 = vpop.xlane.xlu0 %1121
          %1123 = vmax.xlane.f32.xlu0 %v1069
          %v1124 = vpop.xlane.xlu0 %1123
          %1125 = vmax.xlane.f32.xlu0 %v1070
          %v1126 = vpop.xlane.xlu0 %1125
          %1127 = vmax.xlane.f32.xlu0 %v1071
          %v1128 = vpop.xlane.xlu0 %1127
          %1129 = vmax.xlane.f32.xlu0 %v1072
          %v1130 = vpop.xlane.xlu0 %1129
          %1131 = vmax.xlane.f32.xlu0 %v1073
          %v1132 = vpop.xlane.xlu0 %1131
          %1133 = vmax.xlane.f32.xlu0 %v1074
          %v1134 = vpop.xlane.xlu0 %1133
          %1135 = vmax.xlane.f32.xlu0 %v1075
          %v1136 = vpop.xlane.xlu0 %1135
          %1137 = vmax.xlane.f32.xlu0 %v1076
          %v1138 = vpop.xlane.xlu0 %1137
          %1139 = vmax.xlane.f32.xlu0 %v1077
          %v1140 = vpop.xlane.xlu0 %1139
          %1141 = vmax.xlane.f32.xlu0 %v1078
          %v1142 = vpop.xlane.xlu0 %1141
          %v1143 = vsub.f32 %v1047, %v1080
          %v1144 = vsub.f32 %v1048, %v1082
          %v1145 = vsub.f32 %v1049, %v1084
          %v1146 = vsub.f32 %v1050, %v1086
          %v1147 = vsub.f32 %v1051, %v1088
          %v1148 = vsub.f32 %v1052, %v1090
          %v1149 = vsub.f32 %v1053, %v1092
          %v1150 = vsub.f32 %v1054, %v1094
          %v1151 = vsub.f32 %v1055, %v1096
          %v1152 = vsub.f32 %v1056, %v1098
          %v1153 = vsub.f32 %v1057, %v1100
          %v1154 = vsub.f32 %v1058, %v1102
          %v1155 = vsub.f32 %v1059, %v1104
          %v1156 = vsub.f32 %v1060, %v1106
          %v1157 = vsub.f32 %v1061, %v1108
          %v1158 = vsub.f32 %v1062, %v1110
          %v1159 = vsub.f32 %v1063, %v1112
          %v1160 = vsub.f32 %v1064, %v1114
          %v1161 = vsub.f32 %v1065, %v1116
          %v1162 = vsub.f32 %v1066, %v1118
          %v1163 = vsub.f32 %v1067, %v1120
          %v1164 = vsub.f32 %v1068, %v1122
          %v1165 = vsub.f32 %v1069, %v1124
          %v1166 = vsub.f32 %v1070, %v1126
          %v1167 = vsub.f32 %v1071, %v1128
          %v1168 = vsub.f32 %v1072, %v1130
          %v1169 = vsub.f32 %v1073, %v1132
          %v1170 = vsub.f32 %v1074, %v1134
          %v1171 = vsub.f32 %v1075, %v1136
          %v1172 = vsub.f32 %v1076, %v1138
          %v1173 = vsub.f32 %v1077, %v1140
          %v1174 = vsub.f32 %v1078, %v1142
          %v1175 = vmul.f32 %v1143, 1.442695
          %v1176 = vpow.pop %v1175
          %v1177 = vmul.f32 %v1144, 1.442695
          %v1178 = vpow.pop %v1177
          %v1179 = vmul.f32 %v1145, 1.442695
          %v1180 = vpow.pop %v1179
          %v1181 = vmul.f32 %v1146, 1.442695
          %v1182 = vpow.pop %v1181
          %v1183 = vmul.f32 %v1147, 1.442695
          %v1184 = vpow.pop %v1183
          %v1185 = vmul.f32 %v1148, 1.442695
          %v1186 = vpow.pop %v1185
          %v1187 = vmul.f32 %v1149, 1.442695
          %v1188 = vpow.pop %v1187
          %v1189 = vmul.f32 %v1150, 1.442695
          %v1190 = vpow.pop %v1189
          %v1191 = vmul.f32 %v1151, 1.442695
          %v1192 = vpow.pop %v1191
          %v1193 = vmul.f32 %v1152, 1.442695
          %v1194 = vpow.pop %v1193
          %v1195 = vmul.f32 %v1153, 1.442695
          %v1196 = vpow.pop %v1195
          %v1197 = vmul.f32 %v1154, 1.442695
          %v1198 = vpow.pop %v1197
          %v1199 = vmul.f32 %v1155, 1.442695
          %v1200 = vpow.pop %v1199
          %v1201 = vmul.f32 %v1156, 1.442695
          %v1202 = vpow.pop %v1201
          %v1203 = vmul.f32 %v1157, 1.442695
          %v1204 = vpow.pop %v1203
          %v1205 = vmul.f32 %v1158, 1.442695
          %v1206 = vpow.pop %v1205
          %v1207 = vmul.f32 %v1159, 1.442695
          %v1208 = vpow.pop %v1207
          %v1209 = vmul.f32 %v1160, 1.442695
          %v1210 = vpow.pop %v1209
          %v1211 = vmul.f32 %v1161, 1.442695
          %v1212 = vpow.pop %v1211
          %v1213 = vmul.f32 %v1162, 1.442695
          %v1214 = vpow.pop %v1213
          %v1215 = vmul.f32 %v1163, 1.442695
          %v1216 = vpow.pop %v1215
          %v1217 = vmul.f32 %v1164, 1.442695
          %v1218 = vpow.pop %v1217
          %v1219 = vmul.f32 %v1165, 1.442695
          %v1220 = vpow.pop %v1219
          %v1221 = vmul.f32 %v1166, 1.442695
          %v1222 = vpow.pop %v1221
          %v1223 = vmul.f32 %v1167, 1.442695
          %v1224 = vpow.pop %v1223
          %v1225 = vmul.f32 %v1168, 1.442695
          %v1226 = vpow.pop %v1225
          %v1227 = vmul.f32 %v1169, 1.442695
          %v1228 = vpow.pop %v1227
          %v1229 = vmul.f32 %v1170, 1.442695
          %v1230 = vpow.pop %v1229
          %v1231 = vmul.f32 %v1171, 1.442695
          %v1232 = vpow.pop %v1231
          %v1233 = vmul.f32 %v1172, 1.442695
          %v1234 = vpow.pop %v1233
          %v1235 = vmul.f32 %v1173, 1.442695
          %v1236 = vpow.pop %v1235
          %v1237 = vmul.f32 %v1174, 1.442695
          %v1238 = vpow.pop %v1237
          %1239 = vadd.xlane.f32.xlu0 %v1176
          %v1240 = vpop.xlane.xlu0 %1239
          %1241 = vadd.xlane.f32.xlu0 %v1178
          %v1242 = vpop.xlane.xlu0 %1241
          %1243 = vadd.xlane.f32.xlu0 %v1180
          %v1244 = vpop.xlane.xlu0 %1243
          %1245 = vadd.xlane.f32.xlu0 %v1182
          %v1246 = vpop.xlane.xlu0 %1245
          %1247 = vadd.xlane.f32.xlu0 %v1184
          %v1248 = vpop.xlane.xlu0 %1247
          %1249 = vadd.xlane.f32.xlu0 %v1186
          %v1250 = vpop.xlane.xlu0 %1249
          %1251 = vadd.xlane.f32.xlu0 %v1188
          %v1252 = vpop.xlane.xlu0 %1251
          %1253 = vadd.xlane.f32.xlu0 %v1190
          %v1254 = vpop.xlane.xlu0 %1253
          %1255 = vadd.xlane.f32.xlu0 %v1192
          %v1256 = vpop.xlane.xlu0 %1255
          %1257 = vadd.xlane.f32.xlu0 %v1194
          %v1258 = vpop.xlane.xlu0 %1257
          %1259 = vadd.xlane.f32.xlu0 %v1196
          %v1260 = vpop.xlane.xlu0 %1259
          %1261 = vadd.xlane.f32.xlu0 %v1198
          %v1262 = vpop.xlane.xlu0 %1261
          %1263 = vadd.xlane.f32.xlu0 %v1200
          %v1264 = vpop.xlane.xlu0 %1263
          %1265 = vadd.xlane.f32.xlu0 %v1202
          %v1266 = vpop.xlane.xlu0 %1265
          %1267 = vadd.xlane.f32.xlu0 %v1204
          %v1268 = vpop.xlane.xlu0 %1267
          %1269 = vadd.xlane.f32.xlu0 %v1206
          %v1270 = vpop.xlane.xlu0 %1269
          %1271 = vadd.xlane.f32.xlu0 %v1208
          %v1272 = vpop.xlane.xlu0 %1271
          %1273 = vadd.xlane.f32.xlu0 %v1210
          %v1274 = vpop.xlane.xlu0 %1273
          %1275 = vadd.xlane.f32.xlu0 %v1212
          %v1276 = vpop.xlane.xlu0 %1275
          %1277 = vadd.xlane.f32.xlu0 %v1214
          %v1278 = vpop.xlane.xlu0 %1277
          %1279 = vadd.xlane.f32.xlu0 %v1216
          %v1280 = vpop.xlane.xlu0 %1279
          %1281 = vadd.xlane.f32.xlu0 %v1218
          %v1282 = vpop.xlane.xlu0 %1281
          %1283 = vadd.xlane.f32.xlu0 %v1220
          %v1284 = vpop.xlane.xlu0 %1283
          %1285 = vadd.xlane.f32.xlu0 %v1222
          %v1286 = vpop.xlane.xlu0 %1285
          %1287 = vadd.xlane.f32.xlu0 %v1224
          %v1288 = vpop.xlane.xlu0 %1287
          %1289 = vadd.xlane.f32.xlu0 %v1226
          %v1290 = vpop.xlane.xlu0 %1289
          %1291 = vadd.xlane.f32.xlu0 %v1228
          %v1292 = vpop.xlane.xlu0 %1291
          %1293 = vadd.xlane.f32.xlu0 %v1230
          %v1294 = vpop.xlane.xlu0 %1293
          %1295 = vadd.xlane.f32.xlu0 %v1232
          %v1296 = vpop.xlane.xlu0 %1295
          %1297 = vadd.xlane.f32.xlu0 %v1234
          %v1298 = vpop.xlane.xlu0 %1297
          %1299 = vadd.xlane.f32.xlu0 %v1236
          %v1300 = vpop.xlane.xlu0 %1299
          %1301 = vadd.xlane.f32.xlu0 %v1238
          %v1302 = vpop.xlane.xlu0 %1301
          %v1303 = vlog2.pop %v1240
          %v1304 = vmul.f32 %v1303, 0.6931472
          %v1305 = vlog2.pop %v1242
          %v1306 = vmul.f32 %v1305, 0.6931472
          %v1307 = vlog2.pop %v1244
          %v1308 = vmul.f32 %v1307, 0.6931472
          %v1309 = vlog2.pop %v1246
          %v1310 = vmul.f32 %v1309, 0.6931472
          %v1311 = vlog2.pop %v1248
          %v1312 = vmul.f32 %v1311, 0.6931472
          %v1313 = vlog2.pop %v1250
          %v1314 = vmul.f32 %v1313, 0.6931472
          %v1315 = vlog2.pop %v1252
          %v1316 = vmul.f32 %v1315, 0.6931472
          %v1317 = vlog2.pop %v1254
          %v1318 = vmul.f32 %v1317, 0.6931472
          %v1319 = vlog2.pop %v1256
          %v1320 = vmul.f32 %v1319, 0.6931472
          %v1321 = vlog2.pop %v1258
          %v1322 = vmul.f32 %v1321, 0.6931472
          %v1323 = vlog2.pop %v1260
          %v1324 = vmul.f32 %v1323, 0.6931472
          %v1325 = vlog2.pop %v1262
          %v1326 = vmul.f32 %v1325, 0.6931472
          %v1327 = vlog2.pop %v1264
          %v1328 = vmul.f32 %v1327, 0.6931472
          %v1329 = vlog2.pop %v1266
          %v1330 = vmul.f32 %v1329, 0.6931472
          %v1331 = vlog2.pop %v1268
          %v1332 = vmul.f32 %v1331, 0.6931472
          %v1333 = vlog2.pop %v1270
          %v1334 = vmul.f32 %v1333, 0.6931472
          %v1335 = vlog2.pop %v1272
          %v1336 = vmul.f32 %v1335, 0.6931472
          %v1337 = vlog2.pop %v1274
          %v1338 = vmul.f32 %v1337, 0.6931472
          %v1339 = vlog2.pop %v1276
          %v1340 = vmul.f32 %v1339, 0.6931472
          %v1341 = vlog2.pop %v1278
          %v1342 = vmul.f32 %v1341, 0.6931472
          %v1343 = vlog2.pop %v1280
          %v1344 = vmul.f32 %v1343, 0.6931472
          %v1345 = vlog2.pop %v1282
          %v1346 = vmul.f32 %v1345, 0.6931472
          %v1347 = vlog2.pop %v1284
          %v1348 = vmul.f32 %v1347, 0.6931472
          %v1349 = vlog2.pop %v1286
          %v1350 = vmul.f32 %v1349, 0.6931472
          %v1351 = vlog2.pop %v1288
          %v1352 = vmul.f32 %v1351, 0.6931472
          %v1353 = vlog2.pop %v1290
          %v1354 = vmul.f32 %v1353, 0.6931472
          %v1355 = vlog2.pop %v1292
          %v1356 = vmul.f32 %v1355, 0.6931472
          %v1357 = vlog2.pop %v1294
          %v1358 = vmul.f32 %v1357, 0.6931472
          %v1359 = vlog2.pop %v1296
          %v1360 = vmul.f32 %v1359, 0.6931472
          %v1361 = vlog2.pop %v1298
          %v1362 = vmul.f32 %v1361, 0.6931472
          %v1363 = vlog2.pop %v1300
          %v1364 = vmul.f32 %v1363, 0.6931472
          %v1365 = vlog2.pop %v1302
          %v1366 = vmul.f32 %v1365, 0.6931472
          %v1367 = vsub.f32 %v1143, %v1304
          %v1368 = vsub.f32 %v1144, %v1306
          %v1369 = vsub.f32 %v1145, %v1308
          %v1370 = vsub.f32 %v1146, %v1310
          %v1371 = vsub.f32 %v1147, %v1312
          %v1372 = vsub.f32 %v1148, %v1314
          %v1373 = vsub.f32 %v1149, %v1316
          %v1374 = vsub.f32 %v1150, %v1318
          %v1375 = vsub.f32 %v1151, %v1320
          %v1376 = vsub.f32 %v1152, %v1322
          %v1377 = vsub.f32 %v1153, %v1324
          %v1378 = vsub.f32 %v1154, %v1326
          %v1379 = vsub.f32 %v1155, %v1328
          %v1380 = vsub.f32 %v1156, %v1330
          %v1381 = vsub.f32 %v1157, %v1332
          %v1382 = vsub.f32 %v1158, %v1334
          %v1383 = vsub.f32 %v1159, %v1336
          %v1384 = vsub.f32 %v1160, %v1338
          %v1385 = vsub.f32 %v1161, %v1340
          %v1386 = vsub.f32 %v1162, %v1342
          %v1387 = vsub.f32 %v1163, %v1344
          %v1388 = vsub.f32 %v1164, %v1346
          %v1389 = vsub.f32 %v1165, %v1348
          %v1390 = vsub.f32 %v1166, %v1350
          %v1391 = vsub.f32 %v1167, %v1352
          %v1392 = vsub.f32 %v1168, %v1354
          %v1393 = vsub.f32 %v1169, %v1356
          %v1394 = vsub.f32 %v1170, %v1358
          %v1395 = vsub.f32 %v1171, %v1360
          %v1396 = vsub.f32 %v1172, %v1362
          %v1397 = vsub.f32 %v1173, %v1364
          %v1398 = vsub.f32 %v1174, %v1366
          %1399 = vst [vmem:[%s348] sm:$0xff] %v1367
          %1400 = vst [vmem:[%s348 + $0x8] sm:$0xff] %v1368
          %1401 = vst [vmem:[%s348 + $0x10] sm:$0xff] %v1369
          %1402 = vst [vmem:[%s348 + $0x18] sm:$0xff] %v1370
          %1403 = vst [vmem:[%s348 + $0x20] sm:$0xff] %v1371
          %1404 = vst [vmem:[%s348 + $0x28] sm:$0xff] %v1372
          %1405 = vst [vmem:[%s348 + $0x30] sm:$0xff] %v1373
          %1406 = vst [vmem:[%s348 + $0x38] sm:$0xff] %v1374
          %1407 = vst [vmem:[%s348 + $0x40] sm:$0xff] %v1375
          %1408 = vst [vmem:[%s348 + $0x48] sm:$0xff] %v1376
          %1409 = vst [vmem:[%s348 + $0x50] sm:$0xff] %v1377
          %1410 = vst [vmem:[%s348 + $0x58] sm:$0xff] %v1378
          %1411 = vst [vmem:[%s348 + $0x60] sm:$0xff] %v1379
          %1412 = vst [vmem:[%s348 + $0x68] sm:$0xff] %v1380
          %1413 = vst [vmem:[%s348 + $0x70] sm:$0xff] %v1381
          %1414 = vst [vmem:[%s348 + $0x78] sm:$0xff] %v1382
          %1415 = vst [vmem:[%s348 + $0x80] sm:$0xff] %v1383
          %1416 = vst [vmem:[%s348 + $0x88] sm:$0xff] %v1384
          %1417 = vst [vmem:[%s348 + $0x90] sm:$0xff] %v1385
          %1418 = vst [vmem:[%s348 + $0x98] sm:$0xff] %v1386
          %1419 = vst [vmem:[%s348 + $0xa0] sm:$0xff] %v1387
          %1420 = vst [vmem:[%s348 + $0xa8] sm:$0xff] %v1388
          %1421 = vst [vmem:[%s348 + $0xb0] sm:$0xff] %v1389
          %1422 = vst [vmem:[%s348 + $0xb8] sm:$0xff] %v1390
          %1423 = vst [vmem:[%s348 + $0xc0] sm:$0xff] %v1391
          %1424 = vst [vmem:[%s348 + $0xc8] sm:$0xff] %v1392
          %1425 = vst [vmem:[%s348 + $0xd0] sm:$0xff] %v1393
          %1426 = vst [vmem:[%s348 + $0xd8] sm:$0xff] %v1394
          %1427 = vst [vmem:[%s348 + $0xe0] sm:$0xff] %v1395
          %1428 = vst [vmem:[%s348 + $0xe8] sm:$0xff] %v1396
          %1429 = vst [vmem:[%s348 + $0xf0] sm:$0xff] %v1397
          %1430 = vst [vmem:[%s348 + $0xf8] sm:$0xff] %v1398
        $region78: #{gcn_forward.3} parent=65 // pred_fallthru
          _
        %s1431 = smul.u32 32, %s18
        %p1432 = scmp.lt.s32.totalorder %s1431, 63
        %s1433 = scalar_select %p1432, %s1431, 63
        %s1434 = smul.addr %s1433, 8
        %s1435 = scalar_lea.vmem %s3, %s1434
        // Predicated region
        $region79: #{gcn_forward.3} parent=65 // pred_check
          %p1436 = pneg %p114
        $region80: #{gcn_forward.3} parent=65 // pred_check_branch
          %1438 = sbr.rel (%p1436) target = $region82
        $region81: #{gcn_forward.3} parent=65 // pred_region
          %s1439 = smul.u32 32, %s18
        $region82: #{gcn_forward.3} parent=65 // pred_fallthru
          _
      $region66: #{gcn_forward.3} parent=5 // pred_fallthru
        _
      %p1440 = scmp.le.s32.totalorder 2, %s9
      // Predicated region
      $region83: #{gcn_forward.3} parent=5 // pred_check
        %p1441 = pneg %p1440
      $region84: #{gcn_forward.3} parent=5 // pred_check_branch
        %1443 = sbr.rel (%p1441) target = $region86
      $region85: #{gcn_forward.3} parent=5 // pred_region
        %s1444 = ssub.s32 %s9, 2
        // Predicated region
        $region87: #{gcn_forward.3} parent=85 // pred_check
          %p1445 = pneg %p120
        $region88: #{gcn_forward.3} parent=85 // pred_check_branch
          %1447 = sbr.rel (%p1445) target = $region90
        $region89: #{gcn_forward.3} parent=85 // pred_region
          %s1448 = smul.u32 32, %s20
          %p1449 = scmp.lt.s32.totalorder %s1448, 63
          %s1450 = scalar_select %p1449, %s1448, 63
          %s1451 = smul.addr %s1450, 8
          %s1452 = scalar_lea.vmem %s3, %s1451
        $region90: #{gcn_forward.3} parent=85 // pred_fallthru
          _
      $region86: #{gcn_forward.3} parent=5 // pred_fallthru
        _
    $region6: #{gcn_forward.3} parent=1 // loop_footer
      %s13 = sadd.s32 1, %s9
    $region7: #{gcn_forward.3} parent=1 // loop_footer_branch
      %8 = sbr.rel target = $region3
    $region8: #{gcn_forward.3} parent=1 // loop_exit
      _

// kernel: gcn_forward.2
$region0: #{gcn_forward.2}
  #allocation0 [shape = 'u32[]', space=smem, size = 0x4, offset = 0x4, fixed_abs, tag = 'smem constant byte address 0x4 - core index']
  #allocation1 [shape = 'u32[144,128]{1,0:T(1,128)}', space=vmem, size = 0x12000, scoped, tag = 'internal scratch']
  #allocation2 [shape = 'f32[256,128]{1,0:T(8,128)}', space=vmem, size = 0x20000, scoped, tag = 'scratch operand']
  %s0 = inlined_call_operand.vmem [shape: bf16[512,512], index: 0, kind: input, shape index: {}]
  %s1 = inlined_call_operand.vmem [shape: bf16[512,128], index: 1, kind: input, shape index: {}]
  %s2 = inlined_call_operand.vmem [shape: f32[1,128], index: 2, kind: input, shape index: {}]
  %s3 = inlined_call_operand.vmem [shape: bf16[128,128], index: 3, kind: input, shape index: {}]
  %s4 = inlined_call_operand.vmem [shape: bf16[512,128], index: 4, kind: output, shape index: {}]
  %s5 = sld [smem:[#allocation0]]
  $region95: #{gcn_forward.2} parent=0
    _
  %s7 = ssub.s32 1, %s5
  %s8 = scalar_select 0, %s7, %s5
  $region1: #{gcn_forward.2} parent=0
    #allocation3 [shape = 'u8[262144]{0}', space=vmem, size = 0x40000, scoped, tag = 'input window, operand 0']
    loop: start=0, step=1, limit=6
    $region2: #{gcn_forward.2} parent=1 // loop_pre_header
      _
    $region3: #{gcn_forward.2} parent=1 // loop_header
      %s10 = sphi 0, %s14
      %p11 = scmp.ge.s32.totalorder %s10, 6
      %s17 = sphi 0, %s29
      %s18 = sphi 0, %s25
      %s19 = sphi 0, %s17
      %s20 = sphi 0, %s18
      %s21 = sphi 0, %s19
      %s22 = sphi 0, %s20
      %s34 = sphi 0, %s36
      %s37 = sphi 0, %s34
      %s38 = sphi 0, %s37
      %s54 = sphi 0, %s38
      %s58 = sphi 0, %s58
      %s60 = sphi 0, %s58
      %s61 = sphi 0, %s60
      %s75 = sphi 0, %s61
      %s79 = sphi 0, %s79
      %s81 = sphi 0, %s79
      %s82 = sphi 0, %s81
      %s96 = sphi 0, %s82
      %s100 = sphi 0, %s100
      %s102 = sphi 0, %s100
      %s103 = sphi 0, %s102
      %s117 = sphi 0, %s103
      %s123 = sphi 0, %s125
      %s126 = sphi 0, %s123
      %s127 = sphi 0, %s126
      %s143 = sphi 0, %s127
    $region4: #{gcn_forward.2} parent=1 // loop_header_branch
      %13 = sbr.rel (%p11) target = $region8
    $region5: #{gcn_forward.2} parent=1 // loop_body
      %s15 = ssub.s32 %s10, 1
      %s16 = ssub.s32 %s10, 2
      %s23 = sadd.s32 1, %s18
      %p24 = scmp.ge.s32.totalorder %s23, 2
      %s25 = scalar_select %p24, 0, %s23
      %s26 = sadd.s32 1, %s17
      %s27 = scalar_select %p24, %s26, %s17
      %p28 = scmp.ge.s32.totalorder %s27, 2
      %s29 = scalar_select %p28, 0, %s27
      %s30 = ssub.s32 %s17, %s29
      %s31 = ssub.s32 %s18, %s25
      %s32 = sor.u32 %s30, %s31
      %p33 = scmp.eq.s32.totalorder %s32, 0
      %s35 = sadd.s32 %s34, 1
      %s36 = scalar_select %p33, %s34, %s35
      %p39 = pneg %p33
      %p40 = scmp.eq.s32.totalorder %s10, 3
      %p41 = por %p39, %p40
      %p42 = scmp.ne.s32.totalorder %s34, %s37
      %p43 = scmp.eq.s32.totalorder %s10, 0
      %p44 = por %p42, %p43
      %p45 = scmp.ne.s32.totalorder %s34, %s37
      %p46 = scmp.eq.s32.totalorder %s15, 3
      %p47 = por %p45, %p46
      %p48 = scmp.ne.s32.totalorder %s37, %s38
      %p49 = scmp.eq.s32.totalorder %s15, 0
      %p50 = por %p48, %p49
      %p51 = scmp.ne.s32.totalorder %s37, %s38
      %p52 = scmp.eq.s32.totalorder %s16, 3
      %p53 = por %p51, %p52
      %p55 = scmp.ne.s32.totalorder %s38, %s54
      %p56 = scmp.eq.s32.totalorder %s16, 0
      %p57 = por %p55, %p56
      %s59 = sadd.s32 %s58, 1
      %p62 = scmp.eq.s32.totalorder %s10, 3
      %p63 = scmp.ne.s32.totalorder %s58, %s60
      %p64 = scmp.eq.s32.totalorder %s10, 0
      %p65 = por %p63, %p64
      %p66 = scmp.ne.s32.totalorder %s58, %s60
      %p67 = scmp.eq.s32.totalorder %s15, 3
      %p68 = por %p66, %p67
      %p69 = scmp.ne.s32.totalorder %s60, %s61
      %p70 = scmp.eq.s32.totalorder %s15, 0
      %p71 = por %p69, %p70
      %p72 = scmp.ne.s32.totalorder %s60, %s61
      %p73 = scmp.eq.s32.totalorder %s16, 3
      %p74 = por %p72, %p73
      %p76 = scmp.ne.s32.totalorder %s61, %s75
      %p77 = scmp.eq.s32.totalorder %s16, 0
      %p78 = por %p76, %p77
      %s80 = sadd.s32 %s79, 1
      %p83 = scmp.eq.s32.totalorder %s10, 3
      %p84 = scmp.ne.s32.totalorder %s79, %s81
      %p85 = scmp.eq.s32.totalorder %s10, 0
      %p86 = por %p84, %p85
      %p87 = scmp.ne.s32.totalorder %s79, %s81
      %p88 = scmp.eq.s32.totalorder %s15, 3
      %p89 = por %p87, %p88
      %p90 = scmp.ne.s32.totalorder %s81, %s82
      %p91 = scmp.eq.s32.totalorder %s15, 0
      %p92 = por %p90, %p91
      %p93 = scmp.ne.s32.totalorder %s81, %s82
      %p94 = scmp.eq.s32.totalorder %s16, 3
      %p95 = por %p93, %p94
      %p97 = scmp.ne.s32.totalorder %s82, %s96
      %p98 = scmp.eq.s32.totalorder %s16, 0
      %p99 = por %p97, %p98
      %s101 = sadd.s32 %s100, 1
      %p104 = scmp.eq.s32.totalorder %s10, 3
      %p105 = scmp.ne.s32.totalorder %s100, %s102
      %p106 = scmp.eq.s32.totalorder %s10, 0
      %p107 = por %p105, %p106
      %p108 = scmp.ne.s32.totalorder %s100, %s102
      %p109 = scmp.eq.s32.totalorder %s15, 3
      %p110 = por %p108, %p109
      %p111 = scmp.ne.s32.totalorder %s102, %s103
      %p112 = scmp.eq.s32.totalorder %s15, 0
      %p113 = por %p111, %p112
      %p114 = scmp.ne.s32.totalorder %s102, %s103
      %p115 = scmp.eq.s32.totalorder %s16, 3
      %p116 = por %p114, %p115
      %p118 = scmp.ne.s32.totalorder %s103, %s117
      %p119 = scmp.eq.s32.totalorder %s16, 0
      %p120 = por %p118, %p119
      %s121 = ssub.s32 %s17, %s29
      %p122 = scmp.eq.s32.totalorder %s121, 0
      %s124 = sadd.s32 %s123, 1
      %s125 = scalar_select %p122, %s123, %s124
      %p128 = pneg %p122
      %p129 = scmp.eq.s32.totalorder %s10, 3
      %p130 = por %p128, %p129
      %p131 = scmp.ne.s32.totalorder %s123, %s126
      %p132 = scmp.eq.s32.totalorder %s10, 0
      %p133 = por %p131, %p132
      %p134 = scmp.ne.s32.totalorder %s123, %s126
      %p135 = scmp.eq.s32.totalorder %s15, 3
      %p136 = por %p134, %p135
      %p137 = scmp.ne.s32.totalorder %s126, %s127
      %p138 = scmp.eq.s32.totalorder %s15, 0
      %p139 = por %p137, %p138
      %p140 = scmp.ne.s32.totalorder %s126, %s127
      %p141 = scmp.eq.s32.totalorder %s16, 3
      %p142 = por %p140, %p141
      %p144 = scmp.ne.s32.totalorder %s127, %s143
      %p145 = scmp.eq.s32.totalorder %s16, 0
      %p146 = por %p144, %p145
      %p147 = scmp.le.s32.totalorder 1, %s10
      %p148 = scmp.lt.s32.totalorder %s10, 5
      %p149 = pnand %p147, %p148
      %p150 = pneg %p149
      // Predicated region
      $region9: #{gcn_forward.2} parent=5 // pred_check
        _
      $region10: #{gcn_forward.2} parent=5 // pred_check_branch
        %152 = sbr.rel (%p149) target = $region12
      $region11: #{gcn_forward.2} parent=5 // pred_region
        %s153 = ssub.s32 %s10, 1
        // Predicated region
        $region13: #{gcn_forward.2} parent=11 // pred_check
          %p154 = pneg %p71
        $region14: #{gcn_forward.2} parent=11 // pred_check_branch
          %156 = sbr.rel (%p154) target = $region16
        $region15: #{gcn_forward.2} parent=11 // pred_region
          _
        $region16: #{gcn_forward.2} parent=11 // pred_fallthru
          _
        // Predicated region
        $region17: #{gcn_forward.2} parent=11 // pred_check
          %p157 = pneg %p92
        $region18: #{gcn_forward.2} parent=11 // pred_check_branch
          %159 = sbr.rel (%p157) target = $region20
        $region19: #{gcn_forward.2} parent=11 // pred_region
          _
        $region20: #{gcn_forward.2} parent=11 // pred_fallthru
          _
        // Predicated region
        $region21: #{gcn_forward.2} parent=11 // pred_check
          %p160 = pneg %p113
        $region22: #{gcn_forward.2} parent=11 // pred_check_branch
          %162 = sbr.rel (%p160) target = $region24
        $region23: #{gcn_forward.2} parent=11 // pred_region
          _
        $region24: #{gcn_forward.2} parent=11 // pred_fallthru
          _
      $region12: #{gcn_forward.2} parent=5 // pred_fallthru
        _
      %p163 = scmp.lt.s32.totalorder %s10, 4
      // Predicated region
      $region25: #{gcn_forward.2} parent=5 // pred_check
        %p164 = pneg %p163
      $region26: #{gcn_forward.2} parent=5 // pred_check_branch
        %166 = sbr.rel (%p164) target = $region28
      $region27: #{gcn_forward.2} parent=5 // pred_region
        // Predicated region
        $region29: #{gcn_forward.2} parent=27 // pred_check
          %p167 = pneg %p44
        $region30: #{gcn_forward.2} parent=27 // pred_check_branch
          %169 = sbr.rel (%p167) target = $region32
        $region31: #{gcn_forward.2} parent=27 // pred_region
          %s170 = sand.u32 %s34, 1
          %s171 = sand.u32 %s34, 1
          %s172 = smul.addr %s171, 256
          %s173 = scalar_lea.vmem [#allocation3], %s172
          %s174 = smul.u32 32, %s17
          %s175 = smul.u32 2, %s18
          %s176 = smul.addr %s174, 4
          %s177 = sadd.s32 %s175, %s176
          %s178 = smul.addr %s177, 4
          %s179 = scalar_lea.vmem %s0, %s178
          // Predicated region
          $region33: #{gcn_forward.2} parent=31 // pred_check
            _
          $region34: #{gcn_forward.2} parent=31 // pred_check_branch
            %181 = sbr.rel (0) target = $region36
          $region35: #{gcn_forward.2} parent=31 // pred_region
            // Predicated region
            $region37: #{gcn_forward.2} parent=35 // pred_check
              _
            $region38: #{gcn_forward.2} parent=35 // pred_check_branch
              %183 = sbr.rel (0) target = $region40
            $region39: #{gcn_forward.2} parent=35 // pred_region
              // Predicated region
              $region52: #{gcn_forward.2} parent=39 // pred_check
                _
              $region53: #{gcn_forward.2} parent=39 // pred_check_branch
                %260 = sbr.rel (0) target = $region55
              $region54: #{gcn_forward.2} parent=39 // pred_region
                loop: start=0, step=1, limit=1
                $region56: #{gcn_forward.2} parent=54 // loop_pre_header
                  _
                $region57: #{gcn_forward.2} parent=54 // loop_header
                  %s262 = sphi 0, %s266
                  %p263 = scmp.ge.s32.totalorder %s262, 1
                  %s267 = sphi %s179, %s179
                  %s268 = sphi %s173, %s173
                $region58: #{gcn_forward.2} parent=54 // loop_header_branch
                  %265 = sbr.rel (%p263) target = $region62
                $region59: #{gcn_forward.2} parent=54 // loop_body
                  %v269 = vld [vmem:[%s267] sm:$0xff]
                  %270 = vst [vmem:[%s268] sm:$0xff] %v269
                  %v271 = vld [vmem:[%s267 + $0x10] sm:$0xff]
                  %272 = vst [vmem:[%s268 + $0x8] sm:$0xff] %v271
                  %v273 = vld [vmem:[%s267 + $0x20] sm:$0xff]
                  %274 = vst [vmem:[%s268 + $0x10] sm:$0xff] %v273
                  %v275 = vld [vmem:[%s267 + $0x30] sm:$0xff]
                  %276 = vst [vmem:[%s268 + $0x18] sm:$0xff] %v275
                  %v277 = vld [vmem:[%s267 + $0x40] sm:$0xff]
                  %278 = vst [vmem:[%s268 + $0x20] sm:$0xff] %v277
                  %v279 = vld [vmem:[%s267 + $0x50] sm:$0xff]
                  %280 = vst [vmem:[%s268 + $0x28] sm:$0xff] %v279
                  %v281 = vld [vmem:[%s267 + $0x60] sm:$0xff]
                  %282 = vst [vmem:[%s268 + $0x30] sm:$0xff] %v281
                  %v283 = vld [vmem:[%s267 + $0x70] sm:$0xff]
                  %284 = vst [vmem:[%s268 + $0x38] sm:$0xff] %v283
                  %v285 = vld [vmem:[%s267 + $0x80] sm:$0xff]
                  %286 = vst [vmem:[%s268 + $0x40] sm:$0xff] %v285
                  %v287 = vld [vmem:[%s267 + $0x90] sm:$0xff]
                  %288 = vst [vmem:[%s268 + $0x48] sm:$0xff] %v287
                  %v289 = vld [vmem:[%s267 + $0xa0] sm:$0xff]
                  %290 = vst [vmem:[%s268 + $0x50] sm:$0xff] %v289
                  %v291 = vld [vmem:[%s267 + $0xb0] sm:$0xff]
                  %292 = vst [vmem:[%s268 + $0x58] sm:$0xff] %v291
                  %v293 = vld [vmem:[%s267 + $0xc0] sm:$0xff]
                  %294 = vst [vmem:[%s268 + $0x60] sm:$0xff] %v293
                  %v295 = vld [vmem:[%s267 + $0xd0] sm:$0xff]
                  %296 = vst [vmem:[%s268 + $0x68] sm:$0xff] %v295
                  %v297 = vld [vmem:[%s267 + $0xe0] sm:$0xff]
                  %298 = vst [vmem:[%s268 + $0x70] sm:$0xff] %v297
                  %v299 = vld [vmem:[%s267 + $0xf0] sm:$0xff]
                  %300 = vst [vmem:[%s268 + $0x78] sm:$0xff] %v299
                  %v301 = vld [vmem:[%s267 + $0x100] sm:$0xff]
                  %302 = vst [vmem:[%s268 + $0x80] sm:$0xff] %v301
                  %v303 = vld [vmem:[%s267 + $0x110] sm:$0xff]
                  %304 = vst [vmem:[%s268 + $0x88] sm:$0xff] %v303
                  %v305 = vld [vmem:[%s267 + $0x120] sm:$0xff]
                  %306 = vst [vmem:[%s268 + $0x90] sm:$0xff] %v305
                  %v307 = vld [vmem:[%s267 + $0x130] sm:$0xff]
                  %308 = vst [vmem:[%s268 + $0x98] sm:$0xff] %v307
                  %v309 = vld [vmem:[%s267 + $0x140] sm:$0xff]
                  %310 = vst [vmem:[%s268 + $0xa0] sm:$0xff] %v309
                  %v311 = vld [vmem:[%s267 + $0x150] sm:$0xff]
                  %312 = vst [vmem:[%s268 + $0xa8] sm:$0xff] %v311
                  %v313 = vld [vmem:[%s267 + $0x160] sm:$0xff]
                  %314 = vst [vmem:[%s268 + $0xb0] sm:$0xff] %v313
                  %v315 = vld [vmem:[%s267 + $0x170] sm:$0xff]
                  %316 = vst [vmem:[%s268 + $0xb8] sm:$0xff] %v315
                  %v317 = vld [vmem:[%s267 + $0x180] sm:$0xff]
                  %318 = vst [vmem:[%s268 + $0xc0] sm:$0xff] %v317
                  %v319 = vld [vmem:[%s267 + $0x190] sm:$0xff]
                  %320 = vst [vmem:[%s268 + $0xc8] sm:$0xff] %v319
                  %v321 = vld [vmem:[%s267 + $0x1a0] sm:$0xff]
                  %322 = vst [vmem:[%s268 + $0xd0] sm:$0xff] %v321
                  %v323 = vld [vmem:[%s267 + $0x1b0] sm:$0xff]
                  %324 = vst [vmem:[%s268 + $0xd8] sm:$0xff] %v323
                  %v325 = vld [vmem:[%s267 + $0x1c0] sm:$0xff]
                  %326 = vst [vmem:[%s268 + $0xe0] sm:$0xff] %v325
                  %v327 = vld [vmem:[%s267 + $0x1d0] sm:$0xff]
                  %328 = vst [vmem:[%s268 + $0xe8] sm:$0xff] %v327
                  %v329 = vld [vmem:[%s267 + $0x1e0] sm:$0xff]
                  %330 = vst [vmem:[%s268 + $0xf0] sm:$0xff] %v329
                  %v331 = vld [vmem:[%s267 + $0x1f0] sm:$0xff]
                  %332 = vst [vmem:[%s268 + $0xf8] sm:$0xff] %v331
                $region60: #{gcn_forward.2} parent=54 // loop_footer
                  %s266 = sadd.s32 1, %s262
                $region61: #{gcn_forward.2} parent=54 // loop_footer_branch
                  %261 = sbr.rel target = $region57
                $region62: #{gcn_forward.2} parent=54 // loop_exit
                  _
              $region55: #{gcn_forward.2} parent=39 // pred_fallthru
                _
              // Predicated region
              $region63: #{gcn_forward.2} parent=39 // pred_check
                _
              $region64: #{gcn_forward.2} parent=39 // pred_check_branch
                %334 = sbr.rel target = $region66
              $region65: #{gcn_forward.2} parent=39 // pred_region
                _
              $region66: #{gcn_forward.2} parent=39 // pred_fallthru
                _
            $region40: #{gcn_forward.2} parent=35 // pred_fallthru
              _
            // Predicated region
            $region41: #{gcn_forward.2} parent=35 // pred_check
              _
            $region42: #{gcn_forward.2} parent=35 // pred_check_branch
              %185 = sbr.rel target = $region44
            $region43: #{gcn_forward.2} parent=35 // pred_region
              loop: start=0, step=1, limit=1
              $region45: #{gcn_forward.2} parent=43 // loop_pre_header
                _
              $region46: #{gcn_forward.2} parent=43 // loop_header
                %s188 = sphi 0, %s192
                %p189 = scmp.ge.s32.totalorder %s188, 1
                %s193 = sphi %s179, %s179
                %s194 = sphi %s173, %s173
              $region47: #{gcn_forward.2} parent=43 // loop_header_branch
                %191 = sbr.rel (%p189) target = $region51
              $region48: #{gcn_forward.2} parent=43 // loop_body
                %v195 = vld [vmem:[%s193] sm:$0xff]
                %196 = vst [vmem:[%s194] sm:$0xff] %v195
                %v197 = vld [vmem:[%s193 + $0x10] sm:$0xff]
                %198 = vst [vmem:[%s194 + $0x8] sm:$0xff] %v197
                %v199 = vld [vmem:[%s193 + $0x20] sm:$0xff]
                %200 = vst [vmem:[%s194 + $0x10] sm:$0xff] %v199
                %v201 = vld [vmem:[%s193 + $0x30] sm:$0xff]
                %202 = vst [vmem:[%s194 + $0x18] sm:$0xff] %v201
                %v203 = vld [vmem:[%s193 + $0x40] sm:$0xff]
                %204 = vst [vmem:[%s194 + $0x20] sm:$0xff] %v203
                %v205 = vld [vmem:[%s193 + $0x50] sm:$0xff]
                %206 = vst [vmem:[%s194 + $0x28] sm:$0xff] %v205
                %v207 = vld [vmem:[%s193 + $0x60] sm:$0xff]
                %208 = vst [vmem:[%s194 + $0x30] sm:$0xff] %v207
                %v209 = vld [vmem:[%s193 + $0x70] sm:$0xff]
                %210 = vst [vmem:[%s194 + $0x38] sm:$0xff] %v209
                %v211 = vld [vmem:[%s193 + $0x80] sm:$0xff]
                %212 = vst [vmem:[%s194 + $0x40] sm:$0xff] %v211
                %v213 = vld [vmem:[%s193 + $0x90] sm:$0xff]
                %214 = vst [vmem:[%s194 + $0x48] sm:$0xff] %v213
                %v215 = vld [vmem:[%s193 + $0xa0] sm:$0xff]
                %216 = vst [vmem:[%s194 + $0x50] sm:$0xff] %v215
                %v217 = vld [vmem:[%s193 + $0xb0] sm:$0xff]
                %218 = vst [vmem:[%s194 + $0x58] sm:$0xff] %v217
                %v219 = vld [vmem:[%s193 + $0xc0] sm:$0xff]
                %220 = vst [vmem:[%s194 + $0x60] sm:$0xff] %v219
                %v221 = vld [vmem:[%s193 + $0xd0] sm:$0xff]
                %222 = vst [vmem:[%s194 + $0x68] sm:$0xff] %v221
                %v223 = vld [vmem:[%s193 + $0xe0] sm:$0xff]
                %224 = vst [vmem:[%s194 + $0x70] sm:$0xff] %v223
                %v225 = vld [vmem:[%s193 + $0xf0] sm:$0xff]
                %226 = vst [vmem:[%s194 + $0x78] sm:$0xff] %v225
                %v227 = vld [vmem:[%s193 + $0x100] sm:$0xff]
                %228 = vst [vmem:[%s194 + $0x80] sm:$0xff] %v227
                %v229 = vld [vmem:[%s193 + $0x110] sm:$0xff]
                %230 = vst [vmem:[%s194 + $0x88] sm:$0xff] %v229
                %v231 = vld [vmem:[%s193 + $0x120] sm:$0xff]
                %232 = vst [vmem:[%s194 + $0x90] sm:$0xff] %v231
                %v233 = vld [vmem:[%s193 + $0x130] sm:$0xff]
                %234 = vst [vmem:[%s194 + $0x98] sm:$0xff] %v233
                %v235 = vld [vmem:[%s193 + $0x140] sm:$0xff]
                %236 = vst [vmem:[%s194 + $0xa0] sm:$0xff] %v235
                %v237 = vld [vmem:[%s193 + $0x150] sm:$0xff]
                %238 = vst [vmem:[%s194 + $0xa8] sm:$0xff] %v237
                %v239 = vld [vmem:[%s193 + $0x160] sm:$0xff]
                %240 = vst [vmem:[%s194 + $0xb0] sm:$0xff] %v239
                %v241 = vld [vmem:[%s193 + $0x170] sm:$0xff]
                %242 = vst [vmem:[%s194 + $0xb8] sm:$0xff] %v241
                %v243 = vld [vmem:[%s193 + $0x180] sm:$0xff]
                %244 = vst [vmem:[%s194 + $0xc0] sm:$0xff] %v243
                %v245 = vld [vmem:[%s193 + $0x190] sm:$0xff]
                %246 = vst [vmem:[%s194 + $0xc8] sm:$0xff] %v245
                %v247 = vld [vmem:[%s193 + $0x1a0] sm:$0xff]
                %248 = vst [vmem:[%s194 + $0xd0] sm:$0xff] %v247
                %v249 = vld [vmem:[%s193 + $0x1b0] sm:$0xff]
                %250 = vst [vmem:[%s194 + $0xd8] sm:$0xff] %v249
                %v251 = vld [vmem:[%s193 + $0x1c0] sm:$0xff]
                %252 = vst [vmem:[%s194 + $0xe0] sm:$0xff] %v251
                %v253 = vld [vmem:[%s193 + $0x1d0] sm:$0xff]
                %254 = vst [vmem:[%s194 + $0xe8] sm:$0xff] %v253
                %v255 = vld [vmem:[%s193 + $0x1e0] sm:$0xff]
                %256 = vst [vmem:[%s194 + $0xf0] sm:$0xff] %v255
                %v257 = vld [vmem:[%s193 + $0x1f0] sm:$0xff]
                %258 = vst [vmem:[%s194 + $0xf8] sm:$0xff] %v257
              $region49: #{gcn_forward.2} parent=43 // loop_footer
                %s192 = sadd.s32 1, %s188
              $region50: #{gcn_forward.2} parent=43 // loop_footer_branch
                %187 = sbr.rel target = $region46
              $region51: #{gcn_forward.2} parent=43 // loop_exit
                _
            $region44: #{gcn_forward.2} parent=35 // pred_fallthru
              _
          $region36: #{gcn_forward.2} parent=31 // pred_fallthru
            _
          %335 = vnop
        $region32: #{gcn_forward.2} parent=27 // pred_fallthru
          _
      $region28: #{gcn_forward.2} parent=5 // pred_fallthru
        _
      %p336 = scmp.le.s32.totalorder 1, %s10
      %p337 = scmp.lt.s32.totalorder %s10, 5
      %p338 = pnand %p336, %p337
      %p339 = pneg %p338
      // Predicated region
      $region67: #{gcn_forward.2} parent=5 // pred_check
        _
      $region68: #{gcn_forward.2} parent=5 // pred_check_branch
        %341 = sbr.rel (%p338) target = $region70
      $region69: #{gcn_forward.2} parent=5 // pred_region
        %s342 = ssub.s32 %s10, 1
        %s343 = sand.u32 %s37, 1
        %s344 = sand.u32 %s37, 1
        %s345 = smul.addr %s344, 256
        %s346 = scalar_lea.vmem [#allocation3], %s345
        // Predicated region
        $region71: #{gcn_forward.2} parent=69 // pred_check
          %p347 = pneg %p50
        $region72: #{gcn_forward.2} parent=69 // pred_check_branch
          %349 = sbr.rel (%p347) target = $region74
        $region73: #{gcn_forward.2} parent=69 // pred_region
          _
        $region74: #{gcn_forward.2} parent=69 // pred_fallthru
          _
        %s350 = sand.u32 %s37, 1
        %s351 = sand.u32 %s37, 1
        %s352 = smul.addr %s351, 256
        %s353 = scalar_lea.vmem [#allocation3], %s352
        %p354 = pneg %p50
        %p355 = pneg %p47
        %p356 = pneg %p71
        %p357 = pneg %p68
        %p358 = pneg %p92
        %p359 = pneg %p89
        %p360 = pneg %p113
        %p361 = pneg %p110
        %p362 = pneg %p139
        %p363 = pneg %p136
        %s364 = smul.u32 32, %s19
        %p365 = scmp.lt.s32.totalorder %s364, 63
        %s366 = scalar_select %p365, %s364, 63
        %s367 = smul.addr %s366, 4
        %s368 = scalar_lea.vmem %s4, %s367
        %s369 = smul.u32 32, %s19
        %s370 = smul.u32 2, %s20
        %s371 = smul.u32 32, %s19
        %p372 = scmp.lt.s32.totalorder %s371, 63
        %s373 = scalar_select %p372, %s371, 63
        %s374 = smul.addr %s373, 4
        %s375 = scalar_lea.vmem %s4, %s374
        %s376 = smul.u32 32, %s19
        %p378 = scmp.eq.s32.totalorder %s20, 0
        // Predicated region
        $region75: #{gcn_forward.2} parent=69 // pred_check
          %p379 = pneg %p378
        $region76: #{gcn_forward.2} parent=69 // pred_check_branch
          %381 = sbr.rel (%p379) target = $region78
        $region77: #{gcn_forward.2} parent=69 // pred_region
          %382 = vst [vmem:[#allocation2] sm:$0xff] 0.0
          %383 = vst [vmem:[#allocation2 + $0x8] sm:$0xff] 0.0
          %384 = vst [vmem:[#allocation2 + $0x10] sm:$0xff] 0.0
          %385 = vst [vmem:[#allocation2 + $0x18] sm:$0xff] 0.0
          %386 = vst [vmem:[#allocation2 + $0x20] sm:$0xff] 0.0
          %387 = vst [vmem:[#allocation2 + $0x28] sm:$0xff] 0.0
          %388 = vst [vmem:[#allocation2 + $0x30] sm:$0xff] 0.0
          %389 = vst [vmem:[#allocation2 + $0x38] sm:$0xff] 0.0
          %390 = vst [vmem:[#allocation2 + $0x40] sm:$0xff] 0.0
          %391 = vst [vmem:[#allocation2 + $0x48] sm:$0xff] 0.0
          %392 = vst [vmem:[#allocation2 + $0x50] sm:$0xff] 0.0
          %393 = vst [vmem:[#allocation2 + $0x58] sm:$0xff] 0.0
          %394 = vst [vmem:[#allocation2 + $0x60] sm:$0xff] 0.0
          %395 = vst [vmem:[#allocation2 + $0x68] sm:$0xff] 0.0
          %396 = vst [vmem:[#allocation2 + $0x70] sm:$0xff] 0.0
          %397 = vst [vmem:[#allocation2 + $0x78] sm:$0xff] 0.0
          %398 = vst [vmem:[#allocation2 + $0x80] sm:$0xff] 0.0
          %399 = vst [vmem:[#allocation2 + $0x88] sm:$0xff] 0.0
          %400 = vst [vmem:[#allocation2 + $0x90] sm:$0xff] 0.0
          %401 = vst [vmem:[#allocation2 + $0x98] sm:$0xff] 0.0
          %402 = vst [vmem:[#allocation2 + $0xa0] sm:$0xff] 0.0
          %403 = vst [vmem:[#allocation2 + $0xa8] sm:$0xff] 0.0
          %404 = vst [vmem:[#allocation2 + $0xb0] sm:$0xff] 0.0
          %405 = vst [vmem:[#allocation2 + $0xb8] sm:$0xff] 0.0
          %406 = vst [vmem:[#allocation2 + $0xc0] sm:$0xff] 0.0
          %407 = vst [vmem:[#allocation2 + $0xc8] sm:$0xff] 0.0
          %408 = vst [vmem:[#allocation2 + $0xd0] sm:$0xff] 0.0
          %409 = vst [vmem:[#allocation2 + $0xd8] sm:$0xff] 0.0
          %410 = vst [vmem:[#allocation2 + $0xe0] sm:$0xff] 0.0
          %411 = vst [vmem:[#allocation2 + $0xe8] sm:$0xff] 0.0
          %412 = vst [vmem:[#allocation2 + $0xf0] sm:$0xff] 0.0
          %413 = vst [vmem:[#allocation2 + $0xf8] sm:$0xff] 0.0
        $region78: #{gcn_forward.2} parent=69 // pred_fallthru
          _
        %s414 = smul.u32 %s20, 256
        %s415 = sshra.s32 %s414, 3
        %s416 = sand.u32 %s414, 7
        %s417 = smul.addr %s415, 4
        %s418 = scalar_lea.vmem %s1, %s417
        %v419 = vld [vmem:[%s418] sm:$0xf]
        %v420 = vld [vmem:[%s418 + $0x4] sm:$0xf]
        %v421 = vld [vmem:[%s418 + $0x8] sm:$0xf]
        %v422 = vld [vmem:[%s418 + $0xc] sm:$0xf]
        %v423 = vld [vmem:[%s418 + $0x10] sm:$0xf]
        %v424 = vld [vmem:[%s418 + $0x14] sm:$0xf]
        %v425 = vld [vmem:[%s418 + $0x18] sm:$0xf]
        %v426 = vld [vmem:[%s418 + $0x1c] sm:$0xf]
        %v427 = vld [vmem:[%s418 + $0x20] sm:$0xf]
        %v428 = vld [vmem:[%s418 + $0x24] sm:$0xf]
        %v429 = vld [vmem:[%s418 + $0x28] sm:$0xf]
        %v430 = vld [vmem:[%s418 + $0x2c] sm:$0xf]
        %v431 = vld [vmem:[%s418 + $0x30] sm:$0xf]
        %v432 = vld [vmem:[%s418 + $0x34] sm:$0xf]
        %v433 = vld [vmem:[%s418 + $0x38] sm:$0xf]
        %v434 = vld [vmem:[%s418 + $0x3c] sm:$0xf]
        %v435 = vld [vmem:[%s418 + $0x40] sm:$0xf]
        %v436 = vld [vmem:[%s418 + $0x44] sm:$0xf]
        %v437 = vld [vmem:[%s418 + $0x48] sm:$0xf]
        %v438 = vld [vmem:[%s418 + $0x4c] sm:$0xf]
        %v439 = vld [vmem:[%s418 + $0x50] sm:$0xf]
        %v440 = vld [vmem:[%s418 + $0x54] sm:$0xf]
        %v441 = vld [vmem:[%s418 + $0x58] sm:$0xf]
        %v442 = vld [vmem:[%s418 + $0x5c] sm:$0xf]
        %v443 = vld [vmem:[%s418 + $0x60] sm:$0xf]
        %v444 = vld [vmem:[%s418 + $0x64] sm:$0xf]
        %v445 = vld [vmem:[%s418 + $0x68] sm:$0xf]
        %v446 = vld [vmem:[%s418 + $0x6c] sm:$0xf]
        %v447 = vld [vmem:[%s418 + $0x70] sm:$0xf]
        %v448 = vld [vmem:[%s418 + $0x74] sm:$0xf]
        %v449 = vld [vmem:[%s418 + $0x78] sm:$0xf]
        %v450 = vld [vmem:[%s418 + $0x7c] sm:$0xf]
        %v451 = vld [vmem:[#allocation2] sm:$0xff]
        %v452 = vld [vmem:[#allocation2 + $0x8] sm:$0xff]
        %v453 = vld [vmem:[#allocation2 + $0x10] sm:$0xff]
        %v454 = vld [vmem:[#allocation2 + $0x18] sm:$0xff]
        %v455 = vld [vmem:[#allocation2 + $0x20] sm:$0xff]
        %v456 = vld [vmem:[#allocation2 + $0x28] sm:$0xff]
        %v457 = vld [vmem:[#allocation2 + $0x30] sm:$0xff]
        %v458 = vld [vmem:[#allocation2 + $0x38] sm:$0xff]
        %v459 = vld [vmem:[#allocation2 + $0x40] sm:$0xff]
        %v460 = vld [vmem:[#allocation2 + $0x48] sm:$0xff]
        %v461 = vld [vmem:[#allocation2 + $0x50] sm:$0xff]
        %v462 = vld [vmem:[#allocation2 + $0x58] sm:$0xff]
        %v463 = vld [vmem:[#allocation2 + $0x60] sm:$0xff]
        %v464 = vld [vmem:[#allocation2 + $0x68] sm:$0xff]
        %v465 = vld [vmem:[#allocation2 + $0x70] sm:$0xff]
        %v466 = vld [vmem:[#allocation2 + $0x78] sm:$0xff]
        %v467 = vld [vmem:[#allocation2 + $0x80] sm:$0xff]
        %v468 = vld [vmem:[#allocation2 + $0x88] sm:$0xff]
        %v469 = vld [vmem:[#allocation2 + $0x90] sm:$0xff]
        %v470 = vld [vmem:[#allocation2 + $0x98] sm:$0xff]
        %v471 = vld [vmem:[#allocation2 + $0xa0] sm:$0xff]
        %v472 = vld [vmem:[#allocation2 + $0xa8] sm:$0xff]
        %v473 = vld [vmem:[#allocation2 + $0xb0] sm:$0xff]
        %v474 = vld [vmem:[#allocation2 + $0xb8] sm:$0xff]
        %v475 = vld [vmem:[#allocation2 + $0xc0] sm:$0xff]
        %v476 = vld [vmem:[#allocation2 + $0xc8] sm:$0xff]
        %v477 = vld [vmem:[#allocation2 + $0xd0] sm:$0xff]
        %v478 = vld [vmem:[#allocation2 + $0xd8] sm:$0xff]
        %v479 = vld [vmem:[#allocation2 + $0xe0] sm:$0xff]
        %v480 = vld [vmem:[#allocation2 + $0xe8] sm:$0xff]
        %v481 = vld [vmem:[#allocation2 + $0xf0] sm:$0xff]
        %v482 = vld [vmem:[#allocation2 + $0xf8] sm:$0xff]
        %v483 = vld [vmem:[%s346] sm:$0xff]
        %v484 = vld [vmem:[%s346 + $0x8] sm:$0xff]
        %v485 = vld [vmem:[%s346 + $0x10] sm:$0xff]
        %v486 = vld [vmem:[%s346 + $0x18] sm:$0xff]
        %v487 = vld [vmem:[%s346 + $0x20] sm:$0xff]
        %v488 = vld [vmem:[%s346 + $0x28] sm:$0xff]
        %v489 = vld [vmem:[%s346 + $0x30] sm:$0xff]
        %v490 = vld [vmem:[%s346 + $0x38] sm:$0xff]
        %v491 = vld [vmem:[%s346 + $0x40] sm:$0xff]
        %v492 = vld [vmem:[%s346 + $0x48] sm:$0xff]
        %v493 = vld [vmem:[%s346 + $0x50] sm:$0xff]
        %v494 = vld [vmem:[%s346 + $0x58] sm:$0xff]
        %v495 = vld [vmem:[%s346 + $0x60] sm:$0xff]
        %v496 = vld [vmem:[%s346 + $0x68] sm:$0xff]
        %v497 = vld [vmem:[%s346 + $0x70] sm:$0xff]
        %v498 = vld [vmem:[%s346 + $0x78] sm:$0xff]
        %v499 = vld [vmem:[%s346 + $0x80] sm:$0xff]
        %v500 = vld [vmem:[%s346 + $0x88] sm:$0xff]
        %v501 = vld [vmem:[%s346 + $0x90] sm:$0xff]
        %v502 = vld [vmem:[%s346 + $0x98] sm:$0xff]
        %v503 = vld [vmem:[%s346 + $0xa0] sm:$0xff]
        %v504 = vld [vmem:[%s346 + $0xa8] sm:$0xff]
        %v505 = vld [vmem:[%s346 + $0xb0] sm:$0xff]
        %v506 = vld [vmem:[%s346 + $0xb8] sm:$0xff]
        %v507 = vld [vmem:[%s346 + $0xc0] sm:$0xff]
        %v508 = vld [vmem:[%s346 + $0xc8] sm:$0xff]
        %v509 = vld [vmem:[%s346 + $0xd0] sm:$0xff]
        %v510 = vld [vmem:[%s346 + $0xd8] sm:$0xff]
        %v511 = vld [vmem:[%s346 + $0xe0] sm:$0xff]
        %v512 = vld [vmem:[%s346 + $0xe8] sm:$0xff]
        %v513 = vld [vmem:[%s346 + $0xf0] sm:$0xff]
        %v514 = vld [vmem:[%s346 + $0xf8] sm:$0xff]
        %v547 = vunpack.c.l.b16 %v483
        %v548 = vunpack.c.h.b16 %v483
        %v549 = vunpack.c.l.b16 %v484
        %v550 = vunpack.c.h.b16 %v484
        %v551 = vunpack.c.l.b16 %v485
        %v552 = vunpack.c.h.b16 %v485
        %v553 = vunpack.c.l.b16 %v486
        %v554 = vunpack.c.h.b16 %v486
        %v555 = vunpack.c.l.b16 %v487
        %v556 = vunpack.c.h.b16 %v487
        %v557 = vunpack.c.l.b16 %v488
        %v558 = vunpack.c.h.b16 %v488
        %v559 = vunpack.c.l.b16 %v489
        %v560 = vunpack.c.h.b16 %v489
        %v561 = vunpack.c.l.b16 %v490
        %v562 = vunpack.c.h.b16 %v490
        %v563 = vunpack.c.l.b16 %v491
        %v564 = vunpack.c.h.b16 %v491
        %v565 = vunpack.c.l.b16 %v492
        %v566 = vunpack.c.h.b16 %v492
        %v567 = vunpack.c.l.b16 %v493
        %v568 = vunpack.c.h.b16 %v493
        %v569 = vunpack.c.l.b16 %v494
        %v570 = vunpack.c.h.b16 %v494
        %v571 = vunpack.c.l.b16 %v495
        %v572 = vunpack.c.h.b16 %v495
        %v573 = vunpack.c.l.b16 %v496
        %v574 = vunpack.c.h.b16 %v496
        %v575 = vunpack.c.l.b16 %v497
        %v576 = vunpack.c.h.b16 %v497
        %v577 = vunpack.c.l.b16 %v498
        %v578 = vunpack.c.h.b16 %v498
        %v579 = vunpack.c.l.b16 %v499
        %v580 = vunpack.c.h.b16 %v499
        %v581 = vunpack.c.l.b16 %v500
        %v582 = vunpack.c.h.b16 %v500
        %v583 = vunpack.c.l.b16 %v501
        %v584 = vunpack.c.h.b16 %v501
        %v585 = vunpack.c.l.b16 %v502
        %v586 = vunpack.c.h.b16 %v502
        %v587 = vunpack.c.l.b16 %v503
        %v588 = vunpack.c.h.b16 %v503
        %v589 = vunpack.c.l.b16 %v504
        %v590 = vunpack.c.h.b16 %v504
        %v591 = vunpack.c.l.b16 %v505
        %v592 = vunpack.c.h.b16 %v505
        %v593 = vunpack.c.l.b16 %v506
        %v594 = vunpack.c.h.b16 %v506
        %v595 = vunpack.c.l.b16 %v507
        %v596 = vunpack.c.h.b16 %v507
        %v597 = vunpack.c.l.b16 %v508
        %v598 = vunpack.c.h.b16 %v508
        %v599 = vunpack.c.l.b16 %v509
        %v600 = vunpack.c.h.b16 %v509
        %v601 = vunpack.c.l.b16 %v510
        %v602 = vunpack.c.h.b16 %v510
        %v603 = vunpack.c.l.b16 %v511
        %v604 = vunpack.c.h.b16 %v511
        %v605 = vunpack.c.l.b16 %v512
        %v606 = vunpack.c.h.b16 %v512
        %v607 = vunpack.c.l.b16 %v513
        %v608 = vunpack.c.h.b16 %v513
        %v609 = vunpack.c.l.b16 %v514
        %v610 = vunpack.c.h.b16 %v514
        %v611 = vpack.c.b16 %v549, %v547
        %v612 = vpack.c.b16 %v550, %v548
        %v613 = vpack.c.b16 %v553, %v551
        %v614 = vpack.c.b16 %v554, %v552
        %v615 = vpack.c.b16 %v557, %v555
        %v616 = vpack.c.b16 %v558, %v556
        %v617 = vpack.c.b16 %v561, %v559
        %v618 = vpack.c.b16 %v562, %v560
        %v619 = vpack.c.b16 %v565, %v563
        %v620 = vpack.c.b16 %v566, %v564
        %v621 = vpack.c.b16 %v569, %v567
        %v622 = vpack.c.b16 %v570, %v568
        %v623 = vpack.c.b16 %v573, %v571
        %v624 = vpack.c.b16 %v574, %v572
        %v625 = vpack.c.b16 %v577, %v575
        %v626 = vpack.c.b16 %v578, %v576
        %v627 = vpack.c.b16 %v581, %v579
        %v628 = vpack.c.b16 %v582, %v580
        %v629 = vpack.c.b16 %v585, %v583
        %v630 = vpack.c.b16 %v586, %v584
        %v631 = vpack.c.b16 %v589, %v587
        %v632 = vpack.c.b16 %v590, %v588
        %v633 = vpack.c.b16 %v593, %v591
        %v634 = vpack.c.b16 %v594, %v592
        %v635 = vpack.c.b16 %v597, %v595
        %v636 = vpack.c.b16 %v598, %v596
        %v637 = vpack.c.b16 %v601, %v599
        %v638 = vpack.c.b16 %v602, %v600
        %v639 = vpack.c.b16 %v605, %v603
        %v640 = vpack.c.b16 %v606, %v604
        %v641 = vpack.c.b16 %v609, %v607
        %v642 = vpack.c.b16 %v610, %v608
        %v707 = vunpack.c.l.b16 %v419
        %v708 = vunpack.c.l.b16 %v420
        %v709 = vunpack.c.l.b16 %v421
        %v710 = vunpack.c.l.b16 %v422
        %v711 = vunpack.c.l.b16 %v423
        %v712 = vunpack.c.l.b16 %v424
        %v713 = vunpack.c.l.b16 %v425
        %v714 = vunpack.c.l.b16 %v426
        %v715 = vunpack.c.l.b16 %v427
        %v716 = vunpack.c.l.b16 %v428
        %v717 = vunpack.c.l.b16 %v429
        %v718 = vunpack.c.l.b16 %v430
        %v719 = vunpack.c.l.b16 %v431
        %v720 = vunpack.c.l.b16 %v432
        %v721 = vunpack.c.l.b16 %v433
        %v722 = vunpack.c.l.b16 %v434
        %v723 = vunpack.c.l.b16 %v435
        %v724 = vunpack.c.l.b16 %v436
        %v725 = vunpack.c.l.b16 %v437
        %v726 = vunpack.c.l.b16 %v438
        %v727 = vunpack.c.l.b16 %v439
        %v728 = vunpack.c.l.b16 %v440
        %v729 = vunpack.c.l.b16 %v441
        %v730 = vunpack.c.l.b16 %v442
        %v731 = vunpack.c.l.b16 %v443
        %v732 = vunpack.c.l.b16 %v444
        %v733 = vunpack.c.l.b16 %v445
        %v734 = vunpack.c.l.b16 %v446
        %v735 = vunpack.c.l.b16 %v447
        %v736 = vunpack.c.l.b16 %v448
        %v737 = vunpack.c.l.b16 %v449
        %v738 = vunpack.c.l.b16 %v450
        %v739 = vpack.c.b16 %v708, %v707
        %v740 = vpack.c.b16 %v710, %v709
        %v741 = vpack.c.b16 %v712, %v711
        %v742 = vpack.c.b16 %v714, %v713
        %v743 = vpack.c.b16 %v716, %v715
        %v744 = vpack.c.b16 %v718, %v717
        %v745 = vpack.c.b16 %v720, %v719
        %v746 = vpack.c.b16 %v722, %v721
        %v747 = vpack.c.b16 %v724, %v723
        %v748 = vpack.c.b16 %v726, %v725
        %v749 = vpack.c.b16 %v728, %v727
        %v750 = vpack.c.b16 %v730, %v729
        %v751 = vpack.c.b16 %v732, %v731
        %v752 = vpack.c.b16 %v734, %v733
        %v753 = vpack.c.b16 %v736, %v735
        %v754 = vpack.c.b16 %v738, %v737
        %771 = vmatprep.subr.bf16.mxu0 0
        %772 = vmatpush1.bf16.msra.mxu0 %v739
        %773 = vmatprep.subr.bf16.mxu0 0
        %774 = vmatpush1.bf16.msra.mxu0 %v740
        %775 = vmatprep.subr.bf16.mxu0 0
        %776 = vmatpush1.bf16.msra.mxu0 %v741
        %777 = vmatprep.subr.bf16.mxu0 0
        %778 = vmatpush1.bf16.msra.mxu0 %v742
        %779 = vmatprep.subr.bf16.mxu0 0
        %780 = vmatpush1.bf16.msra.mxu0 %v743
        %781 = vmatprep.subr.bf16.mxu0 0
        %782 = vmatpush1.bf16.msra.mxu0 %v744
        %783 = vmatprep.subr.bf16.mxu0 0
        %784 = vmatpush1.bf16.msra.mxu0 %v745
        %785 = vmatprep.subr.bf16.mxu0 0
        %786 = vmatpush1.bf16.msra.mxu0 %v746
        %787 = vmatprep.subr.bf16.mxu0 0
        %788 = vmatpush1.bf16.msra.mxu0 %v747
        %789 = vmatprep.subr.bf16.mxu0 0
        %790 = vmatpush1.bf16.msra.mxu0 %v748
        %791 = vmatprep.subr.bf16.mxu0 0
        %792 = vmatpush1.bf16.msra.mxu0 %v749
        %793 = vmatprep.subr.bf16.mxu0 0
        %794 = vmatpush1.bf16.msra.mxu0 %v750
        %795 = vmatprep.subr.bf16.mxu0 0
        %796 = vmatpush1.bf16.msra.mxu0 %v751
        %797 = vmatprep.subr.bf16.mxu0 0
        %798 = vmatpush1.bf16.msra.mxu0 %v752
        %799 = vmatprep.subr.bf16.mxu0 0
        %800 = vmatpush1.bf16.msra.mxu0 %v753
        %801 = vmatprep.subr.bf16.mxu0 0
        %802 = vmatpush1.bf16.msra.mxu0 %v754
        %803 = vmatprep.mubr.bf16.mxu0 %v612
        %804 = vmatmul.mubr.bf16.gmra.mrb[0].mxu0 %v611
        %v805 = vpop.f32.mrb[0].mxu0
        %v806 = vadd.f32 0.0, %v805
        %v807 = vpop.f32.mrb[0].mxu0
        %v808 = vpop.f32.mrb[0].mxu0
        %v809 = vadd.f32 0.0, %v808
        %v810 = vpop.f32.mrb[0].mxu0
        %811 = vmatprep.mubr.bf16.mxu0 %v614
        %812 = vmatmul.mubr.bf16.gmra.mrb[0].mxu0 %v613
        %v813 = vpop.f32.mrb[0].mxu0
        %v814 = vadd.f32 0.0, %v813
        %v815 = vpop.f32.mrb[0].mxu0
        %v816 = vpop.f32.mrb[0].mxu0
        %v817 = vadd.f32 0.0, %v816
        %v818 = vpop.f32.mrb[0].mxu0
        %819 = vmatprep.mubr.bf16.mxu0 %v616
        %820 = vmatmul.mubr.bf16.gmra.mrb[0].mxu0 %v615
        %v821 = vpop.f32.mrb[0].mxu0
        %v822 = vadd.f32 0.0, %v821
        %v823 = vpop.f32.mrb[0].mxu0
        %v824 = vpop.f32.mrb[0].mxu0
        %v825 = vadd.f32 0.0, %v824
        %v826 = vpop.f32.mrb[0].mxu0
        %827 = vmatprep.mubr.bf16.mxu0 %v618
        %828 = vmatmul.mubr.bf16.gmra.mrb[0].mxu0 %v617
        %v829 = vpop.f32.mrb[0].mxu0
        %v830 = vadd.f32 0.0, %v829
        %v831 = vpop.f32.mrb[0].mxu0
        %v832 = vpop.f32.mrb[0].mxu0
        %v833 = vadd.f32 0.0, %v832
        %v834 = vpop.f32.mrb[0].mxu0
        %835 = vmatprep.mubr.bf16.mxu0 %v620
        %836 = vmatmul.mubr.bf16.gmra.mrb[0].mxu0 %v619
        %v837 = vpop.f32.mrb[0].mxu0
        %v838 = vadd.f32 0.0, %v837
        %v839 = vpop.f32.mrb[0].mxu0
        %v840 = vpop.f32.mrb[0].mxu0
        %v841 = vadd.f32 0.0, %v840
        %v842 = vpop.f32.mrb[0].mxu0
        %843 = vmatprep.mubr.bf16.mxu0 %v622
        %844 = vmatmul.mubr.bf16.gmra.mrb[0].mxu0 %v621
        %v845 = vpop.f32.mrb[0].mxu0
        %v846 = vadd.f32 0.0, %v845
        %v847 = vpop.f32.mrb[0].mxu0
        %v848 = vpop.f32.mrb[0].mxu0
        %v849 = vadd.f32 0.0, %v848
        %v850 = vpop.f32.mrb[0].mxu0
        %851 = vmatprep.mubr.bf16.mxu0 %v624
        %852 = vmatmul.mubr.bf16.gmra.mrb[0].mxu0 %v623
        %v853 = vpop.f32.mrb[0].mxu0
        %v854 = vadd.f32 0.0, %v853
        %v855 = vpop.f32.mrb[0].mxu0
        %v856 = vpop.f32.mrb[0].mxu0
        %v857 = vadd.f32 0.0, %v856
        %v858 = vpop.f32.mrb[0].mxu0
        %859 = vmatprep.mubr.bf16.mxu0 %v626
        %860 = vmatmul.mubr.bf16.gmra.mrb[0].mxu0 %v625
        %v861 = vpop.f32.mrb[0].mxu0
        %v862 = vadd.f32 0.0, %v861
        %v863 = vpop.f32.mrb[0].mxu0
        %v864 = vpop.f32.mrb[0].mxu0
        %v865 = vadd.f32 0.0, %v864
        %v866 = vpop.f32.mrb[0].mxu0
        %867 = vmatprep.mubr.bf16.mxu0 %v628
        %868 = vmatmul.mubr.bf16.gmra.mrb[0].mxu0 %v627
        %v869 = vpop.f32.mrb[0].mxu0
        %v870 = vadd.f32 0.0, %v869
        %v871 = vpop.f32.mrb[0].mxu0
        %v872 = vpop.f32.mrb[0].mxu0
        %v873 = vadd.f32 0.0, %v872
        %v874 = vpop.f32.mrb[0].mxu0
        %875 = vmatprep.mubr.bf16.mxu0 %v630
        %876 = vmatmul.mubr.bf16.gmra.mrb[0].mxu0 %v629
        %v877 = vpop.f32.mrb[0].mxu0
        %v878 = vadd.f32 0.0, %v877
        %v879 = vpop.f32.mrb[0].mxu0
        %v880 = vpop.f32.mrb[0].mxu0
        %v881 = vadd.f32 0.0, %v880
        %v882 = vpop.f32.mrb[0].mxu0
        %883 = vmatprep.mubr.bf16.mxu0 %v632
        %884 = vmatmul.mubr.bf16.gmra.mrb[0].mxu0 %v631
        %v885 = vpop.f32.mrb[0].mxu0
        %v886 = vadd.f32 0.0, %v885
        %v887 = vpop.f32.mrb[0].mxu0
        %v888 = vpop.f32.mrb[0].mxu0
        %v889 = vadd.f32 0.0, %v888
        %v890 = vpop.f32.mrb[0].mxu0
        %891 = vmatprep.mubr.bf16.mxu0 %v634
        %892 = vmatmul.mubr.bf16.gmra.mrb[0].mxu0 %v633
        %v893 = vpop.f32.mrb[0].mxu0
        %v894 = vadd.f32 0.0, %v893
        %v895 = vpop.f32.mrb[0].mxu0
        %v896 = vpop.f32.mrb[0].mxu0
        %v897 = vadd.f32 0.0, %v896
        %v898 = vpop.f32.mrb[0].mxu0
        %899 = vmatprep.mubr.bf16.mxu0 %v636
        %900 = vmatmul.mubr.bf16.gmra.mrb[0].mxu0 %v635
        %v901 = vpop.f32.mrb[0].mxu0
        %v902 = vadd.f32 0.0, %v901
        %v903 = vpop.f32.mrb[0].mxu0
        %v904 = vpop.f32.mrb[0].mxu0
        %v905 = vadd.f32 0.0, %v904
        %v906 = vpop.f32.mrb[0].mxu0
        %907 = vmatprep.mubr.bf16.mxu0 %v638
        %908 = vmatmul.mubr.bf16.gmra.mrb[0].mxu0 %v637
        %v909 = vpop.f32.mrb[0].mxu0
        %v910 = vadd.f32 0.0, %v909
        %v911 = vpop.f32.mrb[0].mxu0
        %v912 = vpop.f32.mrb[0].mxu0
        %v913 = vadd.f32 0.0, %v912
        %v914 = vpop.f32.mrb[0].mxu0
        %915 = vmatprep.mubr.bf16.mxu0 %v640
        %916 = vmatmul.mubr.bf16.gmra.mrb[0].mxu0 %v639
        %v917 = vpop.f32.mrb[0].mxu0
        %v918 = vadd.f32 0.0, %v917
        %v919 = vpop.f32.mrb[0].mxu0
        %v920 = vpop.f32.mrb[0].mxu0
        %v921 = vadd.f32 0.0, %v920
        %v922 = vpop.f32.mrb[0].mxu0
        %923 = vmatprep.mubr.bf16.mxu0 %v642
        %924 = vmatmul.mubr.bf16.gmra.mrb[0].mxu0 %v641
        %v925 = vpop.f32.mrb[0].mxu0
        %v926 = vadd.f32 0.0, %v925
        %v927 = vpop.f32.mrb[0].mxu0
        %v928 = vpop.f32.mrb[0].mxu0
        %v929 = vadd.f32 0.0, %v928
        %v930 = vpop.f32.mrb[0].mxu0
        %931 = vdwg.mxu0
        %v932 = vadd.f32 %v451, %v806
        %v933 = vadd.f32 %v452, %v809
        %v934 = vadd.f32 %v453, %v814
        %v935 = vadd.f32 %v454, %v817
        %v936 = vadd.f32 %v455, %v822
        %v937 = vadd.f32 %v456, %v825
        %v938 = vadd.f32 %v457, %v830
        %v939 = vadd.f32 %v458, %v833
        %v940 = vadd.f32 %v459, %v838
        %v941 = vadd.f32 %v460, %v841
        %v942 = vadd.f32 %v461, %v846
        %v943 = vadd.f32 %v462, %v849
        %v944 = vadd.f32 %v463, %v854
        %v945 = vadd.f32 %v464, %v857
        %v946 = vadd.f32 %v465, %v862
        %v947 = vadd.f32 %v466, %v865
        %v948 = vadd.f32 %v467, %v870
        %v949 = vadd.f32 %v468, %v873
        %v950 = vadd.f32 %v469, %v878
        %v951 = vadd.f32 %v470, %v881
        %v952 = vadd.f32 %v471, %v886
        %v953 = vadd.f32 %v472, %v889
        %v954 = vadd.f32 %v473, %v894
        %v955 = vadd.f32 %v474, %v897
        %v956 = vadd.f32 %v475, %v902
        %v957 = vadd.f32 %v476, %v905
        %v958 = vadd.f32 %v477, %v910
        %v959 = vadd.f32 %v478, %v913
        %v960 = vadd.f32 %v479, %v918
        %v961 = vadd.f32 %v480, %v921
        %v962 = vadd.f32 %v481, %v926
        %v963 = vadd.f32 %v482, %v929
        %964 = vst [vmem:[#allocation2] sm:$0xff] %v932
        %965 = vst [vmem:[#allocation2 + $0x8] sm:$0xff] %v933
        %966 = vst [vmem:[#allocation2 + $0x10] sm:$0xff] %v934
        %967 = vst [vmem:[#allocation2 + $0x18] sm:$0xff] %v935
        %968 = vst [vmem:[#allocation2 + $0x20] sm:$0xff] %v936
        %969 = vst [vmem:[#allocation2 + $0x28] sm:$0xff] %v937
        %970 = vst [vmem:[#allocation2 + $0x30] sm:$0xff] %v938
        %971 = vst [vmem:[#allocation2 + $0x38] sm:$0xff] %v939
        %972 = vst [vmem:[#allocation2 + $0x40] sm:$0xff] %v940
        %973 = vst [vmem:[#allocation2 + $0x48] sm:$0xff] %v941
        %974 = vst [vmem:[#allocation2 + $0x50] sm:$0xff] %v942
        %975 = vst [vmem:[#allocation2 + $0x58] sm:$0xff] %v943
        %976 = vst [vmem:[#allocation2 + $0x60] sm:$0xff] %v944
        %977 = vst [vmem:[#allocation2 + $0x68] sm:$0xff] %v945
        %978 = vst [vmem:[#allocation2 + $0x70] sm:$0xff] %v946
        %979 = vst [vmem:[#allocation2 + $0x78] sm:$0xff] %v947
        %980 = vst [vmem:[#allocation2 + $0x80] sm:$0xff] %v948
        %981 = vst [vmem:[#allocation2 + $0x88] sm:$0xff] %v949
        %982 = vst [vmem:[#allocation2 + $0x90] sm:$0xff] %v950
        %983 = vst [vmem:[#allocation2 + $0x98] sm:$0xff] %v951
        %984 = vst [vmem:[#allocation2 + $0xa0] sm:$0xff] %v952
        %985 = vst [vmem:[#allocation2 + $0xa8] sm:$0xff] %v953
        %986 = vst [vmem:[#allocation2 + $0xb0] sm:$0xff] %v954
        %987 = vst [vmem:[#allocation2 + $0xb8] sm:$0xff] %v955
        %988 = vst [vmem:[#allocation2 + $0xc0] sm:$0xff] %v956
        %989 = vst [vmem:[#allocation2 + $0xc8] sm:$0xff] %v957
        %990 = vst [vmem:[#allocation2 + $0xd0] sm:$0xff] %v958
        %991 = vst [vmem:[#allocation2 + $0xd8] sm:$0xff] %v959
        %992 = vst [vmem:[#allocation2 + $0xe0] sm:$0xff] %v960
        %993 = vst [vmem:[#allocation2 + $0xe8] sm:$0xff] %v961
        %994 = vst [vmem:[#allocation2 + $0xf0] sm:$0xff] %v962
        %995 = vst [vmem:[#allocation2 + $0xf8] sm:$0xff] %v963
        %p996 = scmp.eq.s32.totalorder %s20, 1
        // Predicated region
        $region79: #{gcn_forward.2} parent=69 // pred_check
          %p997 = pneg %p996
        $region80: #{gcn_forward.2} parent=69 // pred_check_branch
          %999 = sbr.rel (%p997) target = $region82
        $region81: #{gcn_forward.2} parent=69 // pred_region
          %v1000 = vld [vmem:[#allocation2] sm:$0xff]
          %v1001 = vld [vmem:[#allocation2 + $0x8] sm:$0xff]
          %v1002 = vld [vmem:[#allocation2 + $0x10] sm:$0xff]
          %v1003 = vld [vmem:[#allocation2 + $0x18] sm:$0xff]
          %v1004 = vld [vmem:[#allocation2 + $0x20] sm:$0xff]
          %v1005 = vld [vmem:[#allocation2 + $0x28] sm:$0xff]
          %v1006 = vld [vmem:[#allocation2 + $0x30] sm:$0xff]
          %v1007 = vld [vmem:[#allocation2 + $0x38] sm:$0xff]
          %v1008 = vld [vmem:[#allocation2 + $0x40] sm:$0xff]
          %v1009 = vld [vmem:[#allocation2 + $0x48] sm:$0xff]
          %v1010 = vld [vmem:[#allocation2 + $0x50] sm:$0xff]
          %v1011 = vld [vmem:[#allocation2 + $0x58] sm:$0xff]
          %v1012 = vld [vmem:[#allocation2 + $0x60] sm:$0xff]
          %v1013 = vld [vmem:[#allocation2 + $0x68] sm:$0xff]
          %v1014 = vld [vmem:[#allocation2 + $0x70] sm:$0xff]
          %v1015 = vld [vmem:[#allocation2 + $0x78] sm:$0xff]
          %v1016 = vld [vmem:[#allocation2 + $0x80] sm:$0xff]
          %v1017 = vld [vmem:[#allocation2 + $0x88] sm:$0xff]
          %v1018 = vld [vmem:[#allocation2 + $0x90] sm:$0xff]
          %v1019 = vld [vmem:[#allocation2 + $0x98] sm:$0xff]
          %v1020 = vld [vmem:[#allocation2 + $0xa0] sm:$0xff]
          %v1021 = vld [vmem:[#allocation2 + $0xa8] sm:$0xff]
          %v1022 = vld [vmem:[#allocation2 + $0xb0] sm:$0xff]
          %v1023 = vld [vmem:[#allocation2 + $0xb8] sm:$0xff]
          %v1024 = vld [vmem:[#allocation2 + $0xc0] sm:$0xff]
          %v1025 = vld [vmem:[#allocation2 + $0xc8] sm:$0xff]
          %v1026 = vld [vmem:[#allocation2 + $0xd0] sm:$0xff]
          %v1027 = vld [vmem:[#allocation2 + $0xd8] sm:$0xff]
          %v1028 = vld [vmem:[#allocation2 + $0xe0] sm:$0xff]
          %v1029 = vld [vmem:[#allocation2 + $0xe8] sm:$0xff]
          %v1030 = vld [vmem:[#allocation2 + $0xf0] sm:$0xff]
          %v1031 = vld [vmem:[#allocation2 + $0xf8] sm:$0xff]
          %v1032 = vld [vmem:[%s2] sm:$0x1]
          %v1034 = vlaneseq
          %v1035 = vshrl.u32 %v1034, 7
          %v1036 = vsub.s32 0, %v1035
          %v1037 = vrot.slane %v1032, %v1036
          %v1039 = vadd.f32 %v1000, %v1037
          %v1040 = vadd.f32 %v1001, %v1037
          %v1041 = vadd.f32 %v1002, %v1037
          %v1042 = vadd.f32 %v1003, %v1037
          %v1043 = vadd.f32 %v1004, %v1037
          %v1044 = vadd.f32 %v1005, %v1037
          %v1045 = vadd.f32 %v1006, %v1037
          %v1046 = vadd.f32 %v1007, %v1037
          %v1047 = vadd.f32 %v1008, %v1037
          %v1048 = vadd.f32 %v1009, %v1037
          %v1049 = vadd.f32 %v1010, %v1037
          %v1050 = vadd.f32 %v1011, %v1037
          %v1051 = vadd.f32 %v1012, %v1037
          %v1052 = vadd.f32 %v1013, %v1037
          %v1053 = vadd.f32 %v1014, %v1037
          %v1054 = vadd.f32 %v1015, %v1037
          %v1055 = vadd.f32 %v1016, %v1037
          %v1056 = vadd.f32 %v1017, %v1037
          %v1057 = vadd.f32 %v1018, %v1037
          %v1058 = vadd.f32 %v1019, %v1037
          %v1059 = vadd.f32 %v1020, %v1037
          %v1060 = vadd.f32 %v1021, %v1037
          %v1061 = vadd.f32 %v1022, %v1037
          %v1062 = vadd.f32 %v1023, %v1037
          %v1063 = vadd.f32 %v1024, %v1037
          %v1064 = vadd.f32 %v1025, %v1037
          %v1065 = vadd.f32 %v1026, %v1037
          %v1066 = vadd.f32 %v1027, %v1037
          %v1067 = vadd.f32 %v1028, %v1037
          %v1068 = vadd.f32 %v1029, %v1037
          %v1069 = vadd.f32 %v1030, %v1037
          %v1070 = vadd.f32 %v1031, %v1037
          %v1071 = vmax.f32 %v1039, 0.0
          %v1072 = vmax.f32 %v1040, 0.0
          %v1073 = vmax.f32 %v1041, 0.0
          %v1074 = vmax.f32 %v1042, 0.0
          %v1075 = vmax.f32 %v1043, 0.0
          %v1076 = vmax.f32 %v1044, 0.0
          %v1077 = vmax.f32 %v1045, 0.0
          %v1078 = vmax.f32 %v1046, 0.0
          %v1079 = vmax.f32 %v1047, 0.0
          %v1080 = vmax.f32 %v1048, 0.0
          %v1081 = vmax.f32 %v1049, 0.0
          %v1082 = vmax.f32 %v1050, 0.0
          %v1083 = vmax.f32 %v1051, 0.0
          %v1084 = vmax.f32 %v1052, 0.0
          %v1085 = vmax.f32 %v1053, 0.0
          %v1086 = vmax.f32 %v1054, 0.0
          %v1087 = vmax.f32 %v1055, 0.0
          %v1088 = vmax.f32 %v1056, 0.0
          %v1089 = vmax.f32 %v1057, 0.0
          %v1090 = vmax.f32 %v1058, 0.0
          %v1091 = vmax.f32 %v1059, 0.0
          %v1092 = vmax.f32 %v1060, 0.0
          %v1093 = vmax.f32 %v1061, 0.0
          %v1094 = vmax.f32 %v1062, 0.0
          %v1095 = vmax.f32 %v1063, 0.0
          %v1096 = vmax.f32 %v1064, 0.0
          %v1097 = vmax.f32 %v1065, 0.0
          %v1098 = vmax.f32 %v1066, 0.0
          %v1099 = vmax.f32 %v1067, 0.0
          %v1100 = vmax.f32 %v1068, 0.0
          %v1101 = vmax.f32 %v1069, 0.0
          %v1102 = vmax.f32 %v1070, 0.0
          %v1103 = vpack.c.bf16 %v1072, %v1071
          %v1104 = vpack.c.bf16 %v1074, %v1073
          %v1105 = vpack.c.bf16 %v1076, %v1075
          %v1106 = vpack.c.bf16 %v1078, %v1077
          %v1107 = vpack.c.bf16 %v1080, %v1079
          %v1108 = vpack.c.bf16 %v1082, %v1081
          %v1109 = vpack.c.bf16 %v1084, %v1083
          %v1110 = vpack.c.bf16 %v1086, %v1085
          %v1111 = vpack.c.bf16 %v1088, %v1087
          %v1112 = vpack.c.bf16 %v1090, %v1089
          %v1113 = vpack.c.bf16 %v1092, %v1091
          %v1114 = vpack.c.bf16 %v1094, %v1093
          %v1115 = vpack.c.bf16 %v1096, %v1095
          %v1116 = vpack.c.bf16 %v1098, %v1097
          %v1117 = vpack.c.bf16 %v1100, %v1099
          %v1118 = vpack.c.bf16 %v1102, %v1101
          %v1119 = vld [vmem:[%s3] sm:$0xf]
          %v1120 = vld [vmem:[%s3 + $0x4] sm:$0xf]
          %v1121 = vld [vmem:[%s3 + $0x8] sm:$0xf]
          %v1122 = vld [vmem:[%s3 + $0xc] sm:$0xf]
          %v1123 = vld [vmem:[%s3 + $0x10] sm:$0xf]
          %v1124 = vld [vmem:[%s3 + $0x14] sm:$0xf]
          %v1125 = vld [vmem:[%s3 + $0x18] sm:$0xf]
          %v1126 = vld [vmem:[%s3 + $0x1c] sm:$0xf]
          %v1127 = vld [vmem:[%s3 + $0x20] sm:$0xf]
          %v1128 = vld [vmem:[%s3 + $0x24] sm:$0xf]
          %v1129 = vld [vmem:[%s3 + $0x28] sm:$0xf]
          %v1130 = vld [vmem:[%s3 + $0x2c] sm:$0xf]
          %v1131 = vld [vmem:[%s3 + $0x30] sm:$0xf]
          %v1132 = vld [vmem:[%s3 + $0x34] sm:$0xf]
          %v1133 = vld [vmem:[%s3 + $0x38] sm:$0xf]
          %v1134 = vld [vmem:[%s3 + $0x3c] sm:$0xf]
          %v1151 = vunpack.c.l.b16 %v1119
          %v1152 = vunpack.c.l.b16 %v1120
          %v1153 = vunpack.c.l.b16 %v1121
          %v1154 = vunpack.c.l.b16 %v1122
          %v1155 = vunpack.c.l.b16 %v1123
          %v1156 = vunpack.c.l.b16 %v1124
          %v1157 = vunpack.c.l.b16 %v1125
          %v1158 = vunpack.c.l.b16 %v1126
          %v1159 = vunpack.c.l.b16 %v1127
          %v1160 = vunpack.c.l.b16 %v1128
          %v1161 = vunpack.c.l.b16 %v1129
          %v1162 = vunpack.c.l.b16 %v1130
          %v1163 = vunpack.c.l.b16 %v1131
          %v1164 = vunpack.c.l.b16 %v1132
          %v1165 = vunpack.c.l.b16 %v1133
          %v1166 = vunpack.c.l.b16 %v1134
          %v1167 = vpack.c.b16 %v1152, %v1151
          %v1168 = vpack.c.b16 %v1154, %v1153
          %v1169 = vpack.c.b16 %v1156, %v1155
          %v1170 = vpack.c.b16 %v1158, %v1157
          %v1171 = vpack.c.b16 %v1160, %v1159
          %v1172 = vpack.c.b16 %v1162, %v1161
          %v1173 = vpack.c.b16 %v1164, %v1163
          %v1174 = vpack.c.b16 %v1166, %v1165
          %1183 = vmatprep.subr.bf16.mxu0 0
          %1184 = vmatpush1.bf16.msra.mxu0 %v1167
          %1185 = vmatprep.subr.bf16.mxu0 0
          %1186 = vmatpush1.bf16.msra.mxu0 %v1168
          %1187 = vmatprep.subr.bf16.mxu0 0
          %1188 = vmatpush1.bf16.msra.mxu0 %v1169
          %1189 = vmatprep.subr.bf16.mxu0 0
          %1190 = vmatpush1.bf16.msra.mxu0 %v1170
          %1191 = vmatprep.subr.bf16.mxu0 0
          %1192 = vmatpush1.bf16.msra.mxu0 %v1171
          %1193 = vmatprep.subr.bf16.mxu0 0
          %1194 = vmatpush1.bf16.msra.mxu0 %v1172
          %1195 = vmatprep.subr.bf16.mxu0 0
          %1196 = vmatpush1.bf16.msra.mxu0 %v1173
          %1197 = vmatprep.subr.bf16.mxu0 0
          %1198 = vmatpush1.bf16.msra.mxu0 %v1174
          %1199 = vmatprep.subr.bf16.mxu0 0
          %1200 = vmatpush1.bf16.msra.mxu0 0
          %1201 = vmatprep.subr.bf16.mxu0 0
          %1202 = vmatpush1.bf16.msra.mxu0 0
          %1203 = vmatprep.subr.bf16.mxu0 0
          %1204 = vmatpush1.bf16.msra.mxu0 0
          %1205 = vmatprep.subr.bf16.mxu0 0
          %1206 = vmatpush1.bf16.msra.mxu0 0
          %1207 = vmatprep.subr.bf16.mxu0 0
          %1208 = vmatpush1.bf16.msra.mxu0 0
          %1209 = vmatprep.subr.bf16.mxu0 0
          %1210 = vmatpush1.bf16.msra.mxu0 0
          %1211 = vmatprep.subr.bf16.mxu0 0
          %1212 = vmatpush1.bf16.msra.mxu0 0
          %1213 = vmatprep.subr.bf16.mxu0 0
          %1214 = vmatpush1.bf16.msra.mxu0 0
          %1215 = vmatprep.mubr.bf16.mxu0 0
          %1216 = vmatmul.mubr.bf16.gmra.mrb[0].mxu0 %v1103
          %v1217 = vpop.f32.mrb[0].mxu0
          %v1218 = vadd.f32 0.0, %v1217
          %v1219 = vpop.f32.mrb[0].mxu0
          %v1220 = vpop.f32.mrb[0].mxu0
          %v1221 = vadd.f32 0.0, %v1220
          %v1222 = vpop.f32.mrb[0].mxu0
          %1223 = vmatprep.mubr.bf16.mxu0 0
          %1224 = vmatmul.mubr.bf16.gmra.mrb[0].mxu0 %v1104
          %v1225 = vpop.f32.mrb[0].mxu0
          %v1226 = vadd.f32 0.0, %v1225
          %v1227 = vpop.f32.mrb[0].mxu0
          %v1228 = vpop.f32.mrb[0].mxu0
          %v1229 = vadd.f32 0.0, %v1228
          %v1230 = vpop.f32.mrb[0].mxu0
          %1231 = vmatprep.mubr.bf16.mxu0 0
          %1232 = vmatmul.mubr.bf16.gmra.mrb[0].mxu0 %v1105
          %v1233 = vpop.f32.mrb[0].mxu0
          %v1234 = vadd.f32 0.0, %v1233
          %v1235 = vpop.f32.mrb[0].mxu0
          %v1236 = vpop.f32.mrb[0].mxu0
          %v1237 = vadd.f32 0.0, %v1236
          %v1238 = vpop.f32.mrb[0].mxu0
          %1239 = vmatprep.mubr.bf16.mxu0 0
          %1240 = vmatmul.mubr.bf16.gmra.mrb[0].mxu0 %v1106
          %v1241 = vpop.f32.mrb[0].mxu0
          %v1242 = vadd.f32 0.0, %v1241
          %v1243 = vpop.f32.mrb[0].mxu0
          %v1244 = vpop.f32.mrb[0].mxu0
          %v1245 = vadd.f32 0.0, %v1244
          %v1246 = vpop.f32.mrb[0].mxu0
          %1247 = vmatprep.mubr.bf16.mxu0 0
          %1248 = vmatmul.mubr.bf16.gmra.mrb[0].mxu0 %v1107
          %v1249 = vpop.f32.mrb[0].mxu0
          %v1250 = vadd.f32 0.0, %v1249
          %v1251 = vpop.f32.mrb[0].mxu0
          %v1252 = vpop.f32.mrb[0].mxu0
          %v1253 = vadd.f32 0.0, %v1252
          %v1254 = vpop.f32.mrb[0].mxu0
          %1255 = vmatprep.mubr.bf16.mxu0 0
          %1256 = vmatmul.mubr.bf16.gmra.mrb[0].mxu0 %v1108
          %v1257 = vpop.f32.mrb[0].mxu0
          %v1258 = vadd.f32 0.0, %v1257
          %v1259 = vpop.f32.mrb[0].mxu0
          %v1260 = vpop.f32.mrb[0].mxu0
          %v1261 = vadd.f32 0.0, %v1260
          %v1262 = vpop.f32.mrb[0].mxu0
          %1263 = vmatprep.mubr.bf16.mxu0 0
          %1264 = vmatmul.mubr.bf16.gmra.mrb[0].mxu0 %v1109
          %v1265 = vpop.f32.mrb[0].mxu0
          %v1266 = vadd.f32 0.0, %v1265
          %v1267 = vpop.f32.mrb[0].mxu0
          %v1268 = vpop.f32.mrb[0].mxu0
          %v1269 = vadd.f32 0.0, %v1268
          %v1270 = vpop.f32.mrb[0].mxu0
          %1271 = vmatprep.mubr.bf16.mxu0 0
          %1272 = vmatmul.mubr.bf16.gmra.mrb[0].mxu0 %v1110
          %v1273 = vpop.f32.mrb[0].mxu0
          %v1274 = vadd.f32 0.0, %v1273
          %v1275 = vpop.f32.mrb[0].mxu0
          %v1276 = vpop.f32.mrb[0].mxu0
          %v1277 = vadd.f32 0.0, %v1276
          %v1278 = vpop.f32.mrb[0].mxu0
          %1279 = vmatprep.mubr.bf16.mxu0 0
          %1280 = vmatmul.mubr.bf16.gmra.mrb[0].mxu0 %v1111
          %v1281 = vpop.f32.mrb[0].mxu0
          %v1282 = vadd.f32 0.0, %v1281
          %v1283 = vpop.f32.mrb[0].mxu0
          %v1284 = vpop.f32.mrb[0].mxu0
          %v1285 = vadd.f32 0.0, %v1284
          %v1286 = vpop.f32.mrb[0].mxu0
          %1287 = vmatprep.mubr.bf16.mxu0 0
          %1288 = vmatmul.mubr.bf16.gmra.mrb[0].mxu0 %v1112
          %v1289 = vpop.f32.mrb[0].mxu0
          %v1290 = vadd.f32 0.0, %v1289
          %v1291 = vpop.f32.mrb[0].mxu0
          %v1292 = vpop.f32.mrb[0].mxu0
          %v1293 = vadd.f32 0.0, %v1292
          %v1294 = vpop.f32.mrb[0].mxu0
          %1295 = vmatprep.mubr.bf16.mxu0 0
          %1296 = vmatmul.mubr.bf16.gmra.mrb[0].mxu0 %v1113
          %v1297 = vpop.f32.mrb[0].mxu0
          %v1298 = vadd.f32 0.0, %v1297
          %v1299 = vpop.f32.mrb[0].mxu0
          %v1300 = vpop.f32.mrb[0].mxu0
          %v1301 = vadd.f32 0.0, %v1300
          %v1302 = vpop.f32.mrb[0].mxu0
          %1303 = vmatprep.mubr.bf16.mxu0 0
          %1304 = vmatmul.mubr.bf16.gmra.mrb[0].mxu0 %v1114
          %v1305 = vpop.f32.mrb[0].mxu0
          %v1306 = vadd.f32 0.0, %v1305
          %v1307 = vpop.f32.mrb[0].mxu0
          %v1308 = vpop.f32.mrb[0].mxu0
          %v1309 = vadd.f32 0.0, %v1308
          %v1310 = vpop.f32.mrb[0].mxu0
          %1311 = vmatprep.mubr.bf16.mxu0 0
          %1312 = vmatmul.mubr.bf16.gmra.mrb[0].mxu0 %v1115
          %v1313 = vpop.f32.mrb[0].mxu0
          %v1314 = vadd.f32 0.0, %v1313
          %v1315 = vpop.f32.mrb[0].mxu0
          %v1316 = vpop.f32.mrb[0].mxu0
          %v1317 = vadd.f32 0.0, %v1316
          %v1318 = vpop.f32.mrb[0].mxu0
          %1319 = vmatprep.mubr.bf16.mxu0 0
          %1320 = vmatmul.mubr.bf16.gmra.mrb[0].mxu0 %v1116
          %v1321 = vpop.f32.mrb[0].mxu0
          %v1322 = vadd.f32 0.0, %v1321
          %v1323 = vpop.f32.mrb[0].mxu0
          %v1324 = vpop.f32.mrb[0].mxu0
          %v1325 = vadd.f32 0.0, %v1324
          %v1326 = vpop.f32.mrb[0].mxu0
          %1327 = vmatprep.mubr.bf16.mxu0 0
          %1328 = vmatmul.mubr.bf16.gmra.mrb[0].mxu0 %v1117
          %v1329 = vpop.f32.mrb[0].mxu0
          %v1330 = vadd.f32 0.0, %v1329
          %v1331 = vpop.f32.mrb[0].mxu0
          %v1332 = vpop.f32.mrb[0].mxu0
          %v1333 = vadd.f32 0.0, %v1332
          %v1334 = vpop.f32.mrb[0].mxu0
          %1335 = vmatprep.mubr.bf16.mxu0 0
          %1336 = vmatmul.mubr.bf16.gmra.mrb[0].mxu0 %v1118
          %v1337 = vpop.f32.mrb[0].mxu0
          %v1338 = vadd.f32 0.0, %v1337
          %v1339 = vpop.f32.mrb[0].mxu0
          %v1340 = vpop.f32.mrb[0].mxu0
          %v1341 = vadd.f32 0.0, %v1340
          %v1342 = vpop.f32.mrb[0].mxu0
          %1343 = vdwg.mxu0
          %v1344 = vpack.c.bf16 %v1221, %v1218
          %v1345 = vpack.c.bf16 %v1229, %v1226
          %v1346 = vpack.c.bf16 %v1237, %v1234
          %v1347 = vpack.c.bf16 %v1245, %v1242
          %v1348 = vpack.c.bf16 %v1253, %v1250
          %v1349 = vpack.c.bf16 %v1261, %v1258
          %v1350 = vpack.c.bf16 %v1269, %v1266
          %v1351 = vpack.c.bf16 %v1277, %v1274
          %v1352 = vpack.c.bf16 %v1285, %v1282
          %v1353 = vpack.c.bf16 %v1293, %v1290
          %v1354 = vpack.c.bf16 %v1301, %v1298
          %v1355 = vpack.c.bf16 %v1309, %v1306
          %v1356 = vpack.c.bf16 %v1317, %v1314
          %v1357 = vpack.c.bf16 %v1325, %v1322
          %v1358 = vpack.c.bf16 %v1333, %v1330
          %v1359 = vpack.c.bf16 %v1341, %v1338
          %v1376 = vunpack.c.l.b16 %v1344
          %v1377 = vunpack.c.h.b16 %v1344
          %v1378 = vunpack.c.l.b16 %v1345
          %v1379 = vunpack.c.h.b16 %v1345
          %v1380 = vunpack.c.l.b16 %v1346
          %v1381 = vunpack.c.h.b16 %v1346
          %v1382 = vunpack.c.l.b16 %v1347
          %v1383 = vunpack.c.h.b16 %v1347
          %v1384 = vunpack.c.l.b16 %v1348
          %v1385 = vunpack.c.h.b16 %v1348
          %v1386 = vunpack.c.l.b16 %v1349
          %v1387 = vunpack.c.h.b16 %v1349
          %v1388 = vunpack.c.l.b16 %v1350
          %v1389 = vunpack.c.h.b16 %v1350
          %v1390 = vunpack.c.l.b16 %v1351
          %v1391 = vunpack.c.h.b16 %v1351
          %v1392 = vunpack.c.l.b16 %v1352
          %v1393 = vunpack.c.h.b16 %v1352
          %v1394 = vunpack.c.l.b16 %v1353
          %v1395 = vunpack.c.h.b16 %v1353
          %v1396 = vunpack.c.l.b16 %v1354
          %v1397 = vunpack.c.h.b16 %v1354
          %v1398 = vunpack.c.l.b16 %v1355
          %v1399 = vunpack.c.h.b16 %v1355
          %v1400 = vunpack.c.l.b16 %v1356
          %v1401 = vunpack.c.h.b16 %v1356
          %v1402 = vunpack.c.l.b16 %v1357
          %v1403 = vunpack.c.h.b16 %v1357
          %v1404 = vunpack.c.l.b16 %v1358
          %v1405 = vunpack.c.h.b16 %v1358
          %v1406 = vunpack.c.l.b16 %v1359
          %v1407 = vunpack.c.h.b16 %v1359
          %v1408 = vpack.c.b16 %v1376, %v1376
          %v1409 = vpack.c.b16 %v1377, %v1377
          %v1410 = vpack.c.b16 %v1378, %v1378
          %v1411 = vpack.c.b16 %v1379, %v1379
          %v1412 = vpack.c.b16 %v1380, %v1380
          %v1413 = vpack.c.b16 %v1381, %v1381
          %v1414 = vpack.c.b16 %v1382, %v1382
          %v1415 = vpack.c.b16 %v1383, %v1383
          %v1416 = vpack.c.b16 %v1384, %v1384
          %v1417 = vpack.c.b16 %v1385, %v1385
          %v1418 = vpack.c.b16 %v1386, %v1386
          %v1419 = vpack.c.b16 %v1387, %v1387
          %v1420 = vpack.c.b16 %v1388, %v1388
          %v1421 = vpack.c.b16 %v1389, %v1389
          %v1422 = vpack.c.b16 %v1390, %v1390
          %v1423 = vpack.c.b16 %v1391, %v1391
          %v1424 = vpack.c.b16 %v1392, %v1392
          %v1425 = vpack.c.b16 %v1393, %v1393
          %v1426 = vpack.c.b16 %v1394, %v1394
          %v1427 = vpack.c.b16 %v1395, %v1395
          %v1428 = vpack.c.b16 %v1396, %v1396
          %v1429 = vpack.c.b16 %v1397, %v1397
          %v1430 = vpack.c.b16 %v1398, %v1398
          %v1431 = vpack.c.b16 %v1399, %v1399
          %v1432 = vpack.c.b16 %v1400, %v1400
          %v1433 = vpack.c.b16 %v1401, %v1401
          %v1434 = vpack.c.b16 %v1402, %v1402
          %v1435 = vpack.c.b16 %v1403, %v1403
          %v1436 = vpack.c.b16 %v1404, %v1404
          %v1437 = vpack.c.b16 %v1405, %v1405
          %v1438 = vpack.c.b16 %v1406, %v1406
          %v1439 = vpack.c.b16 %v1407, %v1407
          %1472 = vst [vmem:[%s375] sm:$0xf] %v1408
          %1473 = vst [vmem:[%s375 + $0x4] sm:$0xf] %v1409
          %1474 = vst [vmem:[%s375 + $0x8] sm:$0xf] %v1410
          %1475 = vst [vmem:[%s375 + $0xc] sm:$0xf] %v1411
          %1476 = vst [vmem:[%s375 + $0x10] sm:$0xf] %v1412
          %1477 = vst [vmem:[%s375 + $0x14] sm:$0xf] %v1413
          %1478 = vst [vmem:[%s375 + $0x18] sm:$0xf] %v1414
          %1479 = vst [vmem:[%s375 + $0x1c] sm:$0xf] %v1415
          %1480 = vst [vmem:[%s375 + $0x20] sm:$0xf] %v1416
          %1481 = vst [vmem:[%s375 + $0x24] sm:$0xf] %v1417
          %1482 = vst [vmem:[%s375 + $0x28] sm:$0xf] %v1418
          %1483 = vst [vmem:[%s375 + $0x2c] sm:$0xf] %v1419
          %1484 = vst [vmem:[%s375 + $0x30] sm:$0xf] %v1420
          %1485 = vst [vmem:[%s375 + $0x34] sm:$0xf] %v1421
          %1486 = vst [vmem:[%s375 + $0x38] sm:$0xf] %v1422
          %1487 = vst [vmem:[%s375 + $0x3c] sm:$0xf] %v1423
          %1488 = vst [vmem:[%s375 + $0x40] sm:$0xf] %v1424
          %1489 = vst [vmem:[%s375 + $0x44] sm:$0xf] %v1425
          %1490 = vst [vmem:[%s375 + $0x48] sm:$0xf] %v1426
          %1491 = vst [vmem:[%s375 + $0x4c] sm:$0xf] %v1427
          %1492 = vst [vmem:[%s375 + $0x50] sm:$0xf] %v1428
          %1493 = vst [vmem:[%s375 + $0x54] sm:$0xf] %v1429
          %1494 = vst [vmem:[%s375 + $0x58] sm:$0xf] %v1430
          %1495 = vst [vmem:[%s375 + $0x5c] sm:$0xf] %v1431
          %1496 = vst [vmem:[%s375 + $0x60] sm:$0xf] %v1432
          %1497 = vst [vmem:[%s375 + $0x64] sm:$0xf] %v1433
          %1498 = vst [vmem:[%s375 + $0x68] sm:$0xf] %v1434
          %1499 = vst [vmem:[%s375 + $0x6c] sm:$0xf] %v1435
          %1500 = vst [vmem:[%s375 + $0x70] sm:$0xf] %v1436
          %1501 = vst [vmem:[%s375 + $0x74] sm:$0xf] %v1437
          %1502 = vst [vmem:[%s375 + $0x78] sm:$0xf] %v1438
          %1503 = vst [vmem:[%s375 + $0x7c] sm:$0xf] %v1439
        $region82: #{gcn_forward.2} parent=69 // pred_fallthru
          _
        %s1504 = smul.u32 32, %s19
        %p1505 = scmp.lt.s32.totalorder %s1504, 63
        %s1506 = scalar_select %p1505, %s1504, 63
        %s1507 = smul.addr %s1506, 4
        %s1508 = scalar_lea.vmem %s4, %s1507
        // Predicated region
        $region83: #{gcn_forward.2} parent=69 // pred_check
          %p1509 = pneg %p136
        $region84: #{gcn_forward.2} parent=69 // pred_check_branch
          %1511 = sbr.rel (%p1509) target = $region86
        $region85: #{gcn_forward.2} parent=69 // pred_region
          %s1512 = smul.u32 32, %s19
        $region86: #{gcn_forward.2} parent=69 // pred_fallthru
          _
      $region70: #{gcn_forward.2} parent=5 // pred_fallthru
        _
      %p1513 = scmp.le.s32.totalorder 2, %s10
      // Predicated region
      $region87: #{gcn_forward.2} parent=5 // pred_check
        %p1514 = pneg %p1513
      $region88: #{gcn_forward.2} parent=5 // pred_check_branch
        %1516 = sbr.rel (%p1514) target = $region90
      $region89: #{gcn_forward.2} parent=5 // pred_region
        %s1517 = ssub.s32 %s10, 2
        // Predicated region
        $region91: #{gcn_forward.2} parent=89 // pred_check
          %p1518 = pneg %p142
        $region92: #{gcn_forward.2} parent=89 // pred_check_branch
          %1520 = sbr.rel (%p1518) target = $region94
        $region93: #{gcn_forward.2} parent=89 // pred_region
          %s1521 = smul.u32 32, %s21
          %p1522 = scmp.lt.s32.totalorder %s1521, 63
          %s1523 = scalar_select %p1522, %s1521, 63
          %s1524 = smul.addr %s1523, 4
          %s1525 = scalar_lea.vmem %s4, %s1524
        $region94: #{gcn_forward.2} parent=89 // pred_fallthru
          _
      $region90: #{gcn_forward.2} parent=5 // pred_fallthru
        _
    $region6: #{gcn_forward.2} parent=1 // loop_footer
      %s14 = sadd.s32 1, %s10
    $region7: #{gcn_forward.2} parent=1 // loop_footer_branch
      %9 = sbr.rel target = $region3
    $region8: #{gcn_forward.2} parent=1 // loop_exit
      _

</llo_original>
